<compile_context>
chip_gen: v7x
topology: tpu7x:2x2x1
jax: 0.10.0
libtpu: 0.0.40
codegen_flags: <defaults>
</compile_context>

<pallas_src>
import math

import jax
import jax.numpy as jnp
from jax.experimental import pallas as pl
from jax.experimental.pallas import tpu as pltpu

# ----------------------------- model hyperparams -----------------------------
B = 2              # batch
P = 8              # num_patches (T)
D_IN = 196         # fixed by the module: nn.Linear(196, embed_dim)
D = 32             # embed_dim
DM = 64            # hidden_dim of the MLP
C = 10             # num_classes
L = 2              # num_layers
H = 4              # num_heads
S = P + 1          # real sequence length (cls + patches)
SP = 16            # padded sequence length (multiple of 8 sublanes)
HD = D // H        # head dim
CP = 128           # lane-dense padded output width
CLS_ROW = P        # internal row of the cls token (kept 8-aligned)
LN_EPS = 1e-5


# ------------------------------- kernel helpers ------------------------------
def _layer_norm(x, g, b):
    mu = jnp.mean(x, axis=-1, keepdims=True)
    var = jnp.mean((x - mu) ** 2, axis=-1, keepdims=True)
    return (x - mu) * jax.lax.rsqrt(var + LN_EPS) * g + b


def _gelu(x):
    # exact (erf) GELU to match torch.nn.GELU() default
    return 0.5 * x * (1.0 + jax.lax.erf(x * 0.7071067811865476))


# ---------------------------------- kernel -----------------------------------
def vit_kernel(
    x_ref,                                               # (B, P, D_IN)
    proj_w_ref, proj_b_ref, cls_ref, pos_ref,            # projection / embeddings
    ln1_g_ref, ln1_b_ref, wq_ref, bq_ref, wk_ref, bk_ref,
    wv_ref, bv_ref, wo_ref, bo_ref,                      # attention params (stacked on L)
    ln2_g_ref, ln2_b_ref, w1_ref, b1_ref, w2_ref, b2_ref,  # MLP params (stacked on L)
    lnf_g_ref, lnf_b_ref, hw_ref, hb_ref,                # final LN + head (lane-padded)
    out_ref,                                             # (B, CP)
):
    f32 = jnp.float32
    scale = 1.0 / math.sqrt(HD)

    # ---- patch projection: whole batch in one matmul ----
    xin = x_ref[...].reshape(B * P, D_IN)
    proj = jnp.dot(xin, proj_w_ref[...], preferred_element_type=f32) + proj_b_ref[...]
    proj3 = proj.reshape(B, P, D)                                   # (B, P, D)

    # ---- build padded sequence (internal layout: rows 0..7 = patches, row 8 = cls,
    #      rows 9..15 = padding).  pos_ref was permuted/padded accordingly in the
    #      wrapper, so all sublane ops stay 8-aligned.
    row = jax.lax.broadcasted_iota(jnp.int32, (B, SP - P, D), 1)
    cls_b = jnp.broadcast_to(cls_ref[...].reshape(1, 1, D), (B, SP - P, D))
    cls_blk = jnp.where(row == 0, cls_b, jnp.zeros_like(cls_b))      # (B, 8, D)
    seq = (jnp.concatenate([proj3, cls_blk], axis=1) + pos_ref[...][None])
    seq = seq.reshape(B * SP, D)                                     # (B*SP, D)

    # ---- constants hoisted out of the layer loop ----
    lane = jax.lax.broadcasted_iota(jnp.int32, (1, 1, D), 2)
    head_masks = [((lane >= h * HD) & (lane < (h + 1) * HD)).astype(f32)
                  for h in range(H)]
    kpos = jax.lax.broadcasted_iota(jnp.int32, (1, 1, SP), 2)
    key_bias = jnp.where(kpos < S, 0.0, -1e30).astype(f32)           # mask padded keys

    # ---- encoder blocks (statically unrolled) ----
    for l in range(L):
        # --- pre-norm multi-head self attention ---
        y = _layer_norm(seq, ln1_g_ref[l], ln1_b_ref[l])
        q = (jnp.dot(y, wq_ref[l], preferred_element_type=f32) + bq_ref[l]).reshape(B, SP, D)
        k = (jnp.dot(y, wk_ref[l], preferred_element_type=f32) + bk_ref[l]).reshape(B, SP, D)
        v = (jnp.dot(y, wv_ref[l], preferred_element_type=f32) + bv_ref[l]).reshape(B, SP, D)

        # Heads handled with full-lane-width masked matmuls (no 8-lane slicing,
        # no reshapes of the lane dim); context accumulates directly into the
        # correct D columns so a single output projection suffices.
        ctx = None
        for h in range(H):
            m = head_masks[h]
            s = jnp.einsum('bqd,bkd->bqk', q, k * m, preferred_element_type=f32)
            s = s * scale + key_bias
            s = s - jnp.max(s, axis=-1, keepdims=True)
            p = jnp.exp(s)
            p = p * pl.reciprocal(jnp.sum(p, axis=-1, keepdims=True), approx=True)
            term = jnp.einsum('bqk,bkd->bqd', p, v * m, preferred_element_type=f32)
            ctx = term if ctx is None else ctx + term

        attn = jnp.dot(ctx.reshape(B * SP, D), wo_ref[l],
                       preferred_element_type=f32) + bo_ref[l]
        seq = seq + attn

        # --- pre-norm MLP ---
        y2 = _layer_norm(seq, ln2_g_ref[l], ln2_b_ref[l])
        mid = _gelu(jnp.dot(y2, w1_ref[l], preferred_element_type=f32) + b1_ref[l])
        seq = seq + jnp.dot(mid, w2_ref[l], preferred_element_type=f32) + b2_ref[l]

    # ---- classification head on the cls row (lane-dense padded output) ----
    cls_out = seq.reshape(B, SP, D)[:, CLS_ROW, :]                   # (B, D)
    cls_out = _layer_norm(cls_out, lnf_g_ref[...], lnf_b_ref[...])
    out_ref[...] = jnp.dot(cls_out, hw_ref[...], preferred_element_type=f32) + hb_ref[...]


# --------------------------------- wrapper ------------------------------------
def _full_spec(shape):
    nd = len(shape)
    return pl.BlockSpec(shape, lambda i, _nd=nd: (0,) * _nd)


@jax.jit
def vit_forward(x, params):
    p = params
    # internal positional-embedding layout: [pos(1..P), pos(0)=cls, zeros pad]
    pos_int = jnp.concatenate(
        [p["pos_emb"][1:S], p["pos_emb"][0:1], jnp.zeros((SP - S, D), jnp.float32)],
        axis=0)
    # lane-dense head: pad output dim C -> CP with zeros
    hw_pad = jnp.pad(p["head_w"], ((0, 0), (0, CP - C)))
    hb_pad = jnp.pad(p["head_b"], ((0, 0), (0, CP - C)))

    args = [x, p["proj_w"], p["proj_b"], p["cls_tok"], pos_int,
            p["ln1_g"], p["ln1_b"], p["wq"], p["bq"], p["wk"], p["bk"],
            p["wv"], p["bv"], p["wo"], p["bo"],
            p["ln2_g"], p["ln2_b"], p["w1"], p["b1"], p["w2"], p["b2"],
            p["lnf_g"], p["lnf_b"], hw_pad, hb_pad]

    out_padded = pl.pallas_call(
        vit_kernel,
        out_shape=jax.ShapeDtypeStruct((B, CP), jnp.float32),
        grid=(1,),                                   # whole batch fused in one step
        in_specs=[_full_spec(a.shape) for a in args],
        out_specs=pl.BlockSpec((B, CP), lambda i: (0, 0)),
        compiler_params=pltpu.CompilerParams(dimension_semantics=("arbitrary",)),
    )(*args)
    return out_padded[:, :C]


# --------------------------- pure-JAX reference -------------------------------
def vit_reference(x, p):
    Bx = x.shape[0]
    proj = x @ p["proj_w"] + p["proj_b"]                               # (B, P, D)
    cls = jnp.broadcast_to(p["cls_tok"][None], (Bx, 1, D))
    seq = jnp.concatenate([cls, proj], axis=1) + p["pos_emb"][None]    # (B, S, D)
    scale = 1.0 / math.sqrt(HD)
    for l in range(L):
        y = _layer_norm(seq, p["ln1_g"][l], p["ln1_b"][l])
        q = y @ p["wq"][l] + p["bq"][l]
        k = y @ p["wk"][l] + p["bk"][l]
        v = y @ p["wv"][l] + p["bv"][l]
        qh = q.reshape(Bx, S, H, HD).transpose(0, 2, 1, 3)
        kh = k.reshape(Bx, S, H, HD).transpose(0, 2, 1, 3)
        vh = v.reshape(Bx, S, H, HD).transpose(0, 2, 1, 3)
        a = jax.nn.softmax((qh @ kh.transpose(0, 1, 3, 2)) * scale, axis=-1)
        oh = (a @ vh).transpose(0, 2, 1, 3).reshape(Bx, S, D)
        seq = seq + (oh @ p["wo"][l] + p["bo"][l])
        y2 = _layer_norm(seq, p["ln2_g"][l], p["ln2_b"][l])
        seq = seq + _gelu(y2 @ p["w1"][l] + p["b1"][l]) @ p["w2"][l] + p["b2"][l]
    cls_out = _layer_norm(seq[:, 0, :], p["lnf_g"], p["lnf_b"])
    return cls_out @ p["head_w"] + p["head_b"]


# ------------------------------ param creation ---------------------------------
def make_params(key):
    def nrm(k, shape, s):
        return (s * jax.random.normal(k, shape)).astype(jnp.float32)

    ks = jax.random.split(key, 24)
    return {
        "proj_w": nrm(ks[0], (D_IN, D), 1.0 / math.sqrt(D_IN)),
        "proj_b": nrm(ks[1], (1, D), 0.02),
        "cls_tok": nrm(ks[2], (1, D), 1.0),
        "pos_emb": nrm(ks[3], (S, D), 1.0),
        "ln1_g": jnp.ones((L, 1, D), jnp.float32),
        "ln1_b": jnp.zeros((L, 1, D), jnp.float32),
        "wq": nrm(ks[4], (L, D, D), 1.0 / math.sqrt(D)),
        "bq": nrm(ks[5], (L, 1, D), 0.02),
        "wk": nrm(ks[6], (L, D, D), 1.0 / math.sqrt(D)),
        "bk": nrm(ks[7], (L, 1, D), 0.02),
        "wv": nrm(ks[8], (L, D, D), 1.0 / math.sqrt(D)),
        "bv": nrm(ks[9], (L, 1, D), 0.02),
        "wo": nrm(ks[10], (L, D, D), 1.0 / math.sqrt(D)),
        "bo": nrm(ks[11], (L, 1, D), 0.02),
        "ln2_g": jnp.ones((L, 1, D), jnp.float32),
        "ln2_b": jnp.zeros((L, 1, D), jnp.float32),
        "w1": nrm(ks[12], (L, D, DM), 1.0 / math.sqrt(D)),
        "b1": nrm(ks[13], (L, 1, DM), 0.02),
        "w2": nrm(ks[14], (L, DM, D), 1.0 / math.sqrt(DM)),
        "b2": nrm(ks[15], (L, 1, D), 0.02),
        "lnf_g": jnp.ones((1, D), jnp.float32),
        "lnf_b": jnp.zeros((1, D), jnp.float32),
        "head_w": nrm(ks[16], (D, C), 1.0 / math.sqrt(D)),
        "head_b": nrm(ks[17], (1, C), 0.02),
    }


# ----------------------------------- main --------------------------------------
if __name__ == "__main__":
    key = jax.random.PRNGKey(0)
    kx, kp = jax.random.split(key)
    x = jax.random.normal(kx, (B, P, D_IN), dtype=jnp.float32)
    params = make_params(kp)

    out = jax.block_until_ready(vit_forward(x, params))
    ref = vit_reference(x, params)

    assert out.shape == (B, C), out.shape
    # slightly relaxed tolerance: approx EUP reciprocal in the in-kernel softmax
    assert jnp.allclose(out, ref, rtol=2e-3, atol=2e-3), (out, ref)

    print("KERNEL_OK")
</pallas_src>

<mosaic_0001>
module attributes {stable_mosaic.version = 11 : i64} {
  func.func @vit_kernel(%arg0: i32, %arg1: memref<2x8x196xf32, #tpu.memory_space<vmem>>, %arg2: memref<196x32xf32, #tpu.memory_space<vmem>>, %arg3: memref<1x32xf32, #tpu.memory_space<vmem>>, %arg4: memref<1x32xf32, #tpu.memory_space<vmem>>, %arg5: memref<16x32xf32, #tpu.memory_space<vmem>>, %arg6: memref<2x1x32xf32, #tpu.memory_space<vmem>>, %arg7: memref<2x1x32xf32, #tpu.memory_space<vmem>>, %arg8: memref<2x32x32xf32, #tpu.memory_space<vmem>>, %arg9: memref<2x1x32xf32, #tpu.memory_space<vmem>>, %arg10: memref<2x32x32xf32, #tpu.memory_space<vmem>>, %arg11: memref<2x1x32xf32, #tpu.memory_space<vmem>>, %arg12: memref<2x32x32xf32, #tpu.memory_space<vmem>>, %arg13: memref<2x1x32xf32, #tpu.memory_space<vmem>>, %arg14: memref<2x32x32xf32, #tpu.memory_space<vmem>>, %arg15: memref<2x1x32xf32, #tpu.memory_space<vmem>>, %arg16: memref<2x1x32xf32, #tpu.memory_space<vmem>>, %arg17: memref<2x1x32xf32, #tpu.memory_space<vmem>>, %arg18: memref<2x32x64xf32, #tpu.memory_space<vmem>>, %arg19: memref<2x1x64xf32, #tpu.memory_space<vmem>>, %arg20: memref<2x64x32xf32, #tpu.memory_space<vmem>>, %arg21: memref<2x1x32xf32, #tpu.memory_space<vmem>>, %arg22: memref<1x32xf32, #tpu.memory_space<vmem>>, %arg23: memref<1x32xf32, #tpu.memory_space<vmem>>, %arg24: memref<32x128xf32, #tpu.memory_space<vmem>>, %arg25: memref<1x128xf32, #tpu.memory_space<vmem>>, %arg26: memref<2x128xf32, #tpu.memory_space<vmem>>) attributes {dimension_semantics = [#tpu.dimension_semantics<arbitrary>], iteration_bounds = array<i64: 1>, scalar_prefetch = 0 : i64, scratch_operands = 0 : i64, tpu.core_type = #tpu.core_type<tc>, window_params = [{pipeline_mode = #tpu.pipeline_mode<synchronous>, transform_indices = @transform_0, window_bounds = array<i64: 2, 8, 196>}, {pipeline_mode = #tpu.pipeline_mode<synchronous>, transform_indices = @transform_1, window_bounds = array<i64: 196, 32>}, {pipeline_mode = #tpu.pipeline_mode<synchronous>, transform_indices = @transform_2, window_bounds = array<i64: 1, 32>}, {pipeline_mode = #tpu.pipeline_mode<synchronous>, transform_indices = @transform_3, window_bounds = array<i64: 1, 32>}, {pipeline_mode = #tpu.pipeline_mode<synchronous>, transform_indices = @transform_4, window_bounds = array<i64: 16, 32>}, {pipeline_mode = #tpu.pipeline_mode<synchronous>, transform_indices = @transform_5, window_bounds = array<i64: 2, 1, 32>}, {pipeline_mode = #tpu.pipeline_mode<synchronous>, transform_indices = @transform_6, window_bounds = array<i64: 2, 1, 32>}, {pipeline_mode = #tpu.pipeline_mode<synchronous>, transform_indices = @transform_7, window_bounds = array<i64: 2, 32, 32>}, {pipeline_mode = #tpu.pipeline_mode<synchronous>, transform_indices = @transform_8, window_bounds = array<i64: 2, 1, 32>}, {pipeline_mode = #tpu.pipeline_mode<synchronous>, transform_indices = @transform_9, window_bounds = array<i64: 2, 32, 32>}, {pipeline_mode = #tpu.pipeline_mode<synchronous>, transform_indices = @transform_10, window_bounds = array<i64: 2, 1, 32>}, {pipeline_mode = #tpu.pipeline_mode<synchronous>, transform_indices = @transform_11, window_bounds = array<i64: 2, 32, 32>}, {pipeline_mode = #tpu.pipeline_mode<synchronous>, transform_indices = @transform_12, window_bounds = array<i64: 2, 1, 32>}, {pipeline_mode = #tpu.pipeline_mode<synchronous>, transform_indices = @transform_13, window_bounds = array<i64: 2, 32, 32>}, {pipeline_mode = #tpu.pipeline_mode<synchronous>, transform_indices = @transform_14, window_bounds = array<i64: 2, 1, 32>}, {pipeline_mode = #tpu.pipeline_mode<synchronous>, transform_indices = @transform_15, window_bounds = array<i64: 2, 1, 32>}, {pipeline_mode = #tpu.pipeline_mode<synchronous>, transform_indices = @transform_16, window_bounds = array<i64: 2, 1, 32>}, {pipeline_mode = #tpu.pipeline_mode<synchronous>, transform_indices = @transform_17, window_bounds = array<i64: 2, 32, 64>}, {pipeline_mode = #tpu.pipeline_mode<synchronous>, transform_indices = @transform_18, window_bounds = array<i64: 2, 1, 64>}, {pipeline_mode = #tpu.pipeline_mode<synchronous>, transform_indices = @transform_19, window_bounds = array<i64: 2, 64, 32>}, {pipeline_mode = #tpu.pipeline_mode<synchronous>, transform_indices = @transform_20, window_bounds = array<i64: 2, 1, 32>}, {pipeline_mode = #tpu.pipeline_mode<synchronous>, transform_indices = @transform_21, window_bounds = array<i64: 1, 32>}, {pipeline_mode = #tpu.pipeline_mode<synchronous>, transform_indices = @transform_22, window_bounds = array<i64: 1, 32>}, {pipeline_mode = #tpu.pipeline_mode<synchronous>, transform_indices = @transform_23, window_bounds = array<i64: 32, 128>}, {pipeline_mode = #tpu.pipeline_mode<synchronous>, transform_indices = @transform_24, window_bounds = array<i64: 1, 128>}, {pipeline_mode = #tpu.pipeline_mode<synchronous>, transform_indices = @transform_25, window_bounds = array<i64: 2, 128>}]} {
    %c0 = arith.constant 0 : index
    %c0_0 = arith.constant 0 : index
    %c0_1 = arith.constant 0 : index
    %0 = vector.load %arg1[%c0, %c0_0, %c0_1] : memref<2x8x196xf32, #tpu.memory_space<vmem>>, vector<2x8x196xf32>
    %1 = vector.shape_cast %0 : vector<2x8x196xf32> to vector<16x196xf32>
    %c0_2 = arith.constant 0 : index
    %c0_3 = arith.constant 0 : index
    %2 = vector.load %arg2[%c0_2, %c0_3] : memref<196x32xf32, #tpu.memory_space<vmem>>, vector<196x32xf32>
    %cst = arith.constant dense<0.000000e+00> : vector<16x32xf32>
    %3 = tpu.matmul %1, %2, %cst {dimension_numbers = #tpu.dot_dimension_numbers<[1], [0], [0], [1], [0, 0, 1, 1], [], []>} : vector<16x196xf32>, vector<196x32xf32>, vector<16x32xf32> -> vector<16x32xf32>
    %c0_4 = arith.constant 0 : index
    %c0_5 = arith.constant 0 : index
    %4 = vector.load %arg3[%c0_4, %c0_5] : memref<1x32xf32, #tpu.memory_space<vmem>>, vector<1x32xf32>
    %5 = vector.broadcast %4 : vector<1x32xf32> to vector<16x32xf32>
    %6 = arith.addf %3, %5 : vector<16x32xf32>
    %7 = vector.shape_cast %6 : vector<16x32xf32> to vector<2x8x32xf32>
    %8 = tpu.iota {dimensions = array<i32: 1>} : vector<2x8x32xi32>
    %c0_6 = arith.constant 0 : index
    %c0_7 = arith.constant 0 : index
    %9 = vector.load %arg4[%c0_6, %c0_7] : memref<1x32xf32, #tpu.memory_space<vmem>>, vector<1x32xf32>
    %10 = vector.shape_cast %9 : vector<1x32xf32> to vector<1x1x32xf32>
    %11 = vector.shape_cast %10 : vector<1x1x32xf32> to vector<1x1x32xf32>
    %12 = vector.broadcast %11 : vector<1x1x32xf32> to vector<2x8x32xf32>
    %c0_i32 = arith.constant 0 : i32
    %13 = vector.broadcast %c0_i32 : i32 to vector<2x8x32xi32>
    %14 = arith.cmpi eq, %8, %13 : vector<2x8x32xi32>
    %cst_8 = arith.constant 0.000000e+00 : f32
    %15 = vector.broadcast %cst_8 : f32 to vector<2x8x32xf32>
    %16 = arith.select %14, %12, %15 : vector<2x8x32xi1>, vector<2x8x32xf32>
    %17 = tpu.concatenate %7, %16 in 1 : vector<2x8x32xf32>, vector<2x8x32xf32> -> vector<2x16x32xf32>
    %c0_9 = arith.constant 0 : index
    %c0_10 = arith.constant 0 : index
    %18 = vector.load %arg5[%c0_9, %c0_10] : memref<16x32xf32, #tpu.memory_space<vmem>>, vector<16x32xf32>
    %19 = vector.shape_cast %18 : vector<16x32xf32> to vector<1x16x32xf32>
    %20 = vector.broadcast %19 : vector<1x16x32xf32> to vector<2x16x32xf32>
    %21 = arith.addf %17, %20 : vector<2x16x32xf32>
    %22 = vector.shape_cast %21 : vector<2x16x32xf32> to vector<32x32xf32>
    %23 = tpu.iota {dimensions = array<i32: 2>} : vector<1x1x32xi32>
    %c0_i32_11 = arith.constant 0 : i32
    %24 = vector.broadcast %c0_i32_11 : i32 to vector<1x1x32xi32>
    %25 = arith.cmpi sge, %23, %24 : vector<1x1x32xi32>
    %c8_i32 = arith.constant 8 : i32
    %26 = vector.broadcast %c8_i32 : i32 to vector<1x1x32xi32>
    %27 = arith.cmpi slt, %23, %26 : vector<1x1x32xi32>
    %28 = arith.andi %25, %27 : vector<1x1x32xi1>
    %29 = arith.extui %28 : vector<1x1x32xi1> to vector<1x1x32xi32>
    %30 = arith.sitofp %29 : vector<1x1x32xi32> to vector<1x1x32xf32>
    %c8_i32_12 = arith.constant 8 : i32
    %31 = vector.broadcast %c8_i32_12 : i32 to vector<1x1x32xi32>
    %32 = arith.cmpi sge, %23, %31 : vector<1x1x32xi32>
    %c16_i32 = arith.constant 16 : i32
    %33 = vector.broadcast %c16_i32 : i32 to vector<1x1x32xi32>
    %34 = arith.cmpi slt, %23, %33 : vector<1x1x32xi32>
    %35 = arith.andi %32, %34 : vector<1x1x32xi1>
    %36 = arith.extui %35 : vector<1x1x32xi1> to vector<1x1x32xi32>
    %37 = arith.sitofp %36 : vector<1x1x32xi32> to vector<1x1x32xf32>
    %c16_i32_13 = arith.constant 16 : i32
    %38 = vector.broadcast %c16_i32_13 : i32 to vector<1x1x32xi32>
    %39 = arith.cmpi sge, %23, %38 : vector<1x1x32xi32>
    %c24_i32 = arith.constant 24 : i32
    %40 = vector.broadcast %c24_i32 : i32 to vector<1x1x32xi32>
    %41 = arith.cmpi slt, %23, %40 : vector<1x1x32xi32>
    %42 = arith.andi %39, %41 : vector<1x1x32xi1>
    %43 = arith.extui %42 : vector<1x1x32xi1> to vector<1x1x32xi32>
    %44 = arith.sitofp %43 : vector<1x1x32xi32> to vector<1x1x32xf32>
    %c24_i32_14 = arith.constant 24 : i32
    %45 = vector.broadcast %c24_i32_14 : i32 to vector<1x1x32xi32>
    %46 = arith.cmpi sge, %23, %45 : vector<1x1x32xi32>
    %c32_i32 = arith.constant 32 : i32
    %47 = vector.broadcast %c32_i32 : i32 to vector<1x1x32xi32>
    %48 = arith.cmpi slt, %23, %47 : vector<1x1x32xi32>
    %49 = arith.andi %46, %48 : vector<1x1x32xi1>
    %50 = arith.extui %49 : vector<1x1x32xi1> to vector<1x1x32xi32>
    %51 = arith.sitofp %50 : vector<1x1x32xi32> to vector<1x1x32xf32>
    %52 = tpu.iota {dimensions = array<i32: 2>} : vector<1x1x16xi32>
    %c9_i32 = arith.constant 9 : i32
    %53 = vector.broadcast %c9_i32 : i32 to vector<1x1x16xi32>
    %54 = arith.cmpi slt, %52, %53 : vector<1x1x16xi32>
    %cst_15 = arith.constant 0.000000e+00 : f32
    %cst_16 = arith.constant -1.000000e+30 : f32
    %55 = vector.broadcast %cst_15 : f32 to vector<1x1x16xf32>
    %56 = vector.broadcast %cst_16 : f32 to vector<1x1x16xf32>
    %57 = arith.select %54, %55, %56 : vector<1x1x16xi1>, vector<1x1x16xf32>
    %c0_17 = arith.constant 0 : index
    %c0_18 = arith.constant 0 : index
    %c0_19 = arith.constant 0 : index
    %58 = vector.load %arg6[%c0_17, %c0_18, %c0_19] : memref<2x1x32xf32, #tpu.memory_space<vmem>>, vector<1x1x32xf32>
    %59 = vector.shape_cast %58 : vector<1x1x32xf32> to vector<1x32xf32>
    %c0_20 = arith.constant 0 : index
    %c0_21 = arith.constant 0 : index
    %c0_22 = arith.constant 0 : index
    %60 = vector.load %arg7[%c0_20, %c0_21, %c0_22] : memref<2x1x32xf32, #tpu.memory_space<vmem>>, vector<1x1x32xf32>
    %61 = vector.shape_cast %60 : vector<1x1x32xf32> to vector<1x32xf32>
    %cst_23 = arith.constant dense<0.000000e+00> : vector<32xf32>
    %62 = vector.multi_reduction <add>, %22, %cst_23 [1] : vector<32x32xf32> to vector<32xf32>
    %63 = vector.shape_cast %62 : vector<32xf32> to vector<32x1xf32>
    %cst_24 = arith.constant 3.200000e+01 : f32
    %64 = vector.broadcast %cst_24 : f32 to vector<32x1xf32>
    %65 = arith.divf %63, %64 : vector<32x1xf32>
    %66 = vector.broadcast %65 : vector<32x1xf32> to vector<32x32xf32>
    %67 = arith.subf %22, %66 : vector<32x32xf32>
    %68 = arith.mulf %67, %67 : vector<32x32xf32>
    %cst_25 = arith.constant dense<0.000000e+00> : vector<32xf32>
    %69 = vector.multi_reduction <add>, %68, %cst_25 [1] : vector<32x32xf32> to vector<32xf32>
    %70 = vector.shape_cast %69 : vector<32xf32> to vector<32x1xf32>
    %cst_26 = arith.constant 3.200000e+01 : f32
    %71 = vector.broadcast %cst_26 : f32 to vector<32x1xf32>
    %72 = arith.divf %70, %71 : vector<32x1xf32>
    %73 = vector.broadcast %65 : vector<32x1xf32> to vector<32x32xf32>
    %74 = arith.subf %22, %73 : vector<32x32xf32>
    %cst_27 = arith.constant 9.99999974E-6 : f32
    %75 = vector.broadcast %cst_27 : f32 to vector<32x1xf32>
    %76 = arith.addf %72, %75 : vector<32x1xf32>
    %77 = math.rsqrt %76 : vector<32x1xf32>
    %78 = vector.broadcast %77 : vector<32x1xf32> to vector<32x32xf32>
    %79 = arith.mulf %74, %78 : vector<32x32xf32>
    %80 = vector.broadcast %59 : vector<1x32xf32> to vector<32x32xf32>
    %81 = arith.mulf %79, %80 : vector<32x32xf32>
    %82 = vector.broadcast %61 : vector<1x32xf32> to vector<32x32xf32>
    %83 = arith.addf %81, %82 : vector<32x32xf32>
    %c0_28 = arith.constant 0 : index
    %c0_29 = arith.constant 0 : index
    %c0_30 = arith.constant 0 : index
    %84 = vector.load %arg8[%c0_28, %c0_29, %c0_30] : memref<2x32x32xf32, #tpu.memory_space<vmem>>, vector<1x32x32xf32>
    %85 = vector.shape_cast %84 : vector<1x32x32xf32> to vector<32x32xf32>
    %cst_31 = arith.constant dense<0.000000e+00> : vector<32x32xf32>
    %86 = tpu.matmul %83, %85, %cst_31 {dimension_numbers = #tpu.dot_dimension_numbers<[1], [0], [0], [1], [0, 0, 1, 1], [], []>} : vector<32x32xf32>, vector<32x32xf32>, vector<32x32xf32> -> vector<32x32xf32>
    %c0_32 = arith.constant 0 : index
    %c0_33 = arith.constant 0 : index
    %c0_34 = arith.constant 0 : index
    %87 = vector.load %arg9[%c0_32, %c0_33, %c0_34] : memref<2x1x32xf32, #tpu.memory_space<vmem>>, vector<1x1x32xf32>
    %88 = vector.shape_cast %87 : vector<1x1x32xf32> to vector<1x32xf32>
    %89 = vector.broadcast %88 : vector<1x32xf32> to vector<32x32xf32>
    %90 = arith.addf %86, %89 : vector<32x32xf32>
    %91 = vector.shape_cast %90 : vector<32x32xf32> to vector<2x16x32xf32>
    %c0_35 = arith.constant 0 : index
    %c0_36 = arith.constant 0 : index
    %c0_37 = arith.constant 0 : index
    %92 = vector.load %arg10[%c0_35, %c0_36, %c0_37] : memref<2x32x32xf32, #tpu.memory_space<vmem>>, vector<1x32x32xf32>
    %93 = vector.shape_cast %92 : vector<1x32x32xf32> to vector<32x32xf32>
    %cst_38 = arith.constant dense<0.000000e+00> : vector<32x32xf32>
    %94 = tpu.matmul %83, %93, %cst_38 {dimension_numbers = #tpu.dot_dimension_numbers<[1], [0], [0], [1], [0, 0, 1, 1], [], []>} : vector<32x32xf32>, vector<32x32xf32>, vector<32x32xf32> -> vector<32x32xf32>
    %c0_39 = arith.constant 0 : index
    %c0_40 = arith.constant 0 : index
    %c0_41 = arith.constant 0 : index
    %95 = vector.load %arg11[%c0_39, %c0_40, %c0_41] : memref<2x1x32xf32, #tpu.memory_space<vmem>>, vector<1x1x32xf32>
    %96 = vector.shape_cast %95 : vector<1x1x32xf32> to vector<1x32xf32>
    %97 = vector.broadcast %96 : vector<1x32xf32> to vector<32x32xf32>
    %98 = arith.addf %94, %97 : vector<32x32xf32>
    %99 = vector.shape_cast %98 : vector<32x32xf32> to vector<2x16x32xf32>
    %c0_42 = arith.constant 0 : index
    %c0_43 = arith.constant 0 : index
    %c0_44 = arith.constant 0 : index
    %100 = vector.load %arg12[%c0_42, %c0_43, %c0_44] : memref<2x32x32xf32, #tpu.memory_space<vmem>>, vector<1x32x32xf32>
    %101 = vector.shape_cast %100 : vector<1x32x32xf32> to vector<32x32xf32>
    %cst_45 = arith.constant dense<0.000000e+00> : vector<32x32xf32>
    %102 = tpu.matmul %83, %101, %cst_45 {dimension_numbers = #tpu.dot_dimension_numbers<[1], [0], [0], [1], [0, 0, 1, 1], [], []>} : vector<32x32xf32>, vector<32x32xf32>, vector<32x32xf32> -> vector<32x32xf32>
    %c0_46 = arith.constant 0 : index
    %c0_47 = arith.constant 0 : index
    %c0_48 = arith.constant 0 : index
    %103 = vector.load %arg13[%c0_46, %c0_47, %c0_48] : memref<2x1x32xf32, #tpu.memory_space<vmem>>, vector<1x1x32xf32>
    %104 = vector.shape_cast %103 : vector<1x1x32xf32> to vector<1x32xf32>
    %105 = vector.broadcast %104 : vector<1x32xf32> to vector<32x32xf32>
    %106 = arith.addf %102, %105 : vector<32x32xf32>
    %107 = vector.shape_cast %106 : vector<32x32xf32> to vector<2x16x32xf32>
    %108 = vector.broadcast %30 : vector<1x1x32xf32> to vector<2x16x32xf32>
    %109 = arith.mulf %99, %108 : vector<2x16x32xf32>
    "tpu.trace_start"() <{level = 10 : i32, message = "bqd,bkd->bqk"}> : () -> ()
    %cst_49 = arith.constant dense<0.000000e+00> : vector<2x16x16xf32>
    %110 = tpu.matmul %91, %109, %cst_49 {dimension_numbers = #tpu.dot_dimension_numbers<[2], [2], [1], [1], [0, 0, 0, 1, 1, 1], [0], [0]>} : vector<2x16x32xf32>, vector<2x16x32xf32>, vector<2x16x16xf32> -> vector<2x16x16xf32>
    "tpu.trace_stop"() : () -> ()
    %cst_50 = arith.constant 0.353553385 : f32
    %111 = vector.broadcast %cst_50 : f32 to vector<2x16x16xf32>
    %112 = arith.mulf %110, %111 : vector<2x16x16xf32>
    %113 = vector.broadcast %57 : vector<1x1x16xf32> to vector<2x16x16xf32>
    %114 = arith.addf %112, %113 : vector<2x16x16xf32>
    %cst_51 = arith.constant dense<0xFF800000> : vector<2x16xf32>
    %115 = vector.multi_reduction <maximumf>, %114, %cst_51 [2] : vector<2x16x16xf32> to vector<2x16xf32>
    %116 = vector.shape_cast %115 : vector<2x16xf32> to vector<2x16x1xf32>
    %117 = vector.broadcast %116 : vector<2x16x1xf32> to vector<2x16x16xf32>
    %118 = arith.subf %114, %117 : vector<2x16x16xf32>
    %119 = math.exp %118 : vector<2x16x16xf32>
    %cst_52 = arith.constant dense<0.000000e+00> : vector<2x16xf32>
    %120 = vector.multi_reduction <add>, %119, %cst_52 [2] : vector<2x16x16xf32> to vector<2x16xf32>
    %121 = vector.shape_cast %120 : vector<2x16xf32> to vector<2x16x1xf32>
    %122 = tpu.reciprocal %121 {approx = true} : vector<2x16x1xf32> -> vector<2x16x1xf32>
    %123 = vector.broadcast %122 : vector<2x16x1xf32> to vector<2x16x16xf32>
    %124 = arith.mulf %119, %123 : vector<2x16x16xf32>
    %125 = vector.broadcast %30 : vector<1x1x32xf32> to vector<2x16x32xf32>
    %126 = arith.mulf %107, %125 : vector<2x16x32xf32>
    "tpu.trace_start"() <{level = 10 : i32, message = "bqk,bkd->bqd"}> : () -> ()
    %cst_53 = arith.constant dense<0.000000e+00> : vector<2x16x32xf32>
    %127 = tpu.matmul %124, %126, %cst_53 {dimension_numbers = #tpu.dot_dimension_numbers<[2], [1], [1], [2], [0, 0, 0, 1, 1, 2], [0], [0]>} : vector<2x16x16xf32>, vector<2x16x32xf32>, vector<2x16x32xf32> -> vector<2x16x32xf32>
    "tpu.trace_stop"() : () -> ()
    %128 = vector.broadcast %37 : vector<1x1x32xf32> to vector<2x16x32xf32>
    %129 = arith.mulf %99, %128 : vector<2x16x32xf32>
    "tpu.trace_start"() <{level = 10 : i32, message = "bqd,bkd->bqk"}> : () -> ()
    %cst_54 = arith.constant dense<0.000000e+00> : vector<2x16x16xf32>
    %130 = tpu.matmul %91, %129, %cst_54 {dimension_numbers = #tpu.dot_dimension_numbers<[2], [2], [1], [1], [0, 0, 0, 1, 1, 1], [0], [0]>} : vector<2x16x32xf32>, vector<2x16x32xf32>, vector<2x16x16xf32> -> vector<2x16x16xf32>
    "tpu.trace_stop"() : () -> ()
    %cst_55 = arith.constant 0.353553385 : f32
    %131 = vector.broadcast %cst_55 : f32 to vector<2x16x16xf32>
    %132 = arith.mulf %130, %131 : vector<2x16x16xf32>
    %133 = vector.broadcast %57 : vector<1x1x16xf32> to vector<2x16x16xf32>
    %134 = arith.addf %132, %133 : vector<2x16x16xf32>
    %cst_56 = arith.constant dense<0xFF800000> : vector<2x16xf32>
    %135 = vector.multi_reduction <maximumf>, %134, %cst_56 [2] : vector<2x16x16xf32> to vector<2x16xf32>
    %136 = vector.shape_cast %135 : vector<2x16xf32> to vector<2x16x1xf32>
    %137 = vector.broadcast %136 : vector<2x16x1xf32> to vector<2x16x16xf32>
    %138 = arith.subf %134, %137 : vector<2x16x16xf32>
    %139 = math.exp %138 : vector<2x16x16xf32>
    %cst_57 = arith.constant dense<0.000000e+00> : vector<2x16xf32>
    %140 = vector.multi_reduction <add>, %139, %cst_57 [2] : vector<2x16x16xf32> to vector<2x16xf32>
    %141 = vector.shape_cast %140 : vector<2x16xf32> to vector<2x16x1xf32>
    %142 = tpu.reciprocal %141 {approx = true} : vector<2x16x1xf32> -> vector<2x16x1xf32>
    %143 = vector.broadcast %142 : vector<2x16x1xf32> to vector<2x16x16xf32>
    %144 = arith.mulf %139, %143 : vector<2x16x16xf32>
    %145 = vector.broadcast %37 : vector<1x1x32xf32> to vector<2x16x32xf32>
    %146 = arith.mulf %107, %145 : vector<2x16x32xf32>
    "tpu.trace_start"() <{level = 10 : i32, message = "bqk,bkd->bqd"}> : () -> ()
    %cst_58 = arith.constant dense<0.000000e+00> : vector<2x16x32xf32>
    %147 = tpu.matmul %144, %146, %cst_58 {dimension_numbers = #tpu.dot_dimension_numbers<[2], [1], [1], [2], [0, 0, 0, 1, 1, 2], [0], [0]>} : vector<2x16x16xf32>, vector<2x16x32xf32>, vector<2x16x32xf32> -> vector<2x16x32xf32>
    "tpu.trace_stop"() : () -> ()
    %148 = arith.addf %127, %147 : vector<2x16x32xf32>
    %149 = vector.broadcast %44 : vector<1x1x32xf32> to vector<2x16x32xf32>
    %150 = arith.mulf %99, %149 : vector<2x16x32xf32>
    "tpu.trace_start"() <{level = 10 : i32, message = "bqd,bkd->bqk"}> : () -> ()
    %cst_59 = arith.constant dense<0.000000e+00> : vector<2x16x16xf32>
    %151 = tpu.matmul %91, %150, %cst_59 {dimension_numbers = #tpu.dot_dimension_numbers<[2], [2], [1], [1], [0, 0, 0, 1, 1, 1], [0], [0]>} : vector<2x16x32xf32>, vector<2x16x32xf32>, vector<2x16x16xf32> -> vector<2x16x16xf32>
    "tpu.trace_stop"() : () -> ()
    %cst_60 = arith.constant 0.353553385 : f32
    %152 = vector.broadcast %cst_60 : f32 to vector<2x16x16xf32>
    %153 = arith.mulf %151, %152 : vector<2x16x16xf32>
    %154 = vector.broadcast %57 : vector<1x1x16xf32> to vector<2x16x16xf32>
    %155 = arith.addf %153, %154 : vector<2x16x16xf32>
    %cst_61 = arith.constant dense<0xFF800000> : vector<2x16xf32>
    %156 = vector.multi_reduction <maximumf>, %155, %cst_61 [2] : vector<2x16x16xf32> to vector<2x16xf32>
    %157 = vector.shape_cast %156 : vector<2x16xf32> to vector<2x16x1xf32>
    %158 = vector.broadcast %157 : vector<2x16x1xf32> to vector<2x16x16xf32>
    %159 = arith.subf %155, %158 : vector<2x16x16xf32>
    %160 = math.exp %159 : vector<2x16x16xf32>
    %cst_62 = arith.constant dense<0.000000e+00> : vector<2x16xf32>
    %161 = vector.multi_reduction <add>, %160, %cst_62 [2] : vector<2x16x16xf32> to vector<2x16xf32>
    %162 = vector.shape_cast %161 : vector<2x16xf32> to vector<2x16x1xf32>
    %163 = tpu.reciprocal %162 {approx = true} : vector<2x16x1xf32> -> vector<2x16x1xf32>
    %164 = vector.broadcast %163 : vector<2x16x1xf32> to vector<2x16x16xf32>
    %165 = arith.mulf %160, %164 : vector<2x16x16xf32>
    %166 = vector.broadcast %44 : vector<1x1x32xf32> to vector<2x16x32xf32>
    %167 = arith.mulf %107, %166 : vector<2x16x32xf32>
    "tpu.trace_start"() <{level = 10 : i32, message = "bqk,bkd->bqd"}> : () -> ()
    %cst_63 = arith.constant dense<0.000000e+00> : vector<2x16x32xf32>
    %168 = tpu.matmul %165, %167, %cst_63 {dimension_numbers = #tpu.dot_dimension_numbers<[2], [1], [1], [2], [0, 0, 0, 1, 1, 2], [0], [0]>} : vector<2x16x16xf32>, vector<2x16x32xf32>, vector<2x16x32xf32> -> vector<2x16x32xf32>
    "tpu.trace_stop"() : () -> ()
    %169 = arith.addf %148, %168 : vector<2x16x32xf32>
    %170 = vector.broadcast %51 : vector<1x1x32xf32> to vector<2x16x32xf32>
    %171 = arith.mulf %99, %170 : vector<2x16x32xf32>
    "tpu.trace_start"() <{level = 10 : i32, message = "bqd,bkd->bqk"}> : () -> ()
    %cst_64 = arith.constant dense<0.000000e+00> : vector<2x16x16xf32>
    %172 = tpu.matmul %91, %171, %cst_64 {dimension_numbers = #tpu.dot_dimension_numbers<[2], [2], [1], [1], [0, 0, 0, 1, 1, 1], [0], [0]>} : vector<2x16x32xf32>, vector<2x16x32xf32>, vector<2x16x16xf32> -> vector<2x16x16xf32>
    "tpu.trace_stop"() : () -> ()
    %cst_65 = arith.constant 0.353553385 : f32
    %173 = vector.broadcast %cst_65 : f32 to vector<2x16x16xf32>
    %174 = arith.mulf %172, %173 : vector<2x16x16xf32>
    %175 = vector.broadcast %57 : vector<1x1x16xf32> to vector<2x16x16xf32>
    %176 = arith.addf %174, %175 : vector<2x16x16xf32>
    %cst_66 = arith.constant dense<0xFF800000> : vector<2x16xf32>
    %177 = vector.multi_reduction <maximumf>, %176, %cst_66 [2] : vector<2x16x16xf32> to vector<2x16xf32>
    %178 = vector.shape_cast %177 : vector<2x16xf32> to vector<2x16x1xf32>
    %179 = vector.broadcast %178 : vector<2x16x1xf32> to vector<2x16x16xf32>
    %180 = arith.subf %176, %179 : vector<2x16x16xf32>
    %181 = math.exp %180 : vector<2x16x16xf32>
    %cst_67 = arith.constant dense<0.000000e+00> : vector<2x16xf32>
    %182 = vector.multi_reduction <add>, %181, %cst_67 [2] : vector<2x16x16xf32> to vector<2x16xf32>
    %183 = vector.shape_cast %182 : vector<2x16xf32> to vector<2x16x1xf32>
    %184 = tpu.reciprocal %183 {approx = true} : vector<2x16x1xf32> -> vector<2x16x1xf32>
    %185 = vector.broadcast %184 : vector<2x16x1xf32> to vector<2x16x16xf32>
    %186 = arith.mulf %181, %185 : vector<2x16x16xf32>
    %187 = vector.broadcast %51 : vector<1x1x32xf32> to vector<2x16x32xf32>
    %188 = arith.mulf %107, %187 : vector<2x16x32xf32>
    "tpu.trace_start"() <{level = 10 : i32, message = "bqk,bkd->bqd"}> : () -> ()
    %cst_68 = arith.constant dense<0.000000e+00> : vector<2x16x32xf32>
    %189 = tpu.matmul %186, %188, %cst_68 {dimension_numbers = #tpu.dot_dimension_numbers<[2], [1], [1], [2], [0, 0, 0, 1, 1, 2], [0], [0]>} : vector<2x16x16xf32>, vector<2x16x32xf32>, vector<2x16x32xf32> -> vector<2x16x32xf32>
    "tpu.trace_stop"() : () -> ()
    %190 = arith.addf %169, %189 : vector<2x16x32xf32>
    %191 = vector.shape_cast %190 : vector<2x16x32xf32> to vector<32x32xf32>
    %c0_69 = arith.constant 0 : index
    %c0_70 = arith.constant 0 : index
    %c0_71 = arith.constant 0 : index
    %192 = vector.load %arg14[%c0_69, %c0_70, %c0_71] : memref<2x32x32xf32, #tpu.memory_space<vmem>>, vector<1x32x32xf32>
    %193 = vector.shape_cast %192 : vector<1x32x32xf32> to vector<32x32xf32>
    %cst_72 = arith.constant dense<0.000000e+00> : vector<32x32xf32>
    %194 = tpu.matmul %191, %193, %cst_72 {dimension_numbers = #tpu.dot_dimension_numbers<[1], [0], [0], [1], [0, 0, 1, 1], [], []>} : vector<32x32xf32>, vector<32x32xf32>, vector<32x32xf32> -> vector<32x32xf32>
    %c0_73 = arith.constant 0 : index
    %c0_74 = arith.constant 0 : index
    %c0_75 = arith.constant 0 : index
    %195 = vector.load %arg15[%c0_73, %c0_74, %c0_75] : memref<2x1x32xf32, #tpu.memory_space<vmem>>, vector<1x1x32xf32>
    %196 = vector.shape_cast %195 : vector<1x1x32xf32> to vector<1x32xf32>
    %197 = vector.broadcast %196 : vector<1x32xf32> to vector<32x32xf32>
    %198 = arith.addf %194, %197 : vector<32x32xf32>
    %199 = arith.addf %22, %198 : vector<32x32xf32>
    %c0_76 = arith.constant 0 : index
    %c0_77 = arith.constant 0 : index
    %c0_78 = arith.constant 0 : index
    %200 = vector.load %arg16[%c0_76, %c0_77, %c0_78] : memref<2x1x32xf32, #tpu.memory_space<vmem>>, vector<1x1x32xf32>
    %201 = vector.shape_cast %200 : vector<1x1x32xf32> to vector<1x32xf32>
    %c0_79 = arith.constant 0 : index
    %c0_80 = arith.constant 0 : index
    %c0_81 = arith.constant 0 : index
    %202 = vector.load %arg17[%c0_79, %c0_80, %c0_81] : memref<2x1x32xf32, #tpu.memory_space<vmem>>, vector<1x1x32xf32>
    %203 = vector.shape_cast %202 : vector<1x1x32xf32> to vector<1x32xf32>
    %cst_82 = arith.constant dense<0.000000e+00> : vector<32xf32>
    %204 = vector.multi_reduction <add>, %199, %cst_82 [1] : vector<32x32xf32> to vector<32xf32>
    %205 = vector.shape_cast %204 : vector<32xf32> to vector<32x1xf32>
    %cst_83 = arith.constant 3.200000e+01 : f32
    %206 = vector.broadcast %cst_83 : f32 to vector<32x1xf32>
    %207 = arith.divf %205, %206 : vector<32x1xf32>
    %208 = vector.broadcast %207 : vector<32x1xf32> to vector<32x32xf32>
    %209 = arith.subf %199, %208 : vector<32x32xf32>
    %210 = arith.mulf %209, %209 : vector<32x32xf32>
    %cst_84 = arith.constant dense<0.000000e+00> : vector<32xf32>
    %211 = vector.multi_reduction <add>, %210, %cst_84 [1] : vector<32x32xf32> to vector<32xf32>
    %212 = vector.shape_cast %211 : vector<32xf32> to vector<32x1xf32>
    %cst_85 = arith.constant 3.200000e+01 : f32
    %213 = vector.broadcast %cst_85 : f32 to vector<32x1xf32>
    %214 = arith.divf %212, %213 : vector<32x1xf32>
    %215 = vector.broadcast %207 : vector<32x1xf32> to vector<32x32xf32>
    %216 = arith.subf %199, %215 : vector<32x32xf32>
    %cst_86 = arith.constant 9.99999974E-6 : f32
    %217 = vector.broadcast %cst_86 : f32 to vector<32x1xf32>
    %218 = arith.addf %214, %217 : vector<32x1xf32>
    %219 = math.rsqrt %218 : vector<32x1xf32>
    %220 = vector.broadcast %219 : vector<32x1xf32> to vector<32x32xf32>
    %221 = arith.mulf %216, %220 : vector<32x32xf32>
    %222 = vector.broadcast %201 : vector<1x32xf32> to vector<32x32xf32>
    %223 = arith.mulf %221, %222 : vector<32x32xf32>
    %224 = vector.broadcast %203 : vector<1x32xf32> to vector<32x32xf32>
    %225 = arith.addf %223, %224 : vector<32x32xf32>
    %c0_87 = arith.constant 0 : index
    %c0_88 = arith.constant 0 : index
    %c0_89 = arith.constant 0 : index
    %226 = vector.load %arg18[%c0_87, %c0_88, %c0_89] : memref<2x32x64xf32, #tpu.memory_space<vmem>>, vector<1x32x64xf32>
    %227 = vector.shape_cast %226 : vector<1x32x64xf32> to vector<32x64xf32>
    %cst_90 = arith.constant dense<0.000000e+00> : vector<32x64xf32>
    %228 = tpu.matmul %225, %227, %cst_90 {dimension_numbers = #tpu.dot_dimension_numbers<[1], [0], [0], [1], [0, 0, 1, 1], [], []>} : vector<32x32xf32>, vector<32x64xf32>, vector<32x64xf32> -> vector<32x64xf32>
    %c0_91 = arith.constant 0 : index
    %c0_92 = arith.constant 0 : index
    %c0_93 = arith.constant 0 : index
    %229 = vector.load %arg19[%c0_91, %c0_92, %c0_93] : memref<2x1x64xf32, #tpu.memory_space<vmem>>, vector<1x1x64xf32>
    %230 = vector.shape_cast %229 : vector<1x1x64xf32> to vector<1x64xf32>
    %231 = vector.broadcast %230 : vector<1x64xf32> to vector<32x64xf32>
    %232 = arith.addf %228, %231 : vector<32x64xf32>
    %cst_94 = arith.constant 5.000000e-01 : f32
    %233 = vector.broadcast %cst_94 : f32 to vector<32x64xf32>
    %234 = arith.mulf %233, %232 : vector<32x64xf32>
    %cst_95 = arith.constant 0.707106769 : f32
    %235 = vector.broadcast %cst_95 : f32 to vector<32x64xf32>
    %236 = arith.mulf %232, %235 : vector<32x64xf32>
    %237 = math.erf %236 : vector<32x64xf32>
    %cst_96 = arith.constant 1.000000e+00 : f32
    %238 = vector.broadcast %cst_96 : f32 to vector<32x64xf32>
    %239 = arith.addf %238, %237 : vector<32x64xf32>
    %240 = arith.mulf %234, %239 : vector<32x64xf32>
    %c0_97 = arith.constant 0 : index
    %c0_98 = arith.constant 0 : index
    %c0_99 = arith.constant 0 : index
    %241 = vector.load %arg20[%c0_97, %c0_98, %c0_99] : memref<2x64x32xf32, #tpu.memory_space<vmem>>, vector<1x64x32xf32>
    %242 = vector.shape_cast %241 : vector<1x64x32xf32> to vector<64x32xf32>
    %cst_100 = arith.constant dense<0.000000e+00> : vector<32x32xf32>
    %243 = tpu.matmul %240, %242, %cst_100 {dimension_numbers = #tpu.dot_dimension_numbers<[1], [0], [0], [1], [0, 0, 1, 1], [], []>} : vector<32x64xf32>, vector<64x32xf32>, vector<32x32xf32> -> vector<32x32xf32>
    %244 = arith.addf %199, %243 : vector<32x32xf32>
    %c0_101 = arith.constant 0 : index
    %c0_102 = arith.constant 0 : index
    %c0_103 = arith.constant 0 : index
    %245 = vector.load %arg21[%c0_101, %c0_102, %c0_103] : memref<2x1x32xf32, #tpu.memory_space<vmem>>, vector<1x1x32xf32>
    %246 = vector.shape_cast %245 : vector<1x1x32xf32> to vector<1x32xf32>
    %247 = vector.broadcast %246 : vector<1x32xf32> to vector<32x32xf32>
    %248 = arith.addf %244, %247 : vector<32x32xf32>
    %c1 = arith.constant 1 : index
    %c0_104 = arith.constant 0 : index
    %c0_105 = arith.constant 0 : index
    %249 = vector.load %arg6[%c1, %c0_104, %c0_105] : memref<2x1x32xf32, #tpu.memory_space<vmem>>, vector<1x1x32xf32>
    %250 = vector.shape_cast %249 : vector<1x1x32xf32> to vector<1x32xf32>
    %c1_106 = arith.constant 1 : index
    %c0_107 = arith.constant 0 : index
    %c0_108 = arith.constant 0 : index
    %251 = vector.load %arg7[%c1_106, %c0_107, %c0_108] : memref<2x1x32xf32, #tpu.memory_space<vmem>>, vector<1x1x32xf32>
    %252 = vector.shape_cast %251 : vector<1x1x32xf32> to vector<1x32xf32>
    %cst_109 = arith.constant dense<0.000000e+00> : vector<32xf32>
    %253 = vector.multi_reduction <add>, %248, %cst_109 [1] : vector<32x32xf32> to vector<32xf32>
    %254 = vector.shape_cast %253 : vector<32xf32> to vector<32x1xf32>
    %cst_110 = arith.constant 3.200000e+01 : f32
    %255 = vector.broadcast %cst_110 : f32 to vector<32x1xf32>
    %256 = arith.divf %254, %255 : vector<32x1xf32>
    %257 = vector.broadcast %256 : vector<32x1xf32> to vector<32x32xf32>
    %258 = arith.subf %248, %257 : vector<32x32xf32>
    %259 = arith.mulf %258, %258 : vector<32x32xf32>
    %cst_111 = arith.constant dense<0.000000e+00> : vector<32xf32>
    %260 = vector.multi_reduction <add>, %259, %cst_111 [1] : vector<32x32xf32> to vector<32xf32>
    %261 = vector.shape_cast %260 : vector<32xf32> to vector<32x1xf32>
    %cst_112 = arith.constant 3.200000e+01 : f32
    %262 = vector.broadcast %cst_112 : f32 to vector<32x1xf32>
    %263 = arith.divf %261, %262 : vector<32x1xf32>
    %264 = vector.broadcast %256 : vector<32x1xf32> to vector<32x32xf32>
    %265 = arith.subf %248, %264 : vector<32x32xf32>
    %cst_113 = arith.constant 9.99999974E-6 : f32
    %266 = vector.broadcast %cst_113 : f32 to vector<32x1xf32>
    %267 = arith.addf %263, %266 : vector<32x1xf32>
    %268 = math.rsqrt %267 : vector<32x1xf32>
    %269 = vector.broadcast %268 : vector<32x1xf32> to vector<32x32xf32>
    %270 = arith.mulf %265, %269 : vector<32x32xf32>
    %271 = vector.broadcast %250 : vector<1x32xf32> to vector<32x32xf32>
    %272 = arith.mulf %270, %271 : vector<32x32xf32>
    %273 = vector.broadcast %252 : vector<1x32xf32> to vector<32x32xf32>
    %274 = arith.addf %272, %273 : vector<32x32xf32>
    %c1_114 = arith.constant 1 : index
    %c0_115 = arith.constant 0 : index
    %c0_116 = arith.constant 0 : index
    %275 = vector.load %arg8[%c1_114, %c0_115, %c0_116] : memref<2x32x32xf32, #tpu.memory_space<vmem>>, vector<1x32x32xf32>
    %276 = vector.shape_cast %275 : vector<1x32x32xf32> to vector<32x32xf32>
    %cst_117 = arith.constant dense<0.000000e+00> : vector<32x32xf32>
    %277 = tpu.matmul %274, %276, %cst_117 {dimension_numbers = #tpu.dot_dimension_numbers<[1], [0], [0], [1], [0, 0, 1, 1], [], []>} : vector<32x32xf32>, vector<32x32xf32>, vector<32x32xf32> -> vector<32x32xf32>
    %c1_118 = arith.constant 1 : index
    %c0_119 = arith.constant 0 : index
    %c0_120 = arith.constant 0 : index
    %278 = vector.load %arg9[%c1_118, %c0_119, %c0_120] : memref<2x1x32xf32, #tpu.memory_space<vmem>>, vector<1x1x32xf32>
    %279 = vector.shape_cast %278 : vector<1x1x32xf32> to vector<1x32xf32>
    %280 = vector.broadcast %279 : vector<1x32xf32> to vector<32x32xf32>
    %281 = arith.addf %277, %280 : vector<32x32xf32>
    %282 = vector.shape_cast %281 : vector<32x32xf32> to vector<2x16x32xf32>
    %c1_121 = arith.constant 1 : index
    %c0_122 = arith.constant 0 : index
    %c0_123 = arith.constant 0 : index
    %283 = vector.load %arg10[%c1_121, %c0_122, %c0_123] : memref<2x32x32xf32, #tpu.memory_space<vmem>>, vector<1x32x32xf32>
    %284 = vector.shape_cast %283 : vector<1x32x32xf32> to vector<32x32xf32>
    %cst_124 = arith.constant dense<0.000000e+00> : vector<32x32xf32>
    %285 = tpu.matmul %274, %284, %cst_124 {dimension_numbers = #tpu.dot_dimension_numbers<[1], [0], [0], [1], [0, 0, 1, 1], [], []>} : vector<32x32xf32>, vector<32x32xf32>, vector<32x32xf32> -> vector<32x32xf32>
    %c1_125 = arith.constant 1 : index
    %c0_126 = arith.constant 0 : index
    %c0_127 = arith.constant 0 : index
    %286 = vector.load %arg11[%c1_125, %c0_126, %c0_127] : memref<2x1x32xf32, #tpu.memory_space<vmem>>, vector<1x1x32xf32>
    %287 = vector.shape_cast %286 : vector<1x1x32xf32> to vector<1x32xf32>
    %288 = vector.broadcast %287 : vector<1x32xf32> to vector<32x32xf32>
    %289 = arith.addf %285, %288 : vector<32x32xf32>
    %290 = vector.shape_cast %289 : vector<32x32xf32> to vector<2x16x32xf32>
    %c1_128 = arith.constant 1 : index
    %c0_129 = arith.constant 0 : index
    %c0_130 = arith.constant 0 : index
    %291 = vector.load %arg12[%c1_128, %c0_129, %c0_130] : memref<2x32x32xf32, #tpu.memory_space<vmem>>, vector<1x32x32xf32>
    %292 = vector.shape_cast %291 : vector<1x32x32xf32> to vector<32x32xf32>
    %cst_131 = arith.constant dense<0.000000e+00> : vector<32x32xf32>
    %293 = tpu.matmul %274, %292, %cst_131 {dimension_numbers = #tpu.dot_dimension_numbers<[1], [0], [0], [1], [0, 0, 1, 1], [], []>} : vector<32x32xf32>, vector<32x32xf32>, vector<32x32xf32> -> vector<32x32xf32>
    %c1_132 = arith.constant 1 : index
    %c0_133 = arith.constant 0 : index
    %c0_134 = arith.constant 0 : index
    %294 = vector.load %arg13[%c1_132, %c0_133, %c0_134] : memref<2x1x32xf32, #tpu.memory_space<vmem>>, vector<1x1x32xf32>
    %295 = vector.shape_cast %294 : vector<1x1x32xf32> to vector<1x32xf32>
    %296 = vector.broadcast %295 : vector<1x32xf32> to vector<32x32xf32>
    %297 = arith.addf %293, %296 : vector<32x32xf32>
    %298 = vector.shape_cast %297 : vector<32x32xf32> to vector<2x16x32xf32>
    %299 = vector.broadcast %30 : vector<1x1x32xf32> to vector<2x16x32xf32>
    %300 = arith.mulf %290, %299 : vector<2x16x32xf32>
    "tpu.trace_start"() <{level = 10 : i32, message = "bqd,bkd->bqk"}> : () -> ()
    %cst_135 = arith.constant dense<0.000000e+00> : vector<2x16x16xf32>
    %301 = tpu.matmul %282, %300, %cst_135 {dimension_numbers = #tpu.dot_dimension_numbers<[2], [2], [1], [1], [0, 0, 0, 1, 1, 1], [0], [0]>} : vector<2x16x32xf32>, vector<2x16x32xf32>, vector<2x16x16xf32> -> vector<2x16x16xf32>
    "tpu.trace_stop"() : () -> ()
    %cst_136 = arith.constant 0.353553385 : f32
    %302 = vector.broadcast %cst_136 : f32 to vector<2x16x16xf32>
    %303 = arith.mulf %301, %302 : vector<2x16x16xf32>
    %304 = vector.broadcast %57 : vector<1x1x16xf32> to vector<2x16x16xf32>
    %305 = arith.addf %303, %304 : vector<2x16x16xf32>
    %cst_137 = arith.constant dense<0xFF800000> : vector<2x16xf32>
    %306 = vector.multi_reduction <maximumf>, %305, %cst_137 [2] : vector<2x16x16xf32> to vector<2x16xf32>
    %307 = vector.shape_cast %306 : vector<2x16xf32> to vector<2x16x1xf32>
    %308 = vector.broadcast %307 : vector<2x16x1xf32> to vector<2x16x16xf32>
    %309 = arith.subf %305, %308 : vector<2x16x16xf32>
    %310 = math.exp %309 : vector<2x16x16xf32>
    %cst_138 = arith.constant dense<0.000000e+00> : vector<2x16xf32>
    %311 = vector.multi_reduction <add>, %310, %cst_138 [2] : vector<2x16x16xf32> to vector<2x16xf32>
    %312 = vector.shape_cast %311 : vector<2x16xf32> to vector<2x16x1xf32>
    %313 = tpu.reciprocal %312 {approx = true} : vector<2x16x1xf32> -> vector<2x16x1xf32>
    %314 = vector.broadcast %313 : vector<2x16x1xf32> to vector<2x16x16xf32>
    %315 = arith.mulf %310, %314 : vector<2x16x16xf32>
    %316 = vector.broadcast %30 : vector<1x1x32xf32> to vector<2x16x32xf32>
    %317 = arith.mulf %298, %316 : vector<2x16x32xf32>
    "tpu.trace_start"() <{level = 10 : i32, message = "bqk,bkd->bqd"}> : () -> ()
    %cst_139 = arith.constant dense<0.000000e+00> : vector<2x16x32xf32>
    %318 = tpu.matmul %315, %317, %cst_139 {dimension_numbers = #tpu.dot_dimension_numbers<[2], [1], [1], [2], [0, 0, 0, 1, 1, 2], [0], [0]>} : vector<2x16x16xf32>, vector<2x16x32xf32>, vector<2x16x32xf32> -> vector<2x16x32xf32>
    "tpu.trace_stop"() : () -> ()
    %319 = vector.broadcast %37 : vector<1x1x32xf32> to vector<2x16x32xf32>
    %320 = arith.mulf %290, %319 : vector<2x16x32xf32>
    "tpu.trace_start"() <{level = 10 : i32, message = "bqd,bkd->bqk"}> : () -> ()
    %cst_140 = arith.constant dense<0.000000e+00> : vector<2x16x16xf32>
    %321 = tpu.matmul %282, %320, %cst_140 {dimension_numbers = #tpu.dot_dimension_numbers<[2], [2], [1], [1], [0, 0, 0, 1, 1, 1], [0], [0]>} : vector<2x16x32xf32>, vector<2x16x32xf32>, vector<2x16x16xf32> -> vector<2x16x16xf32>
    "tpu.trace_stop"() : () -> ()
    %cst_141 = arith.constant 0.353553385 : f32
    %322 = vector.broadcast %cst_141 : f32 to vector<2x16x16xf32>
    %323 = arith.mulf %321, %322 : vector<2x16x16xf32>
    %324 = vector.broadcast %57 : vector<1x1x16xf32> to vector<2x16x16xf32>
    %325 = arith.addf %323, %324 : vector<2x16x16xf32>
    %cst_142 = arith.constant dense<0xFF800000> : vector<2x16xf32>
    %326 = vector.multi_reduction <maximumf>, %325, %cst_142 [2] : vector<2x16x16xf32> to vector<2x16xf32>
    %327 = vector.shape_cast %326 : vector<2x16xf32> to vector<2x16x1xf32>
    %328 = vector.broadcast %327 : vector<2x16x1xf32> to vector<2x16x16xf32>
    %329 = arith.subf %325, %328 : vector<2x16x16xf32>
    %330 = math.exp %329 : vector<2x16x16xf32>
    %cst_143 = arith.constant dense<0.000000e+00> : vector<2x16xf32>
    %331 = vector.multi_reduction <add>, %330, %cst_143 [2] : vector<2x16x16xf32> to vector<2x16xf32>
    %332 = vector.shape_cast %331 : vector<2x16xf32> to vector<2x16x1xf32>
    %333 = tpu.reciprocal %332 {approx = true} : vector<2x16x1xf32> -> vector<2x16x1xf32>
    %334 = vector.broadcast %333 : vector<2x16x1xf32> to vector<2x16x16xf32>
    %335 = arith.mulf %330, %334 : vector<2x16x16xf32>
    %336 = vector.broadcast %37 : vector<1x1x32xf32> to vector<2x16x32xf32>
    %337 = arith.mulf %298, %336 : vector<2x16x32xf32>
    "tpu.trace_start"() <{level = 10 : i32, message = "bqk,bkd->bqd"}> : () -> ()
    %cst_144 = arith.constant dense<0.000000e+00> : vector<2x16x32xf32>
    %338 = tpu.matmul %335, %337, %cst_144 {dimension_numbers = #tpu.dot_dimension_numbers<[2], [1], [1], [2], [0, 0, 0, 1, 1, 2], [0], [0]>} : vector<2x16x16xf32>, vector<2x16x32xf32>, vector<2x16x32xf32> -> vector<2x16x32xf32>
    "tpu.trace_stop"() : () -> ()
    %339 = arith.addf %318, %338 : vector<2x16x32xf32>
    %340 = vector.broadcast %44 : vector<1x1x32xf32> to vector<2x16x32xf32>
    %341 = arith.mulf %290, %340 : vector<2x16x32xf32>
    "tpu.trace_start"() <{level = 10 : i32, message = "bqd,bkd->bqk"}> : () -> ()
    %cst_145 = arith.constant dense<0.000000e+00> : vector<2x16x16xf32>
    %342 = tpu.matmul %282, %341, %cst_145 {dimension_numbers = #tpu.dot_dimension_numbers<[2], [2], [1], [1], [0, 0, 0, 1, 1, 1], [0], [0]>} : vector<2x16x32xf32>, vector<2x16x32xf32>, vector<2x16x16xf32> -> vector<2x16x16xf32>
    "tpu.trace_stop"() : () -> ()
    %cst_146 = arith.constant 0.353553385 : f32
    %343 = vector.broadcast %cst_146 : f32 to vector<2x16x16xf32>
    %344 = arith.mulf %342, %343 : vector<2x16x16xf32>
    %345 = vector.broadcast %57 : vector<1x1x16xf32> to vector<2x16x16xf32>
    %346 = arith.addf %344, %345 : vector<2x16x16xf32>
    %cst_147 = arith.constant dense<0xFF800000> : vector<2x16xf32>
    %347 = vector.multi_reduction <maximumf>, %346, %cst_147 [2] : vector<2x16x16xf32> to vector<2x16xf32>
    %348 = vector.shape_cast %347 : vector<2x16xf32> to vector<2x16x1xf32>
    %349 = vector.broadcast %348 : vector<2x16x1xf32> to vector<2x16x16xf32>
    %350 = arith.subf %346, %349 : vector<2x16x16xf32>
    %351 = math.exp %350 : vector<2x16x16xf32>
    %cst_148 = arith.constant dense<0.000000e+00> : vector<2x16xf32>
    %352 = vector.multi_reduction <add>, %351, %cst_148 [2] : vector<2x16x16xf32> to vector<2x16xf32>
    %353 = vector.shape_cast %352 : vector<2x16xf32> to vector<2x16x1xf32>
    %354 = tpu.reciprocal %353 {approx = true} : vector<2x16x1xf32> -> vector<2x16x1xf32>
    %355 = vector.broadcast %354 : vector<2x16x1xf32> to vector<2x16x16xf32>
    %356 = arith.mulf %351, %355 : vector<2x16x16xf32>
    %357 = vector.broadcast %44 : vector<1x1x32xf32> to vector<2x16x32xf32>
    %358 = arith.mulf %298, %357 : vector<2x16x32xf32>
    "tpu.trace_start"() <{level = 10 : i32, message = "bqk,bkd->bqd"}> : () -> ()
    %cst_149 = arith.constant dense<0.000000e+00> : vector<2x16x32xf32>
    %359 = tpu.matmul %356, %358, %cst_149 {dimension_numbers = #tpu.dot_dimension_numbers<[2], [1], [1], [2], [0, 0, 0, 1, 1, 2], [0], [0]>} : vector<2x16x16xf32>, vector<2x16x32xf32>, vector<2x16x32xf32> -> vector<2x16x32xf32>
    "tpu.trace_stop"() : () -> ()
    %360 = arith.addf %339, %359 : vector<2x16x32xf32>
    %361 = vector.broadcast %51 : vector<1x1x32xf32> to vector<2x16x32xf32>
    %362 = arith.mulf %290, %361 : vector<2x16x32xf32>
    "tpu.trace_start"() <{level = 10 : i32, message = "bqd,bkd->bqk"}> : () -> ()
    %cst_150 = arith.constant dense<0.000000e+00> : vector<2x16x16xf32>
    %363 = tpu.matmul %282, %362, %cst_150 {dimension_numbers = #tpu.dot_dimension_numbers<[2], [2], [1], [1], [0, 0, 0, 1, 1, 1], [0], [0]>} : vector<2x16x32xf32>, vector<2x16x32xf32>, vector<2x16x16xf32> -> vector<2x16x16xf32>
    "tpu.trace_stop"() : () -> ()
    %cst_151 = arith.constant 0.353553385 : f32
    %364 = vector.broadcast %cst_151 : f32 to vector<2x16x16xf32>
    %365 = arith.mulf %363, %364 : vector<2x16x16xf32>
    %366 = vector.broadcast %57 : vector<1x1x16xf32> to vector<2x16x16xf32>
    %367 = arith.addf %365, %366 : vector<2x16x16xf32>
    %cst_152 = arith.constant dense<0xFF800000> : vector<2x16xf32>
    %368 = vector.multi_reduction <maximumf>, %367, %cst_152 [2] : vector<2x16x16xf32> to vector<2x16xf32>
    %369 = vector.shape_cast %368 : vector<2x16xf32> to vector<2x16x1xf32>
    %370 = vector.broadcast %369 : vector<2x16x1xf32> to vector<2x16x16xf32>
    %371 = arith.subf %367, %370 : vector<2x16x16xf32>
    %372 = math.exp %371 : vector<2x16x16xf32>
    %cst_153 = arith.constant dense<0.000000e+00> : vector<2x16xf32>
    %373 = vector.multi_reduction <add>, %372, %cst_153 [2] : vector<2x16x16xf32> to vector<2x16xf32>
    %374 = vector.shape_cast %373 : vector<2x16xf32> to vector<2x16x1xf32>
    %375 = tpu.reciprocal %374 {approx = true} : vector<2x16x1xf32> -> vector<2x16x1xf32>
    %376 = vector.broadcast %375 : vector<2x16x1xf32> to vector<2x16x16xf32>
    %377 = arith.mulf %372, %376 : vector<2x16x16xf32>
    %378 = vector.broadcast %51 : vector<1x1x32xf32> to vector<2x16x32xf32>
    %379 = arith.mulf %298, %378 : vector<2x16x32xf32>
    "tpu.trace_start"() <{level = 10 : i32, message = "bqk,bkd->bqd"}> : () -> ()
    %cst_154 = arith.constant dense<0.000000e+00> : vector<2x16x32xf32>
    %380 = tpu.matmul %377, %379, %cst_154 {dimension_numbers = #tpu.dot_dimension_numbers<[2], [1], [1], [2], [0, 0, 0, 1, 1, 2], [0], [0]>} : vector<2x16x16xf32>, vector<2x16x32xf32>, vector<2x16x32xf32> -> vector<2x16x32xf32>
    "tpu.trace_stop"() : () -> ()
    %381 = arith.addf %360, %380 : vector<2x16x32xf32>
    %382 = vector.shape_cast %381 : vector<2x16x32xf32> to vector<32x32xf32>
    %c1_155 = arith.constant 1 : index
    %c0_156 = arith.constant 0 : index
    %c0_157 = arith.constant 0 : index
    %383 = vector.load %arg14[%c1_155, %c0_156, %c0_157] : memref<2x32x32xf32, #tpu.memory_space<vmem>>, vector<1x32x32xf32>
    %384 = vector.shape_cast %383 : vector<1x32x32xf32> to vector<32x32xf32>
    %cst_158 = arith.constant dense<0.000000e+00> : vector<32x32xf32>
    %385 = tpu.matmul %382, %384, %cst_158 {dimension_numbers = #tpu.dot_dimension_numbers<[1], [0], [0], [1], [0, 0, 1, 1], [], []>} : vector<32x32xf32>, vector<32x32xf32>, vector<32x32xf32> -> vector<32x32xf32>
    %c1_159 = arith.constant 1 : index
    %c0_160 = arith.constant 0 : index
    %c0_161 = arith.constant 0 : index
    %386 = vector.load %arg15[%c1_159, %c0_160, %c0_161] : memref<2x1x32xf32, #tpu.memory_space<vmem>>, vector<1x1x32xf32>
    %387 = vector.shape_cast %386 : vector<1x1x32xf32> to vector<1x32xf32>
    %388 = vector.broadcast %387 : vector<1x32xf32> to vector<32x32xf32>
    %389 = arith.addf %385, %388 : vector<32x32xf32>
    %390 = arith.addf %248, %389 : vector<32x32xf32>
    %c1_162 = arith.constant 1 : index
    %c0_163 = arith.constant 0 : index
    %c0_164 = arith.constant 0 : index
    %391 = vector.load %arg16[%c1_162, %c0_163, %c0_164] : memref<2x1x32xf32, #tpu.memory_space<vmem>>, vector<1x1x32xf32>
    %392 = vector.shape_cast %391 : vector<1x1x32xf32> to vector<1x32xf32>
    %c1_165 = arith.constant 1 : index
    %c0_166 = arith.constant 0 : index
    %c0_167 = arith.constant 0 : index
    %393 = vector.load %arg17[%c1_165, %c0_166, %c0_167] : memref<2x1x32xf32, #tpu.memory_space<vmem>>, vector<1x1x32xf32>
    %394 = vector.shape_cast %393 : vector<1x1x32xf32> to vector<1x32xf32>
    %cst_168 = arith.constant dense<0.000000e+00> : vector<32xf32>
    %395 = vector.multi_reduction <add>, %390, %cst_168 [1] : vector<32x32xf32> to vector<32xf32>
    %396 = vector.shape_cast %395 : vector<32xf32> to vector<32x1xf32>
    %cst_169 = arith.constant 3.200000e+01 : f32
    %397 = vector.broadcast %cst_169 : f32 to vector<32x1xf32>
    %398 = arith.divf %396, %397 : vector<32x1xf32>
    %399 = vector.broadcast %398 : vector<32x1xf32> to vector<32x32xf32>
    %400 = arith.subf %390, %399 : vector<32x32xf32>
    %401 = arith.mulf %400, %400 : vector<32x32xf32>
    %cst_170 = arith.constant dense<0.000000e+00> : vector<32xf32>
    %402 = vector.multi_reduction <add>, %401, %cst_170 [1] : vector<32x32xf32> to vector<32xf32>
    %403 = vector.shape_cast %402 : vector<32xf32> to vector<32x1xf32>
    %cst_171 = arith.constant 3.200000e+01 : f32
    %404 = vector.broadcast %cst_171 : f32 to vector<32x1xf32>
    %405 = arith.divf %403, %404 : vector<32x1xf32>
    %406 = vector.broadcast %398 : vector<32x1xf32> to vector<32x32xf32>
    %407 = arith.subf %390, %406 : vector<32x32xf32>
    %cst_172 = arith.constant 9.99999974E-6 : f32
    %408 = vector.broadcast %cst_172 : f32 to vector<32x1xf32>
    %409 = arith.addf %405, %408 : vector<32x1xf32>
    %410 = math.rsqrt %409 : vector<32x1xf32>
    %411 = vector.broadcast %410 : vector<32x1xf32> to vector<32x32xf32>
    %412 = arith.mulf %407, %411 : vector<32x32xf32>
    %413 = vector.broadcast %392 : vector<1x32xf32> to vector<32x32xf32>
    %414 = arith.mulf %412, %413 : vector<32x32xf32>
    %415 = vector.broadcast %394 : vector<1x32xf32> to vector<32x32xf32>
    %416 = arith.addf %414, %415 : vector<32x32xf32>
    %c1_173 = arith.constant 1 : index
    %c0_174 = arith.constant 0 : index
    %c0_175 = arith.constant 0 : index
    %417 = vector.load %arg18[%c1_173, %c0_174, %c0_175] : memref<2x32x64xf32, #tpu.memory_space<vmem>>, vector<1x32x64xf32>
    %418 = vector.shape_cast %417 : vector<1x32x64xf32> to vector<32x64xf32>
    %cst_176 = arith.constant dense<0.000000e+00> : vector<32x64xf32>
    %419 = tpu.matmul %416, %418, %cst_176 {dimension_numbers = #tpu.dot_dimension_numbers<[1], [0], [0], [1], [0, 0, 1, 1], [], []>} : vector<32x32xf32>, vector<32x64xf32>, vector<32x64xf32> -> vector<32x64xf32>
    %c1_177 = arith.constant 1 : index
    %c0_178 = arith.constant 0 : index
    %c0_179 = arith.constant 0 : index
    %420 = vector.load %arg19[%c1_177, %c0_178, %c0_179] : memref<2x1x64xf32, #tpu.memory_space<vmem>>, vector<1x1x64xf32>
    %421 = vector.shape_cast %420 : vector<1x1x64xf32> to vector<1x64xf32>
    %422 = vector.broadcast %421 : vector<1x64xf32> to vector<32x64xf32>
    %423 = arith.addf %419, %422 : vector<32x64xf32>
    %cst_180 = arith.constant 5.000000e-01 : f32
    %424 = vector.broadcast %cst_180 : f32 to vector<32x64xf32>
    %425 = arith.mulf %424, %423 : vector<32x64xf32>
    %cst_181 = arith.constant 0.707106769 : f32
    %426 = vector.broadcast %cst_181 : f32 to vector<32x64xf32>
    %427 = arith.mulf %423, %426 : vector<32x64xf32>
    %428 = math.erf %427 : vector<32x64xf32>
    %cst_182 = arith.constant 1.000000e+00 : f32
    %429 = vector.broadcast %cst_182 : f32 to vector<32x64xf32>
    %430 = arith.addf %429, %428 : vector<32x64xf32>
    %431 = arith.mulf %425, %430 : vector<32x64xf32>
    %c1_183 = arith.constant 1 : index
    %c0_184 = arith.constant 0 : index
    %c0_185 = arith.constant 0 : index
    %432 = vector.load %arg20[%c1_183, %c0_184, %c0_185] : memref<2x64x32xf32, #tpu.memory_space<vmem>>, vector<1x64x32xf32>
    %433 = vector.shape_cast %432 : vector<1x64x32xf32> to vector<64x32xf32>
    %cst_186 = arith.constant dense<0.000000e+00> : vector<32x32xf32>
    %434 = tpu.matmul %431, %433, %cst_186 {dimension_numbers = #tpu.dot_dimension_numbers<[1], [0], [0], [1], [0, 0, 1, 1], [], []>} : vector<32x64xf32>, vector<64x32xf32>, vector<32x32xf32> -> vector<32x32xf32>
    %435 = arith.addf %390, %434 : vector<32x32xf32>
    %c1_187 = arith.constant 1 : index
    %c0_188 = arith.constant 0 : index
    %c0_189 = arith.constant 0 : index
    %436 = vector.load %arg21[%c1_187, %c0_188, %c0_189] : memref<2x1x32xf32, #tpu.memory_space<vmem>>, vector<1x1x32xf32>
    %437 = vector.shape_cast %436 : vector<1x1x32xf32> to vector<1x32xf32>
    %438 = vector.broadcast %437 : vector<1x32xf32> to vector<32x32xf32>
    %439 = arith.addf %435, %438 : vector<32x32xf32>
    %440 = vector.shape_cast %439 : vector<32x32xf32> to vector<2x16x32xf32>
    %441 = vector.extract_strided_slice %440 {offsets = [0, 8, 0], sizes = [2, 1, 32], strides = [1, 1, 1]} : vector<2x16x32xf32> to vector<2x1x32xf32>
    %442 = vector.shape_cast %441 : vector<2x1x32xf32> to vector<2x32xf32>
    %c0_190 = arith.constant 0 : index
    %c0_191 = arith.constant 0 : index
    %443 = vector.load %arg22[%c0_190, %c0_191] : memref<1x32xf32, #tpu.memory_space<vmem>>, vector<1x32xf32>
    %c0_192 = arith.constant 0 : index
    %c0_193 = arith.constant 0 : index
    %444 = vector.load %arg23[%c0_192, %c0_193] : memref<1x32xf32, #tpu.memory_space<vmem>>, vector<1x32xf32>
    %cst_194 = arith.constant dense<0.000000e+00> : vector<2xf32>
    %445 = vector.multi_reduction <add>, %442, %cst_194 [1] : vector<2x32xf32> to vector<2xf32>
    %446 = vector.shape_cast %445 : vector<2xf32> to vector<2x1xf32>
    %cst_195 = arith.constant 3.200000e+01 : f32
    %447 = vector.broadcast %cst_195 : f32 to vector<2x1xf32>
    %448 = arith.divf %446, %447 : vector<2x1xf32>
    %449 = vector.broadcast %448 : vector<2x1xf32> to vector<2x32xf32>
    %450 = arith.subf %442, %449 : vector<2x32xf32>
    %451 = arith.mulf %450, %450 : vector<2x32xf32>
    %cst_196 = arith.constant dense<0.000000e+00> : vector<2xf32>
    %452 = vector.multi_reduction <add>, %451, %cst_196 [1] : vector<2x32xf32> to vector<2xf32>
    %453 = vector.shape_cast %452 : vector<2xf32> to vector<2x1xf32>
    %cst_197 = arith.constant 3.200000e+01 : f32
    %454 = vector.broadcast %cst_197 : f32 to vector<2x1xf32>
    %455 = arith.divf %453, %454 : vector<2x1xf32>
    %456 = vector.broadcast %448 : vector<2x1xf32> to vector<2x32xf32>
    %457 = arith.subf %442, %456 : vector<2x32xf32>
    %cst_198 = arith.constant 9.99999974E-6 : f32
    %458 = vector.broadcast %cst_198 : f32 to vector<2x1xf32>
    %459 = arith.addf %455, %458 : vector<2x1xf32>
    %460 = math.rsqrt %459 : vector<2x1xf32>
    %461 = vector.broadcast %460 : vector<2x1xf32> to vector<2x32xf32>
    %462 = arith.mulf %457, %461 : vector<2x32xf32>
    %463 = vector.broadcast %443 : vector<1x32xf32> to vector<2x32xf32>
    %464 = arith.mulf %462, %463 : vector<2x32xf32>
    %465 = vector.broadcast %444 : vector<1x32xf32> to vector<2x32xf32>
    %466 = arith.addf %464, %465 : vector<2x32xf32>
    %c0_199 = arith.constant 0 : index
    %c0_200 = arith.constant 0 : index
    %467 = vector.load %arg24[%c0_199, %c0_200] : memref<32x128xf32, #tpu.memory_space<vmem>>, vector<32x128xf32>
    %cst_201 = arith.constant dense<0.000000e+00> : vector<2x128xf32>
    %468 = tpu.matmul %466, %467, %cst_201 {dimension_numbers = #tpu.dot_dimension_numbers<[1], [0], [0], [1], [0, 0, 1, 1], [], []>} : vector<2x32xf32>, vector<32x128xf32>, vector<2x128xf32> -> vector<2x128xf32>
    %c0_202 = arith.constant 0 : index
    %c0_203 = arith.constant 0 : index
    %469 = vector.load %arg25[%c0_202, %c0_203] : memref<1x128xf32, #tpu.memory_space<vmem>>, vector<1x128xf32>
    %470 = vector.broadcast %469 : vector<1x128xf32> to vector<2x128xf32>
    %471 = arith.addf %468, %470 : vector<2x128xf32>
    %c0_204 = arith.constant 0 : index
    %c0_205 = arith.constant 0 : index
    %472 = vector.load %arg26[%c0_204, %c0_205] : memref<2x128xf32, #tpu.memory_space<vmem>>, vector<2x128xf32>
    tpu.vector_store %arg26[%c0_204, %c0_205], %471 {strides = array<i32>} : memref<2x128xf32, #tpu.memory_space<vmem>>, vector<2x128xf32>,
    return
  }
  func.func @transform_0(%arg0: i32) -> (i32, i32, i32) {
    %c0_i32 = arith.constant 0 : i32
    %c0_i32_0 = arith.constant 0 : i32
    %c0_i32_1 = arith.constant 0 : i32
    %c0_i32_2 = arith.constant 0 : i32
    return %c0_i32, %c0_i32_0, %c0_i32_1 : i32, i32, i32
  }
  func.func @transform_1(%arg0: i32) -> (i32, i32) {
    %c0_i32 = arith.constant 0 : i32
    %c0_i32_0 = arith.constant 0 : i32
    %c0_i32_1 = arith.constant 0 : i32
    return %c0_i32, %c0_i32_0 : i32, i32
  }
  func.func @transform_2(%arg0: i32) -> (i32, i32) {
    %c0_i32 = arith.constant 0 : i32
    %c0_i32_0 = arith.constant 0 : i32
    %c0_i32_1 = arith.constant 0 : i32
    return %c0_i32, %c0_i32_0 : i32, i32
  }
  func.func @transform_3(%arg0: i32) -> (i32, i32) {
    %c0_i32 = arith.constant 0 : i32
    %c0_i32_0 = arith.constant 0 : i32
    %c0_i32_1 = arith.constant 0 : i32
    return %c0_i32, %c0_i32_0 : i32, i32
  }
  func.func @transform_4(%arg0: i32) -> (i32, i32) {
    %c0_i32 = arith.constant 0 : i32
    %c0_i32_0 = arith.constant 0 : i32
    %c0_i32_1 = arith.constant 0 : i32
    return %c0_i32, %c0_i32_0 : i32, i32
  }
  func.func @transform_5(%arg0: i32) -> (i32, i32, i32) {
    %c0_i32 = arith.constant 0 : i32
    %c0_i32_0 = arith.constant 0 : i32
    %c0_i32_1 = arith.constant 0 : i32
    %c0_i32_2 = arith.constant 0 : i32
    return %c0_i32, %c0_i32_0, %c0_i32_1 : i32, i32, i32
  }
  func.func @transform_6(%arg0: i32) -> (i32, i32, i32) {
    %c0_i32 = arith.constant 0 : i32
    %c0_i32_0 = arith.constant 0 : i32
    %c0_i32_1 = arith.constant 0 : i32
    %c0_i32_2 = arith.constant 0 : i32
    return %c0_i32, %c0_i32_0, %c0_i32_1 : i32, i32, i32
  }
  func.func @transform_7(%arg0: i32) -> (i32, i32, i32) {
    %c0_i32 = arith.constant 0 : i32
    %c0_i32_0 = arith.constant 0 : i32
    %c0_i32_1 = arith.constant 0 : i32
    %c0_i32_2 = arith.constant 0 : i32
    return %c0_i32, %c0_i32_0, %c0_i32_1 : i32, i32, i32
  }
  func.func @transform_8(%arg0: i32) -> (i32, i32, i32) {
    %c0_i32 = arith.constant 0 : i32
    %c0_i32_0 = arith.constant 0 : i32
    %c0_i32_1 = arith.constant 0 : i32
    %c0_i32_2 = arith.constant 0 : i32
    return %c0_i32, %c0_i32_0, %c0_i32_1 : i32, i32, i32
  }
  func.func @transform_9(%arg0: i32) -> (i32, i32, i32) {
    %c0_i32 = arith.constant 0 : i32
    %c0_i32_0 = arith.constant 0 : i32
    %c0_i32_1 = arith.constant 0 : i32
    %c0_i32_2 = arith.constant 0 : i32
    return %c0_i32, %c0_i32_0, %c0_i32_1 : i32, i32, i32
  }
  func.func @transform_10(%arg0: i32) -> (i32, i32, i32) {
    %c0_i32 = arith.constant 0 : i32
    %c0_i32_0 = arith.constant 0 : i32
    %c0_i32_1 = arith.constant 0 : i32
    %c0_i32_2 = arith.constant 0 : i32
    return %c0_i32, %c0_i32_0, %c0_i32_1 : i32, i32, i32
  }
  func.func @transform_11(%arg0: i32) -> (i32, i32, i32) {
    %c0_i32 = arith.constant 0 : i32
    %c0_i32_0 = arith.constant 0 : i32
    %c0_i32_1 = arith.constant 0 : i32
    %c0_i32_2 = arith.constant 0 : i32
    return %c0_i32, %c0_i32_0, %c0_i32_1 : i32, i32, i32
  }
  func.func @transform_12(%arg0: i32) -> (i32, i32, i32) {
    %c0_i32 = arith.constant 0 : i32
    %c0_i32_0 = arith.constant 0 : i32
    %c0_i32_1 = arith.constant 0 : i32
    %c0_i32_2 = arith.constant 0 : i32
    return %c0_i32, %c0_i32_0, %c0_i32_1 : i32, i32, i32
  }
  func.func @transform_13(%arg0: i32) -> (i32, i32, i32) {
    %c0_i32 = arith.constant 0 : i32
    %c0_i32_0 = arith.constant 0 : i32
    %c0_i32_1 = arith.constant 0 : i32
    %c0_i32_2 = arith.constant 0 : i32
    return %c0_i32, %c0_i32_0, %c0_i32_1 : i32, i32, i32
  }
  func.func @transform_14(%arg0: i32) -> (i32, i32, i32) {
    %c0_i32 = arith.constant 0 : i32
    %c0_i32_0 = arith.constant 0 : i32
    %c0_i32_1 = arith.constant 0 : i32
    %c0_i32_2 = arith.constant 0 : i32
    return %c0_i32, %c0_i32_0, %c0_i32_1 : i32, i32, i32
  }
  func.func @transform_15(%arg0: i32) -> (i32, i32, i32) {
    %c0_i32 = arith.constant 0 : i32
    %c0_i32_0 = arith.constant 0 : i32
    %c0_i32_1 = arith.constant 0 : i32
    %c0_i32_2 = arith.constant 0 : i32
    return %c0_i32, %c0_i32_0, %c0_i32_1 : i32, i32, i32
  }
  func.func @transform_16(%arg0: i32) -> (i32, i32, i32) {
    %c0_i32 = arith.constant 0 : i32
    %c0_i32_0 = arith.constant 0 : i32
    %c0_i32_1 = arith.constant 0 : i32
    %c0_i32_2 = arith.constant 0 : i32
    return %c0_i32, %c0_i32_0, %c0_i32_1 : i32, i32, i32
  }
  func.func @transform_17(%arg0: i32) -> (i32, i32, i32) {
    %c0_i32 = arith.constant 0 : i32
    %c0_i32_0 = arith.constant 0 : i32
    %c0_i32_1 = arith.constant 0 : i32
    %c0_i32_2 = arith.constant 0 : i32
    return %c0_i32, %c0_i32_0, %c0_i32_1 : i32, i32, i32
  }
  func.func @transform_18(%arg0: i32) -> (i32, i32, i32) {
    %c0_i32 = arith.constant 0 : i32
    %c0_i32_0 = arith.constant 0 : i32
    %c0_i32_1 = arith.constant 0 : i32
    %c0_i32_2 = arith.constant 0 : i32
    return %c0_i32, %c0_i32_0, %c0_i32_1 : i32, i32, i32
  }
  func.func @transform_19(%arg0: i32) -> (i32, i32, i32) {
    %c0_i32 = arith.constant 0 : i32
    %c0_i32_0 = arith.constant 0 : i32
    %c0_i32_1 = arith.constant 0 : i32
    %c0_i32_2 = arith.constant 0 : i32
    return %c0_i32, %c0_i32_0, %c0_i32_1 : i32, i32, i32
  }
  func.func @transform_20(%arg0: i32) -> (i32, i32, i32) {
    %c0_i32 = arith.constant 0 : i32
    %c0_i32_0 = arith.constant 0 : i32
    %c0_i32_1 = arith.constant 0 : i32
    %c0_i32_2 = arith.constant 0 : i32
    return %c0_i32, %c0_i32_0, %c0_i32_1 : i32, i32, i32
  }
  func.func @transform_21(%arg0: i32) -> (i32, i32) {
    %c0_i32 = arith.constant 0 : i32
    %c0_i32_0 = arith.constant 0 : i32
    %c0_i32_1 = arith.constant 0 : i32
    return %c0_i32, %c0_i32_0 : i32, i32
  }
  func.func @transform_22(%arg0: i32) -> (i32, i32) {
    %c0_i32 = arith.constant 0 : i32
    %c0_i32_0 = arith.constant 0 : i32
    %c0_i32_1 = arith.constant 0 : i32
    return %c0_i32, %c0_i32_0 : i32, i32
  }
  func.func @transform_23(%arg0: i32) -> (i32, i32) {
    %c0_i32 = arith.constant 0 : i32
    %c0_i32_0 = arith.constant 0 : i32
    %c0_i32_1 = arith.constant 0 : i32
    return %c0_i32, %c0_i32_0 : i32, i32
  }
  func.func @transform_24(%arg0: i32) -> (i32, i32) {
    %c0_i32 = arith.constant 0 : i32
    %c0_i32_0 = arith.constant 0 : i32
    %c0_i32_1 = arith.constant 0 : i32
    return %c0_i32, %c0_i32_0 : i32, i32
  }
  func.func @transform_25(%arg0: i32) -> (i32, i32) {
    %c0_i32 = arith.constant 0 : i32
    %c0_i32_0 = arith.constant 0 : i32
    %c0_i32_1 = arith.constant 0 : i32
    return %c0_i32, %c0_i32_0 : i32, i32
  }
}

</mosaic_0001>

<llo_original>
// kernel: vit_forward.1
$region0: #{vit_forward.1}
  #allocation0 [shape = 'u32[]', space=smem, size = 0x4, offset = 0x4, fixed_abs, tag = 'smem constant byte address 0x4 - core index']
  #allocation1 [shape = 'u32[144,128]{1,0:T(1,128)}', space=vmem, size = 0x12000, scoped, tag = 'internal scratch']
  %s0 = inlined_call_operand.vmem [shape: f32[2,8,196], index: 0, kind: input, shape index: {}]
  %s1 = inlined_call_operand.vmem [shape: f32[196,32], index: 1, kind: input, shape index: {}]
  %s2 = inlined_call_operand.vmem [shape: f32[1,32], index: 2, kind: input, shape index: {}]
  %s3 = inlined_call_operand.vmem [shape: f32[1,32], index: 3, kind: input, shape index: {}]
  %s4 = inlined_call_operand.vmem [shape: f32[16,32], index: 4, kind: input, shape index: {}]
  %s5 = inlined_call_operand.vmem [shape: f32[2,1,32], index: 5, kind: input, shape index: {}]
  %s6 = inlined_call_operand.vmem [shape: f32[2,1,32], index: 6, kind: input, shape index: {}]
  %s7 = inlined_call_operand.vmem [shape: f32[2,32,32], index: 7, kind: input, shape index: {}]
  %s8 = inlined_call_operand.vmem [shape: f32[2,1,32], index: 8, kind: input, shape index: {}]
  %s9 = inlined_call_operand.vmem [shape: f32[2,32,32], index: 9, kind: input, shape index: {}]
  %s10 = inlined_call_operand.vmem [shape: f32[2,1,32], index: 10, kind: input, shape index: {}]
  %s11 = inlined_call_operand.vmem [shape: f32[2,32,32], index: 11, kind: input, shape index: {}]
  %s12 = inlined_call_operand.vmem [shape: f32[2,1,32], index: 12, kind: input, shape index: {}]
  %s13 = inlined_call_operand.vmem [shape: f32[2,32,32], index: 13, kind: input, shape index: {}]
  %s14 = inlined_call_operand.vmem [shape: f32[2,1,32], index: 14, kind: input, shape index: {}]
  %s15 = inlined_call_operand.vmem [shape: f32[2,1,32], index: 15, kind: input, shape index: {}]
  %s16 = inlined_call_operand.vmem [shape: f32[2,1,32], index: 16, kind: input, shape index: {}]
  %s17 = inlined_call_operand.vmem [shape: f32[2,32,64], index: 17, kind: input, shape index: {}]
  %s18 = inlined_call_operand.vmem [shape: f32[2,1,64], index: 18, kind: input, shape index: {}]
  %s19 = inlined_call_operand.vmem [shape: f32[2,64,32], index: 19, kind: input, shape index: {}]
  %s20 = inlined_call_operand.vmem [shape: f32[2,1,32], index: 20, kind: input, shape index: {}]
  %s21 = inlined_call_operand.vmem [shape: f32[1,32], index: 21, kind: input, shape index: {}]
  %s22 = inlined_call_operand.vmem [shape: f32[1,32], index: 22, kind: input, shape index: {}]
  %s23 = inlined_call_operand.vmem [shape: f32[32,128], index: 23, kind: input, shape index: {}]
  %s24 = inlined_call_operand.vmem [shape: f32[1,128], index: 24, kind: input, shape index: {}]
  %s25 = inlined_call_operand.hbm [shape: f32[2,128], index: 25, kind: output, shape index: {}]
  %s26 = sld [smem:[#allocation0]]
  $region110: #{vit_forward.1} parent=0
    _
  %s28 = ssub.s32 1, %s26
  %s29 = scalar_select 0, %s28, %s26
  $region1: #{vit_forward.1} parent=0
    #allocation2 [shape = 'u8[1024]{0}', space=vmem, size = 0x400, scoped, tag = 'output window, operand 0, single buffered']
    #allocation3 [shape = 's32[1]{0}', space=sflag, size = 0x4, scoped, tag = 'scoped memory for vit_forward.1']
    %30 = vsyncpa [#allocation3], 0
    // Predicated region
    $region2: #{vit_forward.1} parent=1 // pred_check
      _
    $region3: #{vit_forward.1} parent=1 // pred_check_branch
      %32 = sbr.rel (0) target = $region5
    $region4: #{vit_forward.1} parent=1 // pred_region
      _
    $region5: #{vit_forward.1} parent=1 // pred_fallthru
      _
    // Predicated region
    $region6: #{vit_forward.1} parent=1 // pred_check
      _
    $region7: #{vit_forward.1} parent=1 // pred_check_branch
      %34 = sbr.rel (0) target = $region9
    $region8: #{vit_forward.1} parent=1 // pred_region
      _
    $region9: #{vit_forward.1} parent=1 // pred_fallthru
      _
    // Predicated region
    $region10: #{vit_forward.1} parent=1 // pred_check
      _
    $region11: #{vit_forward.1} parent=1 // pred_check_branch
      %36 = sbr.rel (0) target = $region13
    $region12: #{vit_forward.1} parent=1 // pred_region
      _
    $region13: #{vit_forward.1} parent=1 // pred_fallthru
      _
    // Predicated region
    $region14: #{vit_forward.1} parent=1 // pred_check
      _
    $region15: #{vit_forward.1} parent=1 // pred_check_branch
      %38 = sbr.rel (0) target = $region17
    $region16: #{vit_forward.1} parent=1 // pred_region
      _
    $region17: #{vit_forward.1} parent=1 // pred_fallthru
      _
    // Predicated region
    $region18: #{vit_forward.1} parent=1 // pred_check
      _
    $region19: #{vit_forward.1} parent=1 // pred_check_branch
      %40 = sbr.rel (0) target = $region21
    $region20: #{vit_forward.1} parent=1 // pred_region
      _
    $region21: #{vit_forward.1} parent=1 // pred_fallthru
      _
    // Predicated region
    $region22: #{vit_forward.1} parent=1 // pred_check
      _
    $region23: #{vit_forward.1} parent=1 // pred_check_branch
      %42 = sbr.rel (0) target = $region25
    $region24: #{vit_forward.1} parent=1 // pred_region
      _
    $region25: #{vit_forward.1} parent=1 // pred_fallthru
      _
    // Predicated region
    $region26: #{vit_forward.1} parent=1 // pred_check
      _
    $region27: #{vit_forward.1} parent=1 // pred_check_branch
      %44 = sbr.rel (0) target = $region29
    $region28: #{vit_forward.1} parent=1 // pred_region
      _
    $region29: #{vit_forward.1} parent=1 // pred_fallthru
      _
    // Predicated region
    $region30: #{vit_forward.1} parent=1 // pred_check
      _
    $region31: #{vit_forward.1} parent=1 // pred_check_branch
      %46 = sbr.rel (0) target = $region33
    $region32: #{vit_forward.1} parent=1 // pred_region
      _
    $region33: #{vit_forward.1} parent=1 // pred_fallthru
      _
    // Predicated region
    $region34: #{vit_forward.1} parent=1 // pred_check
      _
    $region35: #{vit_forward.1} parent=1 // pred_check_branch
      %48 = sbr.rel (0) target = $region37
    $region36: #{vit_forward.1} parent=1 // pred_region
      _
    $region37: #{vit_forward.1} parent=1 // pred_fallthru
      _
    // Predicated region
    $region38: #{vit_forward.1} parent=1 // pred_check
      _
    $region39: #{vit_forward.1} parent=1 // pred_check_branch
      %50 = sbr.rel (0) target = $region41
    $region40: #{vit_forward.1} parent=1 // pred_region
      _
    $region41: #{vit_forward.1} parent=1 // pred_fallthru
      _
    // Predicated region
    $region42: #{vit_forward.1} parent=1 // pred_check
      _
    $region43: #{vit_forward.1} parent=1 // pred_check_branch
      %52 = sbr.rel (0) target = $region45
    $region44: #{vit_forward.1} parent=1 // pred_region
      _
    $region45: #{vit_forward.1} parent=1 // pred_fallthru
      _
    // Predicated region
    $region46: #{vit_forward.1} parent=1 // pred_check
      _
    $region47: #{vit_forward.1} parent=1 // pred_check_branch
      %54 = sbr.rel (0) target = $region49
    $region48: #{vit_forward.1} parent=1 // pred_region
      _
    $region49: #{vit_forward.1} parent=1 // pred_fallthru
      _
    // Predicated region
    $region50: #{vit_forward.1} parent=1 // pred_check
      _
    $region51: #{vit_forward.1} parent=1 // pred_check_branch
      %56 = sbr.rel (0) target = $region53
    $region52: #{vit_forward.1} parent=1 // pred_region
      _
    $region53: #{vit_forward.1} parent=1 // pred_fallthru
      _
    // Predicated region
    $region54: #{vit_forward.1} parent=1 // pred_check
      _
    $region55: #{vit_forward.1} parent=1 // pred_check_branch
      %58 = sbr.rel (0) target = $region57
    $region56: #{vit_forward.1} parent=1 // pred_region
      _
    $region57: #{vit_forward.1} parent=1 // pred_fallthru
      _
    // Predicated region
    $region58: #{vit_forward.1} parent=1 // pred_check
      _
    $region59: #{vit_forward.1} parent=1 // pred_check_branch
      %60 = sbr.rel (0) target = $region61
    $region60: #{vit_forward.1} parent=1 // pred_region
      _
    $region61: #{vit_forward.1} parent=1 // pred_fallthru
      _
    // Predicated region
    $region62: #{vit_forward.1} parent=1 // pred_check
      _
    $region63: #{vit_forward.1} parent=1 // pred_check_branch
      %62 = sbr.rel (0) target = $region65
    $region64: #{vit_forward.1} parent=1 // pred_region
      _
    $region65: #{vit_forward.1} parent=1 // pred_fallthru
      _
    // Predicated region
    $region66: #{vit_forward.1} parent=1 // pred_check
      _
    $region67: #{vit_forward.1} parent=1 // pred_check_branch
      %64 = sbr.rel (0) target = $region69
    $region68: #{vit_forward.1} parent=1 // pred_region
      _
    $region69: #{vit_forward.1} parent=1 // pred_fallthru
      _
    // Predicated region
    $region70: #{vit_forward.1} parent=1 // pred_check
      _
    $region71: #{vit_forward.1} parent=1 // pred_check_branch
      %66 = sbr.rel (0) target = $region73
    $region72: #{vit_forward.1} parent=1 // pred_region
      _
    $region73: #{vit_forward.1} parent=1 // pred_fallthru
      _
    // Predicated region
    $region74: #{vit_forward.1} parent=1 // pred_check
      _
    $region75: #{vit_forward.1} parent=1 // pred_check_branch
      %68 = sbr.rel (0) target = $region77
    $region76: #{vit_forward.1} parent=1 // pred_region
      _
    $region77: #{vit_forward.1} parent=1 // pred_fallthru
      _
    // Predicated region
    $region78: #{vit_forward.1} parent=1 // pred_check
      _
    $region79: #{vit_forward.1} parent=1 // pred_check_branch
      %70 = sbr.rel (0) target = $region81
    $region80: #{vit_forward.1} parent=1 // pred_region
      _
    $region81: #{vit_forward.1} parent=1 // pred_fallthru
      _
    // Predicated region
    $region82: #{vit_forward.1} parent=1 // pred_check
      _
    $region83: #{vit_forward.1} parent=1 // pred_check_branch
      %72 = sbr.rel (0) target = $region85
    $region84: #{vit_forward.1} parent=1 // pred_region
      _
    $region85: #{vit_forward.1} parent=1 // pred_fallthru
      _
    // Predicated region
    $region86: #{vit_forward.1} parent=1 // pred_check
      _
    $region87: #{vit_forward.1} parent=1 // pred_check_branch
      %74 = sbr.rel (0) target = $region89
    $region88: #{vit_forward.1} parent=1 // pred_region
      _
    $region89: #{vit_forward.1} parent=1 // pred_fallthru
      _
    // Predicated region
    $region90: #{vit_forward.1} parent=1 // pred_check
      _
    $region91: #{vit_forward.1} parent=1 // pred_check_branch
      %76 = sbr.rel (0) target = $region93
    $region92: #{vit_forward.1} parent=1 // pred_region
      _
    $region93: #{vit_forward.1} parent=1 // pred_fallthru
      _
    // Predicated region
    $region94: #{vit_forward.1} parent=1 // pred_check
      _
    $region95: #{vit_forward.1} parent=1 // pred_check_branch
      %78 = sbr.rel (0) target = $region97
    $region96: #{vit_forward.1} parent=1 // pred_region
      _
    $region97: #{vit_forward.1} parent=1 // pred_fallthru
      _
    // Predicated region
    $region98: #{vit_forward.1} parent=1 // pred_check
      _
    $region99: #{vit_forward.1} parent=1 // pred_check_branch
      %80 = sbr.rel (0) target = $region101
    $region100: #{vit_forward.1} parent=1 // pred_region
      _
    $region101: #{vit_forward.1} parent=1 // pred_fallthru
      _
    %v81 = vld [vmem:[%s0] sm:$0xff]
    %v82 = vld [vmem:[%s0 + $0x8] sm:$0xff]
    %v83 = vld [vmem:[%s0 + $0x10] sm:$0xff]
    %v84 = vld [vmem:[%s0 + $0x18] sm:$0xff]
    %v85 = vld [vmem:[%s1] sm:$0xff]
    %v86 = vld [vmem:[%s1 + $0x8] sm:$0xff]
    %v87 = vld [vmem:[%s1 + $0x10] sm:$0xff]
    %v88 = vld [vmem:[%s1 + $0x18] sm:$0xff]
    %v89 = vld [vmem:[%s1 + $0x20] sm:$0xff]
    %v90 = vld [vmem:[%s1 + $0x28] sm:$0xff]
    %v91 = vld [vmem:[%s1 + $0x30] sm:$0xff]
    %v92 = vld [vmem:[%s1 + $0x38] sm:$0xff]
    %v93 = vld [vmem:[%s1 + $0x40] sm:$0xff]
    %v94 = vld [vmem:[%s1 + $0x48] sm:$0xff]
    %v95 = vld [vmem:[%s1 + $0x50] sm:$0xff]
    %v96 = vld [vmem:[%s1 + $0x58] sm:$0xff]
    %v97 = vld [vmem:[%s1 + $0x60] sm:$0xff]
    %v98 = vld [vmem:[%s1 + $0x68] sm:$0xff]
    %v99 = vld [vmem:[%s1 + $0x70] sm:$0xff]
    %v100 = vld [vmem:[%s1 + $0x78] sm:$0xff]
    %v101 = vld [vmem:[%s1 + $0x80] sm:$0xff]
    %v102 = vld [vmem:[%s1 + $0x88] sm:$0xff]
    %v103 = vld [vmem:[%s1 + $0x90] sm:$0xff]
    %v104 = vld [vmem:[%s1 + $0x98] sm:$0xff]
    %v105 = vld [vmem:[%s1 + $0xa0] sm:$0xff]
    %v106 = vld [vmem:[%s1 + $0xa8] sm:$0xff]
    %v107 = vld [vmem:[%s1 + $0xb0] sm:$0xff]
    %v108 = vld [vmem:[%s1 + $0xb8] sm:$0xff]
    %v109 = vld [vmem:[%s1 + $0xc0] sm:$0xf]
    %v110 = vld [vmem:[%s2] sm:$0x1]
    %v112 = vlaneseq
    %v113 = vshrl.u32 %v112, 7
    %v114 = vsub.s32 0, %v113
    %v115 = vrot.slane %v110, %v114
    %vm117 = vcmask 556032
    %v119 = vsel %vm117, %v82, 0
    %v122 = vsel %vm117, %v84, 0
    %vm124 = vcmask 1043456
    %v126 = vsel %vm124, %v109, 0
    %128 = vmatprep.subr.mxu0 0.0
    %129 = vmatpush1.msra.mxu0 %v85
    %130 = vmatprep.subr.mxu0 0.0
    %131 = vmatpush1.msra.mxu0 %v86
    %132 = vmatprep.subr.mxu0 0.0
    %133 = vmatpush1.msra.mxu0 %v87
    %134 = vmatprep.subr.mxu0 0.0
    %135 = vmatpush1.msra.mxu0 %v88
    %136 = vmatprep.subr.mxu0 0.0
    %137 = vmatpush1.msra.mxu0 %v89
    %138 = vmatprep.subr.mxu0 0.0
    %139 = vmatpush1.msra.mxu0 %v90
    %140 = vmatprep.subr.mxu0 0.0
    %141 = vmatpush1.msra.mxu0 %v91
    %142 = vmatprep.subr.mxu0 0.0
    %143 = vmatpush1.msra.mxu0 %v92
    %144 = vmatprep.subr.mxu0 0.0
    %145 = vmatpush1.msra.mxu0 %v93
    %146 = vmatprep.subr.mxu0 0.0
    %147 = vmatpush1.msra.mxu0 %v94
    %148 = vmatprep.subr.mxu0 0.0
    %149 = vmatpush1.msra.mxu0 %v95
    %150 = vmatprep.subr.mxu0 0.0
    %151 = vmatpush1.msra.mxu0 %v96
    %152 = vmatprep.subr.mxu0 0.0
    %153 = vmatpush1.msra.mxu0 %v97
    %154 = vmatprep.subr.mxu0 0.0
    %155 = vmatpush1.msra.mxu0 %v98
    %156 = vmatprep.subr.mxu0 0.0
    %157 = vmatpush1.msra.mxu0 %v99
    %158 = vmatprep.subr.mxu0 0.0
    %159 = vmatpush1.msra.mxu0 %v100
    %160 = vmatprep.subr.mxu0 0.0
    %161 = vmatpush1.msra.mxu0 %v101
    %162 = vmatprep.subr.mxu0 0.0
    %163 = vmatpush1.msra.mxu0 %v102
    %164 = vmatprep.subr.mxu0 0.0
    %165 = vmatpush1.msra.mxu0 %v103
    %166 = vmatprep.subr.mxu0 0.0
    %167 = vmatpush1.msra.mxu0 %v104
    %168 = vmatprep.subr.mxu0 0.0
    %169 = vmatpush1.msra.mxu0 %v105
    %170 = vmatprep.subr.mxu0 0.0
    %171 = vmatpush1.msra.mxu0 %v106
    %172 = vmatprep.subr.mxu0 0.0
    %173 = vmatpush1.msra.mxu0 %v107
    %174 = vmatprep.subr.mxu0 0.0
    %175 = vmatpush1.msra.mxu0 %v108
    %176 = vmatprep.subr.mxu0 0.0
    %177 = vmatpush1.msra.mxu0 %v126
    %178 = vmatprep.subr.mxu0 0.0
    %179 = vmatpush1.msra.mxu0 0.0
    %180 = vmatprep.subr.mxu0 0.0
    %181 = vmatpush1.msra.mxu0 0.0
    %182 = vmatprep.subr.mxu0 0.0
    %183 = vmatpush1.msra.mxu0 0.0
    %184 = vmatprep.subr.mxu0 0.0
    %185 = vmatpush1.msra.mxu0 0.0
    %186 = vmatprep.subr.mxu0 0.0
    %187 = vmatpush1.msra.mxu0 0.0
    %188 = vmatprep.subr.mxu0 0.0
    %189 = vmatpush1.msra.mxu0 0.0
    %190 = vmatprep.subr.mxu0 0.0
    %191 = vmatpush1.msra.mxu0 0.0
    %192 = vmatprep.mubr.f32.mxu0 %v119
    %193 = vmatmul.mubr.f32.gmra.mrb[0].mxu0 %v81
    %v194 = vpop.f32.mrb[0].mxu0
    %v195 = vadd.f32 %v115, %v194
    %v196 = vpop.f32.mrb[0].mxu0
    %197 = vmatprep.mubr.f32.mxu0 %v122
    %198 = vmatmul.mubr.f32.gmra.mrb[0].mxu0 %v83
    %v199 = vpop.f32.mrb[0].mxu0
    %v200 = vadd.f32 %v115, %v199
    %v201 = vpop.f32.mrb[0].mxu0
    %202 = vdwg.mxu0
    %v203 = vlaneseq
    %v204 = vshrl.u32 %v203, 7
    %v205 = vld [vmem:[%s3] sm:$0x1]
    %v207 = vlaneseq
    %v208 = vshrl.u32 %v207, 7
    %v209 = vsub.s32 0, %v208
    %v210 = vrot.slane %v205, %v209
    %vm212 = vcmp.eq.s32.totalorder %v204, 0
    %v213 = vsel %vm212, %v210, 0.0
    %v214 = vld [vmem:[%s4] sm:$0xff]
    %v215 = vld [vmem:[%s4 + $0x8] sm:$0xff]
    %v216 = vadd.f32 %v195, %v214
    %v217 = vadd.f32 %v213, %v215
    %v218 = vadd.f32 %v200, %v214
    %v219 = vlaneseq
    %v220 = vand.u32 %v219, 127
    %vm221 = vcmp.ge.s32.totalorder %v220, 0
    %vm222 = vcmp.lt.s32.totalorder %v220, 8
    %vm223 = vmand %vm221, %vm222
    %v224 = vsel %vm223, 1, 0
    %v225 = vcvt.s32.f32 %v224
    %vm226 = vcmp.ge.s32.totalorder %v220, 8
    %vm227 = vcmp.lt.s32.totalorder %v220, 16
    %vm228 = vmand %vm226, %vm227
    %v229 = vsel %vm228, 1, 0
    %v230 = vcvt.s32.f32 %v229
    %vm231 = vcmp.ge.s32.totalorder %v220, 16
    %vm232 = vcmp.lt.s32.totalorder %v220, 24
    %vm233 = vmand %vm231, %vm232
    %v234 = vsel %vm233, 1, 0
    %v235 = vcvt.s32.f32 %v234
    %vm236 = vcmp.ge.s32.totalorder %v220, 24
    %vm237 = vcmp.lt.s32.totalorder %v220, 32
    %vm238 = vmand %vm236, %vm237
    %v239 = vsel %vm238, 1, 0
    %v240 = vcvt.s32.f32 %v239
    %vm241 = vcmp.lt.s32.totalorder %v220, 9
    %v242 = vsel %vm241, 0.0, -1e+30
    %v243 = vld [vmem:[%s5] sm:$0x1]
    %v244 = vld [vmem:[%s6] sm:$0x1]
    %vm245 = vcmask 261120
    %v246 = vsel %vm245, %v216, 0.0
    %247 = vadd.xlane.f32.xlu0 %v246
    %v248 = vpop.xlane.xlu0 %247
    %v249 = vsel %vm245, %v217, 0.0
    %250 = vadd.xlane.f32.xlu0 %v249
    %v251 = vpop.xlane.xlu0 %250
    %v252 = vsel %vm245, %v218, 0.0
    %253 = vadd.xlane.f32.xlu0 %v252
    %v254 = vpop.xlane.xlu0 %253
    %v255 = vrcp.pop 32.0
    %v256 = vmul.f32 %v248, %v255
    %v257 = vmul.f32 %v251, %v255
    %v258 = vmul.f32 %v254, %v255
    %v259 = vsub.f32 %v216, %v256
    %v260 = vsub.f32 %v217, %v257
    %v261 = vsub.f32 %v218, %v258
    %v262 = vmul.f32 %v259, %v259
    %v263 = vmul.f32 %v260, %v260
    %v264 = vmul.f32 %v261, %v261
    %v265 = vsel %vm245, %v262, 0.0
    %266 = vadd.xlane.f32.xlu0 %v265
    %v267 = vpop.xlane.xlu0 %266
    %v268 = vsel %vm245, %v263, 0.0
    %269 = vadd.xlane.f32.xlu0 %v268
    %v270 = vpop.xlane.xlu0 %269
    %v271 = vsel %vm245, %v264, 0.0
    %272 = vadd.xlane.f32.xlu0 %v271
    %v273 = vpop.xlane.xlu0 %272
    %v274 = vmul.f32 %v267, %v255
    %v275 = vmul.f32 %v270, %v255
    %v276 = vmul.f32 %v273, %v255
    %v277 = vadd.f32 %v274, 1e-05
    %v278 = vadd.f32 %v275, 1e-05
    %v279 = vadd.f32 %v276, 1e-05
    %v280 = vrsqrt.pop %v277
    %v281 = vrsqrt.pop %v278
    %v282 = vrsqrt.pop %v279
    %v283 = vmul.f32 %v259, %v280
    %v284 = vmul.f32 %v260, %v281
    %v285 = vmul.f32 %v261, %v282
    %v287 = vlaneseq
    %v288 = vshrl.u32 %v287, 7
    %v289 = vsub.s32 0, %v288
    %v290 = vrot.slane %v243, %v289
    %v292 = vmul.f32 %v283, %v290
    %v293 = vmul.f32 %v284, %v290
    %v294 = vmul.f32 %v285, %v290
    %v296 = vlaneseq
    %v297 = vshrl.u32 %v296, 7
    %v298 = vsub.s32 0, %v297
    %v299 = vrot.slane %v244, %v298
    %v301 = vadd.f32 %v292, %v299
    %v302 = vadd.f32 %v293, %v299
    %v303 = vadd.f32 %v294, %v299
    %v304 = vld [vmem:[%s7] sm:$0xff]
    %v305 = vld [vmem:[%s7 + $0x8] sm:$0xff]
    %v306 = vld [vmem:[%s7 + $0x10] sm:$0xff]
    %v307 = vld [vmem:[%s7 + $0x18] sm:$0xff]
    %v308 = vld [vmem:[%s8] sm:$0x1]
    %v310 = vlaneseq
    %v311 = vshrl.u32 %v310, 7
    %v312 = vsub.s32 0, %v311
    %v313 = vrot.slane %v308, %v312
    %v316 = vsel %vm245, %v301, 0
    %v319 = vsel %vm245, %v302, 0
    %v322 = vsel %vm245, %v303, 0
    %324 = vmatprep.subr.mxu0 0.0
    %325 = vmatpush1.msra.mxu0 %v304
    %326 = vmatprep.subr.mxu0 0.0
    %327 = vmatpush1.msra.mxu0 %v305
    %328 = vmatprep.subr.mxu0 0.0
    %329 = vmatpush1.msra.mxu0 %v306
    %330 = vmatprep.subr.mxu0 0.0
    %331 = vmatpush1.msra.mxu0 %v307
    %332 = vmatprep.subr.mxu0 0.0
    %333 = vmatpush1.msra.mxu0 0.0
    %334 = vmatprep.subr.mxu0 0.0
    %335 = vmatpush1.msra.mxu0 0.0
    %336 = vmatprep.subr.mxu0 0.0
    %337 = vmatpush1.msra.mxu0 0.0
    %338 = vmatprep.subr.mxu0 0.0
    %339 = vmatpush1.msra.mxu0 0.0
    %340 = vmatprep.subr.mxu0 0.0
    %341 = vmatpush1.msra.mxu0 0.0
    %342 = vmatprep.subr.mxu0 0.0
    %343 = vmatpush1.msra.mxu0 0.0
    %344 = vmatprep.subr.mxu0 0.0
    %345 = vmatpush1.msra.mxu0 0.0
    %346 = vmatprep.subr.mxu0 0.0
    %347 = vmatpush1.msra.mxu0 0.0
    %348 = vmatprep.subr.mxu0 0.0
    %349 = vmatpush1.msra.mxu0 0.0
    %350 = vmatprep.subr.mxu0 0.0
    %351 = vmatpush1.msra.mxu0 0.0
    %352 = vmatprep.subr.mxu0 0.0
    %353 = vmatpush1.msra.mxu0 0.0
    %354 = vmatprep.subr.mxu0 0.0
    %355 = vmatpush1.msra.mxu0 0.0
    %356 = vmatprep.subr.mxu0 0.0
    %357 = vmatpush1.msra.mxu0 0.0
    %358 = vmatprep.subr.mxu0 0.0
    %359 = vmatpush1.msra.mxu0 0.0
    %360 = vmatprep.subr.mxu0 0.0
    %361 = vmatpush1.msra.mxu0 0.0
    %362 = vmatprep.subr.mxu0 0.0
    %363 = vmatpush1.msra.mxu0 0.0
    %364 = vmatprep.subr.mxu0 0.0
    %365 = vmatpush1.msra.mxu0 0.0
    %366 = vmatprep.subr.mxu0 0.0
    %367 = vmatpush1.msra.mxu0 0.0
    %368 = vmatprep.subr.mxu0 0.0
    %369 = vmatpush1.msra.mxu0 0.0
    %370 = vmatprep.subr.mxu0 0.0
    %371 = vmatpush1.msra.mxu0 0.0
    %372 = vmatprep.subr.mxu0 0.0
    %373 = vmatpush1.msra.mxu0 0.0
    %374 = vmatprep.subr.mxu0 0.0
    %375 = vmatpush1.msra.mxu0 0.0
    %376 = vmatprep.subr.mxu0 0.0
    %377 = vmatpush1.msra.mxu0 0.0
    %378 = vmatprep.subr.mxu0 0.0
    %379 = vmatpush1.msra.mxu0 0.0
    %380 = vmatprep.subr.mxu0 0.0
    %381 = vmatpush1.msra.mxu0 0.0
    %382 = vmatprep.subr.mxu0 0.0
    %383 = vmatpush1.msra.mxu0 0.0
    %384 = vmatprep.subr.mxu0 0.0
    %385 = vmatpush1.msra.mxu0 0.0
    %386 = vmatprep.subr.mxu0 0.0
    %387 = vmatpush1.msra.mxu0 0.0
    %388 = vmatprep.mubr.f32.mxu0 0.0
    %389 = vmatmul.mubr.f32.gmra.mrb[0].mxu0 %v316
    %v390 = vpop.f32.mrb[0].mxu0
    %v391 = vadd.f32 %v313, %v390
    %v392 = vpop.f32.mrb[0].mxu0
    %393 = vmatprep.mubr.f32.mxu0 0.0
    %394 = vmatmul.mubr.f32.gmra.mrb[0].mxu0 %v319
    %v395 = vpop.f32.mrb[0].mxu0
    %v396 = vadd.f32 %v313, %v395
    %v397 = vpop.f32.mrb[0].mxu0
    %398 = vmatprep.mubr.f32.mxu0 0.0
    %399 = vmatmul.mubr.f32.gmra.mrb[0].mxu0 %v322
    %v400 = vpop.f32.mrb[0].mxu0
    %v401 = vadd.f32 %v313, %v400
    %v402 = vpop.f32.mrb[0].mxu0
    %403 = vmatprep.mubr.f32.mxu0 0.0
    %404 = vmatmul.mubr.f32.gmra.mrb[0].mxu0 %v319
    %v405 = vpop.f32.mrb[0].mxu0
    %v406 = vadd.f32 %v313, %v405
    %v407 = vpop.f32.mrb[0].mxu0
    %408 = vdwg.mxu0
    %v409 = vld [vmem:[%s9] sm:$0xff]
    %v410 = vld [vmem:[%s9 + $0x8] sm:$0xff]
    %v411 = vld [vmem:[%s9 + $0x10] sm:$0xff]
    %v412 = vld [vmem:[%s9 + $0x18] sm:$0xff]
    %v413 = vld [vmem:[%s10] sm:$0x1]
    %v415 = vlaneseq
    %v416 = vshrl.u32 %v415, 7
    %v417 = vsub.s32 0, %v416
    %v418 = vrot.slane %v413, %v417
    %420 = vmatprep.subr.mxu0 0.0
    %421 = vmatpush1.msra.mxu0 %v409
    %422 = vmatprep.subr.mxu0 0.0
    %423 = vmatpush1.msra.mxu0 %v410
    %424 = vmatprep.subr.mxu0 0.0
    %425 = vmatpush1.msra.mxu0 %v411
    %426 = vmatprep.subr.mxu0 0.0
    %427 = vmatpush1.msra.mxu0 %v412
    %428 = vmatprep.subr.mxu0 0.0
    %429 = vmatpush1.msra.mxu0 0.0
    %430 = vmatprep.subr.mxu0 0.0
    %431 = vmatpush1.msra.mxu0 0.0
    %432 = vmatprep.subr.mxu0 0.0
    %433 = vmatpush1.msra.mxu0 0.0
    %434 = vmatprep.subr.mxu0 0.0
    %435 = vmatpush1.msra.mxu0 0.0
    %436 = vmatprep.subr.mxu0 0.0
    %437 = vmatpush1.msra.mxu0 0.0
    %438 = vmatprep.subr.mxu0 0.0
    %439 = vmatpush1.msra.mxu0 0.0
    %440 = vmatprep.subr.mxu0 0.0
    %441 = vmatpush1.msra.mxu0 0.0
    %442 = vmatprep.subr.mxu0 0.0
    %443 = vmatpush1.msra.mxu0 0.0
    %444 = vmatprep.subr.mxu0 0.0
    %445 = vmatpush1.msra.mxu0 0.0
    %446 = vmatprep.subr.mxu0 0.0
    %447 = vmatpush1.msra.mxu0 0.0
    %448 = vmatprep.subr.mxu0 0.0
    %449 = vmatpush1.msra.mxu0 0.0
    %450 = vmatprep.subr.mxu0 0.0
    %451 = vmatpush1.msra.mxu0 0.0
    %452 = vmatprep.subr.mxu0 0.0
    %453 = vmatpush1.msra.mxu0 0.0
    %454 = vmatprep.subr.mxu0 0.0
    %455 = vmatpush1.msra.mxu0 0.0
    %456 = vmatprep.subr.mxu0 0.0
    %457 = vmatpush1.msra.mxu0 0.0
    %458 = vmatprep.subr.mxu0 0.0
    %459 = vmatpush1.msra.mxu0 0.0
    %460 = vmatprep.subr.mxu0 0.0
    %461 = vmatpush1.msra.mxu0 0.0
    %462 = vmatprep.subr.mxu0 0.0
    %463 = vmatpush1.msra.mxu0 0.0
    %464 = vmatprep.subr.mxu0 0.0
    %465 = vmatpush1.msra.mxu0 0.0
    %466 = vmatprep.subr.mxu0 0.0
    %467 = vmatpush1.msra.mxu0 0.0
    %468 = vmatprep.subr.mxu0 0.0
    %469 = vmatpush1.msra.mxu0 0.0
    %470 = vmatprep.subr.mxu0 0.0
    %471 = vmatpush1.msra.mxu0 0.0
    %472 = vmatprep.subr.mxu0 0.0
    %473 = vmatpush1.msra.mxu0 0.0
    %474 = vmatprep.subr.mxu0 0.0
    %475 = vmatpush1.msra.mxu0 0.0
    %476 = vmatprep.subr.mxu0 0.0
    %477 = vmatpush1.msra.mxu0 0.0
    %478 = vmatprep.subr.mxu0 0.0
    %479 = vmatpush1.msra.mxu0 0.0
    %480 = vmatprep.subr.mxu0 0.0
    %481 = vmatpush1.msra.mxu0 0.0
    %482 = vmatprep.subr.mxu0 0.0
    %483 = vmatpush1.msra.mxu0 0.0
    %484 = vmatprep.mubr.f32.mxu0 0.0
    %485 = vmatmul.mubr.f32.gmra.mrb[0].mxu0 %v316
    %v486 = vpop.f32.mrb[0].mxu0
    %v487 = vadd.f32 %v418, %v486
    %v488 = vpop.f32.mrb[0].mxu0
    %489 = vmatprep.mubr.f32.mxu0 0.0
    %490 = vmatmul.mubr.f32.gmra.mrb[0].mxu0 %v319
    %v491 = vpop.f32.mrb[0].mxu0
    %v492 = vadd.f32 %v418, %v491
    %v493 = vpop.f32.mrb[0].mxu0
    %494 = vmatprep.mubr.f32.mxu0 0.0
    %495 = vmatmul.mubr.f32.gmra.mrb[0].mxu0 %v322
    %v496 = vpop.f32.mrb[0].mxu0
    %v497 = vadd.f32 %v418, %v496
    %v498 = vpop.f32.mrb[0].mxu0
    %499 = vmatprep.mubr.f32.mxu0 0.0
    %500 = vmatmul.mubr.f32.gmra.mrb[0].mxu0 %v319
    %v501 = vpop.f32.mrb[0].mxu0
    %v502 = vadd.f32 %v418, %v501
    %v503 = vpop.f32.mrb[0].mxu0
    %504 = vdwg.mxu0
    %v505 = vld [vmem:[%s11] sm:$0xff]
    %v506 = vld [vmem:[%s11 + $0x8] sm:$0xff]
    %v507 = vld [vmem:[%s11 + $0x10] sm:$0xff]
    %v508 = vld [vmem:[%s11 + $0x18] sm:$0xff]
    %v509 = vld [vmem:[%s12] sm:$0x1]
    %v511 = vlaneseq
    %v512 = vshrl.u32 %v511, 7
    %v513 = vsub.s32 0, %v512
    %v514 = vrot.slane %v509, %v513
    %516 = vmatprep.subr.mxu0 0.0
    %517 = vmatpush1.msra.mxu0 %v505
    %518 = vmatprep.subr.mxu0 0.0
    %519 = vmatpush1.msra.mxu0 %v506
    %520 = vmatprep.subr.mxu0 0.0
    %521 = vmatpush1.msra.mxu0 %v507
    %522 = vmatprep.subr.mxu0 0.0
    %523 = vmatpush1.msra.mxu0 %v508
    %524 = vmatprep.subr.mxu0 0.0
    %525 = vmatpush1.msra.mxu0 0.0
    %526 = vmatprep.subr.mxu0 0.0
    %527 = vmatpush1.msra.mxu0 0.0
    %528 = vmatprep.subr.mxu0 0.0
    %529 = vmatpush1.msra.mxu0 0.0
    %530 = vmatprep.subr.mxu0 0.0
    %531 = vmatpush1.msra.mxu0 0.0
    %532 = vmatprep.subr.mxu0 0.0
    %533 = vmatpush1.msra.mxu0 0.0
    %534 = vmatprep.subr.mxu0 0.0
    %535 = vmatpush1.msra.mxu0 0.0
    %536 = vmatprep.subr.mxu0 0.0
    %537 = vmatpush1.msra.mxu0 0.0
    %538 = vmatprep.subr.mxu0 0.0
    %539 = vmatpush1.msra.mxu0 0.0
    %540 = vmatprep.subr.mxu0 0.0
    %541 = vmatpush1.msra.mxu0 0.0
    %542 = vmatprep.subr.mxu0 0.0
    %543 = vmatpush1.msra.mxu0 0.0
    %544 = vmatprep.subr.mxu0 0.0
    %545 = vmatpush1.msra.mxu0 0.0
    %546 = vmatprep.subr.mxu0 0.0
    %547 = vmatpush1.msra.mxu0 0.0
    %548 = vmatprep.subr.mxu0 0.0
    %549 = vmatpush1.msra.mxu0 0.0
    %550 = vmatprep.subr.mxu0 0.0
    %551 = vmatpush1.msra.mxu0 0.0
    %552 = vmatprep.subr.mxu0 0.0
    %553 = vmatpush1.msra.mxu0 0.0
    %554 = vmatprep.subr.mxu0 0.0
    %555 = vmatpush1.msra.mxu0 0.0
    %556 = vmatprep.subr.mxu0 0.0
    %557 = vmatpush1.msra.mxu0 0.0
    %558 = vmatprep.subr.mxu0 0.0
    %559 = vmatpush1.msra.mxu0 0.0
    %560 = vmatprep.subr.mxu0 0.0
    %561 = vmatpush1.msra.mxu0 0.0
    %562 = vmatprep.subr.mxu0 0.0
    %563 = vmatpush1.msra.mxu0 0.0
    %564 = vmatprep.subr.mxu0 0.0
    %565 = vmatpush1.msra.mxu0 0.0
    %566 = vmatprep.subr.mxu0 0.0
    %567 = vmatpush1.msra.mxu0 0.0
    %568 = vmatprep.subr.mxu0 0.0
    %569 = vmatpush1.msra.mxu0 0.0
    %570 = vmatprep.subr.mxu0 0.0
    %571 = vmatpush1.msra.mxu0 0.0
    %572 = vmatprep.subr.mxu0 0.0
    %573 = vmatpush1.msra.mxu0 0.0
    %574 = vmatprep.subr.mxu0 0.0
    %575 = vmatpush1.msra.mxu0 0.0
    %576 = vmatprep.subr.mxu0 0.0
    %577 = vmatpush1.msra.mxu0 0.0
    %578 = vmatprep.subr.mxu0 0.0
    %579 = vmatpush1.msra.mxu0 0.0
    %580 = vmatprep.mubr.f32.mxu0 0.0
    %581 = vmatmul.mubr.f32.gmra.mrb[0].mxu0 %v316
    %v582 = vpop.f32.mrb[0].mxu0
    %v583 = vadd.f32 %v514, %v582
    %v584 = vpop.f32.mrb[0].mxu0
    %585 = vmatprep.mubr.f32.mxu0 0.0
    %586 = vmatmul.mubr.f32.gmra.mrb[0].mxu0 %v319
    %v587 = vpop.f32.mrb[0].mxu0
    %v588 = vadd.f32 %v514, %v587
    %v589 = vpop.f32.mrb[0].mxu0
    %590 = vmatprep.mubr.f32.mxu0 0.0
    %591 = vmatmul.mubr.f32.gmra.mrb[0].mxu0 %v322
    %v592 = vpop.f32.mrb[0].mxu0
    %v593 = vadd.f32 %v514, %v592
    %v594 = vpop.f32.mrb[0].mxu0
    %595 = vmatprep.mubr.f32.mxu0 0.0
    %596 = vmatmul.mubr.f32.gmra.mrb[0].mxu0 %v319
    %v597 = vpop.f32.mrb[0].mxu0
    %v598 = vadd.f32 %v514, %v597
    %v599 = vpop.f32.mrb[0].mxu0
    %600 = vdwg.mxu0
    %v601 = vmul.f32 %v487, %v225
    %v602 = vmul.f32 %v492, %v225
    %v603 = vmul.f32 %v497, %v225
    %v604 = vmul.f32 %v502, %v225
    %v606 = vsel %vm245, %v391, 0
    %v609 = vsel %vm245, %v396, 0
    %v612 = vsel %vm245, %v601, 0
    %v615 = vsel %vm245, %v602, 0
    %617 = vmatprep.subr.mxu0 0.0
    %618 = vmatpush1.xpose.msra.mxu0 %v612
    %619 = vmatprep.subr.mxu0 0.0
    %620 = vmatpush1.xpose.msra.mxu0 %v615
    %621 = vmatprep.subr.mxu0 0.0
    %622 = vmatpush1.xpose.msra.mxu0 0.0
    %623 = vmatprep.subr.mxu0 0.0
    %624 = vmatpush1.xpose.msra.mxu0 0.0
    %625 = vmatprep.subr.mxu0 0.0
    %626 = vmatpush1.xpose.msra.mxu0 0.0
    %627 = vmatprep.subr.mxu0 0.0
    %628 = vmatpush1.xpose.msra.mxu0 0.0
    %629 = vmatprep.subr.mxu0 0.0
    %630 = vmatpush1.xpose.msra.mxu0 0.0
    %631 = vmatprep.subr.mxu0 0.0
    %632 = vmatpush1.xpose.msra.mxu0 0.0
    %633 = vmatprep.subr.mxu0 0.0
    %634 = vmatpush1.xpose.msra.mxu0 0.0
    %635 = vmatprep.subr.mxu0 0.0
    %636 = vmatpush1.xpose.msra.mxu0 0.0
    %637 = vmatprep.subr.mxu0 0.0
    %638 = vmatpush1.xpose.msra.mxu0 0.0
    %639 = vmatprep.subr.mxu0 0.0
    %640 = vmatpush1.xpose.msra.mxu0 0.0
    %641 = vmatprep.subr.mxu0 0.0
    %642 = vmatpush1.xpose.msra.mxu0 0.0
    %643 = vmatprep.subr.mxu0 0.0
    %644 = vmatpush1.xpose.msra.mxu0 0.0
    %645 = vmatprep.subr.mxu0 0.0
    %646 = vmatpush1.xpose.msra.mxu0 0.0
    %647 = vmatprep.subr.mxu0 0.0
    %648 = vmatpush1.xpose.msra.mxu0 0.0
    %649 = vmatprep.subr.mxu0 0.0
    %650 = vmatpush1.xpose.msra.mxu0 0.0
    %651 = vmatprep.subr.mxu0 0.0
    %652 = vmatpush1.xpose.msra.mxu0 0.0
    %653 = vmatprep.subr.mxu0 0.0
    %654 = vmatpush1.xpose.msra.mxu0 0.0
    %655 = vmatprep.subr.mxu0 0.0
    %656 = vmatpush1.xpose.msra.mxu0 0.0
    %657 = vmatprep.subr.mxu0 0.0
    %658 = vmatpush1.xpose.msra.mxu0 0.0
    %659 = vmatprep.subr.mxu0 0.0
    %660 = vmatpush1.xpose.msra.mxu0 0.0
    %661 = vmatprep.subr.mxu0 0.0
    %662 = vmatpush1.xpose.msra.mxu0 0.0
    %663 = vmatprep.subr.mxu0 0.0
    %664 = vmatpush1.xpose.msra.mxu0 0.0
    %665 = vmatprep.subr.mxu0 0.0
    %666 = vmatpush1.xpose.msra.mxu0 0.0
    %667 = vmatprep.subr.mxu0 0.0
    %668 = vmatpush1.xpose.msra.mxu0 0.0
    %669 = vmatprep.subr.mxu0 0.0
    %670 = vmatpush1.xpose.msra.mxu0 0.0
    %671 = vmatprep.subr.mxu0 0.0
    %672 = vmatpush1.xpose.msra.mxu0 0.0
    %673 = vmatprep.subr.mxu0 0.0
    %674 = vmatpush1.xpose.msra.mxu0 0.0
    %675 = vmatprep.subr.mxu0 0.0
    %676 = vmatpush1.xpose.msra.mxu0 0.0
    %677 = vmatprep.subr.mxu0 0.0
    %678 = vmatpush1.xpose.msra.mxu0 0.0
    %679 = vmatprep.subr.mxu0 0.0
    %680 = vmatpush1.xpose.msra.mxu0 0.0
    %681 = vmatprep.mubr.f32.mxu0 0.0
    %682 = vmatmul.mubr.f32.gmra.mrb[0].mxu0 %v606
    %v683 = vpop.f32.mrb[0].mxu0
    %v684 = vadd.f32 0.0, %v683
    %v685 = vpop.f32.mrb[0].mxu0
    %686 = vmatprep.mubr.f32.mxu0 0.0
    %687 = vmatmul.mubr.f32.gmra.mrb[0].mxu0 %v609
    %v688 = vpop.f32.mrb[0].mxu0
    %v689 = vadd.f32 0.0, %v688
    %v690 = vpop.f32.mrb[0].mxu0
    %691 = vdwg.mxu0
    %v693 = vsel %vm245, %v401, 0
    %v696 = vsel %vm245, %v406, 0
    %v699 = vsel %vm245, %v603, 0
    %v702 = vsel %vm245, %v604, 0
    %704 = vmatprep.subr.mxu0 0.0
    %705 = vmatpush1.xpose.msra.mxu0 %v699
    %706 = vmatprep.subr.mxu0 0.0
    %707 = vmatpush1.xpose.msra.mxu0 %v702
    %708 = vmatprep.subr.mxu0 0.0
    %709 = vmatpush1.xpose.msra.mxu0 0.0
    %710 = vmatprep.subr.mxu0 0.0
    %711 = vmatpush1.xpose.msra.mxu0 0.0
    %712 = vmatprep.subr.mxu0 0.0
    %713 = vmatpush1.xpose.msra.mxu0 0.0
    %714 = vmatprep.subr.mxu0 0.0
    %715 = vmatpush1.xpose.msra.mxu0 0.0
    %716 = vmatprep.subr.mxu0 0.0
    %717 = vmatpush1.xpose.msra.mxu0 0.0
    %718 = vmatprep.subr.mxu0 0.0
    %719 = vmatpush1.xpose.msra.mxu0 0.0
    %720 = vmatprep.subr.mxu0 0.0
    %721 = vmatpush1.xpose.msra.mxu0 0.0
    %722 = vmatprep.subr.mxu0 0.0
    %723 = vmatpush1.xpose.msra.mxu0 0.0
    %724 = vmatprep.subr.mxu0 0.0
    %725 = vmatpush1.xpose.msra.mxu0 0.0
    %726 = vmatprep.subr.mxu0 0.0
    %727 = vmatpush1.xpose.msra.mxu0 0.0
    %728 = vmatprep.subr.mxu0 0.0
    %729 = vmatpush1.xpose.msra.mxu0 0.0
    %730 = vmatprep.subr.mxu0 0.0
    %731 = vmatpush1.xpose.msra.mxu0 0.0
    %732 = vmatprep.subr.mxu0 0.0
    %733 = vmatpush1.xpose.msra.mxu0 0.0
    %734 = vmatprep.subr.mxu0 0.0
    %735 = vmatpush1.xpose.msra.mxu0 0.0
    %736 = vmatprep.subr.mxu0 0.0
    %737 = vmatpush1.xpose.msra.mxu0 0.0
    %738 = vmatprep.subr.mxu0 0.0
    %739 = vmatpush1.xpose.msra.mxu0 0.0
    %740 = vmatprep.subr.mxu0 0.0
    %741 = vmatpush1.xpose.msra.mxu0 0.0
    %742 = vmatprep.subr.mxu0 0.0
    %743 = vmatpush1.xpose.msra.mxu0 0.0
    %744 = vmatprep.subr.mxu0 0.0
    %745 = vmatpush1.xpose.msra.mxu0 0.0
    %746 = vmatprep.subr.mxu0 0.0
    %747 = vmatpush1.xpose.msra.mxu0 0.0
    %748 = vmatprep.subr.mxu0 0.0
    %749 = vmatpush1.xpose.msra.mxu0 0.0
    %750 = vmatprep.subr.mxu0 0.0
    %751 = vmatpush1.xpose.msra.mxu0 0.0
    %752 = vmatprep.subr.mxu0 0.0
    %753 = vmatpush1.xpose.msra.mxu0 0.0
    %754 = vmatprep.subr.mxu0 0.0
    %755 = vmatpush1.xpose.msra.mxu0 0.0
    %756 = vmatprep.subr.mxu0 0.0
    %757 = vmatpush1.xpose.msra.mxu0 0.0
    %758 = vmatprep.subr.mxu0 0.0
    %759 = vmatpush1.xpose.msra.mxu0 0.0
    %760 = vmatprep.subr.mxu0 0.0
    %761 = vmatpush1.xpose.msra.mxu0 0.0
    %762 = vmatprep.subr.mxu0 0.0
    %763 = vmatpush1.xpose.msra.mxu0 0.0
    %764 = vmatprep.subr.mxu0 0.0
    %765 = vmatpush1.xpose.msra.mxu0 0.0
    %766 = vmatprep.subr.mxu0 0.0
    %767 = vmatpush1.xpose.msra.mxu0 0.0
    %768 = vmatprep.mubr.f32.mxu0 0.0
    %769 = vmatmul.mubr.f32.gmra.mrb[0].mxu0 %v693
    %v770 = vpop.f32.mrb[0].mxu0
    %v771 = vadd.f32 0.0, %v770
    %v772 = vpop.f32.mrb[0].mxu0
    %773 = vmatprep.mubr.f32.mxu0 0.0
    %774 = vmatmul.mubr.f32.gmra.mrb[0].mxu0 %v696
    %v775 = vpop.f32.mrb[0].mxu0
    %v776 = vadd.f32 0.0, %v775
    %v777 = vpop.f32.mrb[0].mxu0
    %778 = vdwg.mxu0
    %v779 = vmul.f32 %v684, 0.35355338
    %v780 = vmul.f32 %v689, 0.35355338
    %v781 = vmul.f32 %v771, 0.35355338
    %v782 = vmul.f32 %v776, 0.35355338
    %v783 = vadd.f32 %v779, %v242
    %v784 = vadd.f32 %v780, %v242
    %v785 = vadd.f32 %v781, %v242
    %v786 = vadd.f32 %v782, %v242
    %vm787 = vcmask 130048
    %v788 = vsel %vm787, %v783, -inf
    %789 = vmax.xlane.f32.xlu0 %v788
    %v790 = vpop.xlane.xlu0 %789
    %v791 = vsel %vm787, %v784, -inf
    %792 = vmax.xlane.f32.xlu0 %v791
    %v793 = vpop.xlane.xlu0 %792
    %v794 = vsel %vm787, %v785, -inf
    %795 = vmax.xlane.f32.xlu0 %v794
    %v796 = vpop.xlane.xlu0 %795
    %v797 = vsel %vm787, %v786, -inf
    %798 = vmax.xlane.f32.xlu0 %v797
    %v799 = vpop.xlane.xlu0 %798
    %v800 = vsub.f32 %v783, %v790
    %v801 = vsub.f32 %v784, %v793
    %v802 = vsub.f32 %v785, %v796
    %v803 = vsub.f32 %v786, %v799
    %v804 = vmul.f32 %v800, 1.442695
    %v805 = vpow.pop %v804
    %v806 = vmul.f32 %v801, 1.442695
    %v807 = vpow.pop %v806
    %v808 = vmul.f32 %v802, 1.442695
    %v809 = vpow.pop %v808
    %v810 = vmul.f32 %v803, 1.442695
    %v811 = vpow.pop %v810
    %v812 = vsel %vm787, %v805, 0.0
    %813 = vadd.xlane.f32.xlu0 %v812
    %v814 = vpop.xlane.xlu0 %813
    %v815 = vsel %vm787, %v807, 0.0
    %816 = vadd.xlane.f32.xlu0 %v815
    %v817 = vpop.xlane.xlu0 %816
    %v818 = vsel %vm787, %v809, 0.0
    %819 = vadd.xlane.f32.xlu0 %v818
    %v820 = vpop.xlane.xlu0 %819
    %v821 = vsel %vm787, %v811, 0.0
    %822 = vadd.xlane.f32.xlu0 %v821
    %v823 = vpop.xlane.xlu0 %822
    %v824 = vrcp.pop %v814
    %v825 = vrcp.pop %v817
    %v826 = vrcp.pop %v820
    %v827 = vrcp.pop %v823
    %v828 = vmul.f32 %v805, %v824
    %v829 = vmul.f32 %v807, %v825
    %v830 = vmul.f32 %v809, %v826
    %v831 = vmul.f32 %v811, %v827
    %v832 = vmul.f32 %v583, %v225
    %v833 = vmul.f32 %v588, %v225
    %v834 = vmul.f32 %v593, %v225
    %v835 = vmul.f32 %v598, %v225
    %v836 = vmul.f32 %v487, %v230
    %v837 = vmul.f32 %v492, %v230
    %v838 = vmul.f32 %v497, %v230
    %v839 = vmul.f32 %v502, %v230
    %v841 = vsel %vm245, %v836, 0
    %v844 = vsel %vm245, %v837, 0
    %846 = vmatprep.subr.mxu0 0.0
    %847 = vmatpush1.xpose.msra.mxu0 %v841
    %848 = vmatprep.subr.mxu0 0.0
    %849 = vmatpush1.xpose.msra.mxu0 %v844
    %850 = vmatprep.subr.mxu0 0.0
    %851 = vmatpush1.xpose.msra.mxu0 0.0
    %852 = vmatprep.subr.mxu0 0.0
    %853 = vmatpush1.xpose.msra.mxu0 0.0
    %854 = vmatprep.subr.mxu0 0.0
    %855 = vmatpush1.xpose.msra.mxu0 0.0
    %856 = vmatprep.subr.mxu0 0.0
    %857 = vmatpush1.xpose.msra.mxu0 0.0
    %858 = vmatprep.subr.mxu0 0.0
    %859 = vmatpush1.xpose.msra.mxu0 0.0
    %860 = vmatprep.subr.mxu0 0.0
    %861 = vmatpush1.xpose.msra.mxu0 0.0
    %862 = vmatprep.subr.mxu0 0.0
    %863 = vmatpush1.xpose.msra.mxu0 0.0
    %864 = vmatprep.subr.mxu0 0.0
    %865 = vmatpush1.xpose.msra.mxu0 0.0
    %866 = vmatprep.subr.mxu0 0.0
    %867 = vmatpush1.xpose.msra.mxu0 0.0
    %868 = vmatprep.subr.mxu0 0.0
    %869 = vmatpush1.xpose.msra.mxu0 0.0
    %870 = vmatprep.subr.mxu0 0.0
    %871 = vmatpush1.xpose.msra.mxu0 0.0
    %872 = vmatprep.subr.mxu0 0.0
    %873 = vmatpush1.xpose.msra.mxu0 0.0
    %874 = vmatprep.subr.mxu0 0.0
    %875 = vmatpush1.xpose.msra.mxu0 0.0
    %876 = vmatprep.subr.mxu0 0.0
    %877 = vmatpush1.xpose.msra.mxu0 0.0
    %878 = vmatprep.subr.mxu0 0.0
    %879 = vmatpush1.xpose.msra.mxu0 0.0
    %880 = vmatprep.subr.mxu0 0.0
    %881 = vmatpush1.xpose.msra.mxu0 0.0
    %882 = vmatprep.subr.mxu0 0.0
    %883 = vmatpush1.xpose.msra.mxu0 0.0
    %884 = vmatprep.subr.mxu0 0.0
    %885 = vmatpush1.xpose.msra.mxu0 0.0
    %886 = vmatprep.subr.mxu0 0.0
    %887 = vmatpush1.xpose.msra.mxu0 0.0
    %888 = vmatprep.subr.mxu0 0.0
    %889 = vmatpush1.xpose.msra.mxu0 0.0
    %890 = vmatprep.subr.mxu0 0.0
    %891 = vmatpush1.xpose.msra.mxu0 0.0
    %892 = vmatprep.subr.mxu0 0.0
    %893 = vmatpush1.xpose.msra.mxu0 0.0
    %894 = vmatprep.subr.mxu0 0.0
    %895 = vmatpush1.xpose.msra.mxu0 0.0
    %896 = vmatprep.subr.mxu0 0.0
    %897 = vmatpush1.xpose.msra.mxu0 0.0
    %898 = vmatprep.subr.mxu0 0.0
    %899 = vmatpush1.xpose.msra.mxu0 0.0
    %900 = vmatprep.subr.mxu0 0.0
    %901 = vmatpush1.xpose.msra.mxu0 0.0
    %902 = vmatprep.subr.mxu0 0.0
    %903 = vmatpush1.xpose.msra.mxu0 0.0
    %904 = vmatprep.subr.mxu0 0.0
    %905 = vmatpush1.xpose.msra.mxu0 0.0
    %906 = vmatprep.subr.mxu0 0.0
    %907 = vmatpush1.xpose.msra.mxu0 0.0
    %908 = vmatprep.subr.mxu0 0.0
    %909 = vmatpush1.xpose.msra.mxu0 0.0
    %910 = vmatprep.mubr.f32.mxu0 0.0
    %911 = vmatmul.mubr.f32.gmra.mrb[0].mxu0 %v606
    %v912 = vpop.f32.mrb[0].mxu0
    %v913 = vadd.f32 0.0, %v912
    %v914 = vpop.f32.mrb[0].mxu0
    %915 = vmatprep.mubr.f32.mxu0 0.0
    %916 = vmatmul.mubr.f32.gmra.mrb[0].mxu0 %v609
    %v917 = vpop.f32.mrb[0].mxu0
    %v918 = vadd.f32 0.0, %v917
    %v919 = vpop.f32.mrb[0].mxu0
    %920 = vdwg.mxu0
    %v922 = vsel %vm245, %v838, 0
    %v925 = vsel %vm245, %v839, 0
    %927 = vmatprep.subr.mxu0 0.0
    %928 = vmatpush1.xpose.msra.mxu0 %v922
    %929 = vmatprep.subr.mxu0 0.0
    %930 = vmatpush1.xpose.msra.mxu0 %v925
    %931 = vmatprep.subr.mxu0 0.0
    %932 = vmatpush1.xpose.msra.mxu0 0.0
    %933 = vmatprep.subr.mxu0 0.0
    %934 = vmatpush1.xpose.msra.mxu0 0.0
    %935 = vmatprep.subr.mxu0 0.0
    %936 = vmatpush1.xpose.msra.mxu0 0.0
    %937 = vmatprep.subr.mxu0 0.0
    %938 = vmatpush1.xpose.msra.mxu0 0.0
    %939 = vmatprep.subr.mxu0 0.0
    %940 = vmatpush1.xpose.msra.mxu0 0.0
    %941 = vmatprep.subr.mxu0 0.0
    %942 = vmatpush1.xpose.msra.mxu0 0.0
    %943 = vmatprep.subr.mxu0 0.0
    %944 = vmatpush1.xpose.msra.mxu0 0.0
    %945 = vmatprep.subr.mxu0 0.0
    %946 = vmatpush1.xpose.msra.mxu0 0.0
    %947 = vmatprep.subr.mxu0 0.0
    %948 = vmatpush1.xpose.msra.mxu0 0.0
    %949 = vmatprep.subr.mxu0 0.0
    %950 = vmatpush1.xpose.msra.mxu0 0.0
    %951 = vmatprep.subr.mxu0 0.0
    %952 = vmatpush1.xpose.msra.mxu0 0.0
    %953 = vmatprep.subr.mxu0 0.0
    %954 = vmatpush1.xpose.msra.mxu0 0.0
    %955 = vmatprep.subr.mxu0 0.0
    %956 = vmatpush1.xpose.msra.mxu0 0.0
    %957 = vmatprep.subr.mxu0 0.0
    %958 = vmatpush1.xpose.msra.mxu0 0.0
    %959 = vmatprep.subr.mxu0 0.0
    %960 = vmatpush1.xpose.msra.mxu0 0.0
    %961 = vmatprep.subr.mxu0 0.0
    %962 = vmatpush1.xpose.msra.mxu0 0.0
    %963 = vmatprep.subr.mxu0 0.0
    %964 = vmatpush1.xpose.msra.mxu0 0.0
    %965 = vmatprep.subr.mxu0 0.0
    %966 = vmatpush1.xpose.msra.mxu0 0.0
    %967 = vmatprep.subr.mxu0 0.0
    %968 = vmatpush1.xpose.msra.mxu0 0.0
    %969 = vmatprep.subr.mxu0 0.0
    %970 = vmatpush1.xpose.msra.mxu0 0.0
    %971 = vmatprep.subr.mxu0 0.0
    %972 = vmatpush1.xpose.msra.mxu0 0.0
    %973 = vmatprep.subr.mxu0 0.0
    %974 = vmatpush1.xpose.msra.mxu0 0.0
    %975 = vmatprep.subr.mxu0 0.0
    %976 = vmatpush1.xpose.msra.mxu0 0.0
    %977 = vmatprep.subr.mxu0 0.0
    %978 = vmatpush1.xpose.msra.mxu0 0.0
    %979 = vmatprep.subr.mxu0 0.0
    %980 = vmatpush1.xpose.msra.mxu0 0.0
    %981 = vmatprep.subr.mxu0 0.0
    %982 = vmatpush1.xpose.msra.mxu0 0.0
    %983 = vmatprep.subr.mxu0 0.0
    %984 = vmatpush1.xpose.msra.mxu0 0.0
    %985 = vmatprep.subr.mxu0 0.0
    %986 = vmatpush1.xpose.msra.mxu0 0.0
    %987 = vmatprep.subr.mxu0 0.0
    %988 = vmatpush1.xpose.msra.mxu0 0.0
    %989 = vmatprep.subr.mxu0 0.0
    %990 = vmatpush1.xpose.msra.mxu0 0.0
    %991 = vmatprep.mubr.f32.mxu0 0.0
    %992 = vmatmul.mubr.f32.gmra.mrb[0].mxu0 %v693
    %v993 = vpop.f32.mrb[0].mxu0
    %v994 = vadd.f32 0.0, %v993
    %v995 = vpop.f32.mrb[0].mxu0
    %996 = vmatprep.mubr.f32.mxu0 0.0
    %997 = vmatmul.mubr.f32.gmra.mrb[0].mxu0 %v696
    %v998 = vpop.f32.mrb[0].mxu0
    %v999 = vadd.f32 0.0, %v998
    %v1000 = vpop.f32.mrb[0].mxu0
    %1001 = vdwg.mxu0
    %v1002 = vmul.f32 %v913, 0.35355338
    %v1003 = vmul.f32 %v918, 0.35355338
    %v1004 = vmul.f32 %v994, 0.35355338
    %v1005 = vmul.f32 %v999, 0.35355338
    %v1006 = vadd.f32 %v1002, %v242
    %v1007 = vadd.f32 %v1003, %v242
    %v1008 = vadd.f32 %v1004, %v242
    %v1009 = vadd.f32 %v1005, %v242
    %v1010 = vsel %vm787, %v1006, -inf
    %1011 = vmax.xlane.f32.xlu0 %v1010
    %v1012 = vpop.xlane.xlu0 %1011
    %v1013 = vsel %vm787, %v1007, -inf
    %1014 = vmax.xlane.f32.xlu0 %v1013
    %v1015 = vpop.xlane.xlu0 %1014
    %v1016 = vsel %vm787, %v1008, -inf
    %1017 = vmax.xlane.f32.xlu0 %v1016
    %v1018 = vpop.xlane.xlu0 %1017
    %v1019 = vsel %vm787, %v1009, -inf
    %1020 = vmax.xlane.f32.xlu0 %v1019
    %v1021 = vpop.xlane.xlu0 %1020
    %v1022 = vsub.f32 %v1006, %v1012
    %v1023 = vsub.f32 %v1007, %v1015
    %v1024 = vsub.f32 %v1008, %v1018
    %v1025 = vsub.f32 %v1009, %v1021
    %v1026 = vmul.f32 %v1022, 1.442695
    %v1027 = vpow.pop %v1026
    %v1028 = vmul.f32 %v1023, 1.442695
    %v1029 = vpow.pop %v1028
    %v1030 = vmul.f32 %v1024, 1.442695
    %v1031 = vpow.pop %v1030
    %v1032 = vmul.f32 %v1025, 1.442695
    %v1033 = vpow.pop %v1032
    %v1034 = vsel %vm787, %v1027, 0.0
    %1035 = vadd.xlane.f32.xlu0 %v1034
    %v1036 = vpop.xlane.xlu0 %1035
    %v1037 = vsel %vm787, %v1029, 0.0
    %1038 = vadd.xlane.f32.xlu0 %v1037
    %v1039 = vpop.xlane.xlu0 %1038
    %v1040 = vsel %vm787, %v1031, 0.0
    %1041 = vadd.xlane.f32.xlu0 %v1040
    %v1042 = vpop.xlane.xlu0 %1041
    %v1043 = vsel %vm787, %v1033, 0.0
    %1044 = vadd.xlane.f32.xlu0 %v1043
    %v1045 = vpop.xlane.xlu0 %1044
    %v1046 = vrcp.pop %v1036
    %v1047 = vrcp.pop %v1039
    %v1048 = vrcp.pop %v1042
    %v1049 = vrcp.pop %v1045
    %v1050 = vmul.f32 %v1027, %v1046
    %v1051 = vmul.f32 %v1029, %v1047
    %v1052 = vmul.f32 %v1031, %v1048
    %v1053 = vmul.f32 %v1033, %v1049
    %v1054 = vmul.f32 %v583, %v230
    %v1055 = vmul.f32 %v588, %v230
    %v1056 = vmul.f32 %v593, %v230
    %v1057 = vmul.f32 %v598, %v230
    %v1059 = vsel %vm787, %v1050, 0
    %v1062 = vsel %vm787, %v1051, 0
    %1064 = vmatprep.subr.mxu0 0.0
    %1065 = vmatpush1.msra.mxu0 %v1054
    %1066 = vmatprep.subr.mxu0 0.0
    %1067 = vmatpush1.msra.mxu0 %v1055
    %1068 = vmatprep.subr.mxu0 0.0
    %1069 = vmatpush1.msra.mxu0 0.0
    %1070 = vmatprep.subr.mxu0 0.0
    %1071 = vmatpush1.msra.mxu0 0.0
    %1072 = vmatprep.subr.mxu0 0.0
    %1073 = vmatpush1.msra.mxu0 0.0
    %1074 = vmatprep.subr.mxu0 0.0
    %1075 = vmatpush1.msra.mxu0 0.0
    %1076 = vmatprep.subr.mxu0 0.0
    %1077 = vmatpush1.msra.mxu0 0.0
    %1078 = vmatprep.subr.mxu0 0.0
    %1079 = vmatpush1.msra.mxu0 0.0
    %1080 = vmatprep.subr.mxu0 0.0
    %1081 = vmatpush1.msra.mxu0 0.0
    %1082 = vmatprep.subr.mxu0 0.0
    %1083 = vmatpush1.msra.mxu0 0.0
    %1084 = vmatprep.subr.mxu0 0.0
    %1085 = vmatpush1.msra.mxu0 0.0
    %1086 = vmatprep.subr.mxu0 0.0
    %1087 = vmatpush1.msra.mxu0 0.0
    %1088 = vmatprep.subr.mxu0 0.0
    %1089 = vmatpush1.msra.mxu0 0.0
    %1090 = vmatprep.subr.mxu0 0.0
    %1091 = vmatpush1.msra.mxu0 0.0
    %1092 = vmatprep.subr.mxu0 0.0
    %1093 = vmatpush1.msra.mxu0 0.0
    %1094 = vmatprep.subr.mxu0 0.0
    %1095 = vmatpush1.msra.mxu0 0.0
    %1096 = vmatprep.subr.mxu0 0.0
    %1097 = vmatpush1.msra.mxu0 0.0
    %1098 = vmatprep.subr.mxu0 0.0
    %1099 = vmatpush1.msra.mxu0 0.0
    %1100 = vmatprep.subr.mxu0 0.0
    %1101 = vmatpush1.msra.mxu0 0.0
    %1102 = vmatprep.subr.mxu0 0.0
    %1103 = vmatpush1.msra.mxu0 0.0
    %1104 = vmatprep.subr.mxu0 0.0
    %1105 = vmatpush1.msra.mxu0 0.0
    %1106 = vmatprep.subr.mxu0 0.0
    %1107 = vmatpush1.msra.mxu0 0.0
    %1108 = vmatprep.subr.mxu0 0.0
    %1109 = vmatpush1.msra.mxu0 0.0
    %1110 = vmatprep.subr.mxu0 0.0
    %1111 = vmatpush1.msra.mxu0 0.0
    %1112 = vmatprep.subr.mxu0 0.0
    %1113 = vmatpush1.msra.mxu0 0.0
    %1114 = vmatprep.subr.mxu0 0.0
    %1115 = vmatpush1.msra.mxu0 0.0
    %1116 = vmatprep.subr.mxu0 0.0
    %1117 = vmatpush1.msra.mxu0 0.0
    %1118 = vmatprep.subr.mxu0 0.0
    %1119 = vmatpush1.msra.mxu0 0.0
    %1120 = vmatprep.subr.mxu0 0.0
    %1121 = vmatpush1.msra.mxu0 0.0
    %1122 = vmatprep.subr.mxu0 0.0
    %1123 = vmatpush1.msra.mxu0 0.0
    %1124 = vmatprep.subr.mxu0 0.0
    %1125 = vmatpush1.msra.mxu0 0.0
    %1126 = vmatprep.subr.mxu0 0.0
    %1127 = vmatpush1.msra.mxu0 0.0
    %1128 = vmatprep.mubr.f32.mxu0 0.0
    %1129 = vmatmul.mubr.f32.gmra.mrb[0].mxu0 %v1059
    %v1130 = vpop.f32.mrb[0].mxu0
    %v1131 = vadd.f32 0.0, %v1130
    %v1132 = vpop.f32.mrb[0].mxu0
    %1133 = vmatprep.mubr.f32.mxu0 0.0
    %1134 = vmatmul.mubr.f32.gmra.mrb[0].mxu0 %v1062
    %v1135 = vpop.f32.mrb[0].mxu0
    %v1136 = vadd.f32 0.0, %v1135
    %v1137 = vpop.f32.mrb[0].mxu0
    %1138 = vdwg.mxu0
    %v1140 = vsel %vm787, %v1052, 0
    %v1143 = vsel %vm787, %v1053, 0
    %1145 = vmatprep.subr.mxu0 0.0
    %1146 = vmatpush1.msra.mxu0 %v1056
    %1147 = vmatprep.subr.mxu0 0.0
    %1148 = vmatpush1.msra.mxu0 %v1057
    %1149 = vmatprep.subr.mxu0 0.0
    %1150 = vmatpush1.msra.mxu0 0.0
    %1151 = vmatprep.subr.mxu0 0.0
    %1152 = vmatpush1.msra.mxu0 0.0
    %1153 = vmatprep.subr.mxu0 0.0
    %1154 = vmatpush1.msra.mxu0 0.0
    %1155 = vmatprep.subr.mxu0 0.0
    %1156 = vmatpush1.msra.mxu0 0.0
    %1157 = vmatprep.subr.mxu0 0.0
    %1158 = vmatpush1.msra.mxu0 0.0
    %1159 = vmatprep.subr.mxu0 0.0
    %1160 = vmatpush1.msra.mxu0 0.0
    %1161 = vmatprep.subr.mxu0 0.0
    %1162 = vmatpush1.msra.mxu0 0.0
    %1163 = vmatprep.subr.mxu0 0.0
    %1164 = vmatpush1.msra.mxu0 0.0
    %1165 = vmatprep.subr.mxu0 0.0
    %1166 = vmatpush1.msra.mxu0 0.0
    %1167 = vmatprep.subr.mxu0 0.0
    %1168 = vmatpush1.msra.mxu0 0.0
    %1169 = vmatprep.subr.mxu0 0.0
    %1170 = vmatpush1.msra.mxu0 0.0
    %1171 = vmatprep.subr.mxu0 0.0
    %1172 = vmatpush1.msra.mxu0 0.0
    %1173 = vmatprep.subr.mxu0 0.0
    %1174 = vmatpush1.msra.mxu0 0.0
    %1175 = vmatprep.subr.mxu0 0.0
    %1176 = vmatpush1.msra.mxu0 0.0
    %1177 = vmatprep.subr.mxu0 0.0
    %1178 = vmatpush1.msra.mxu0 0.0
    %1179 = vmatprep.subr.mxu0 0.0
    %1180 = vmatpush1.msra.mxu0 0.0
    %1181 = vmatprep.subr.mxu0 0.0
    %1182 = vmatpush1.msra.mxu0 0.0
    %1183 = vmatprep.subr.mxu0 0.0
    %1184 = vmatpush1.msra.mxu0 0.0
    %1185 = vmatprep.subr.mxu0 0.0
    %1186 = vmatpush1.msra.mxu0 0.0
    %1187 = vmatprep.subr.mxu0 0.0
    %1188 = vmatpush1.msra.mxu0 0.0
    %1189 = vmatprep.subr.mxu0 0.0
    %1190 = vmatpush1.msra.mxu0 0.0
    %1191 = vmatprep.subr.mxu0 0.0
    %1192 = vmatpush1.msra.mxu0 0.0
    %1193 = vmatprep.subr.mxu0 0.0
    %1194 = vmatpush1.msra.mxu0 0.0
    %1195 = vmatprep.subr.mxu0 0.0
    %1196 = vmatpush1.msra.mxu0 0.0
    %1197 = vmatprep.subr.mxu0 0.0
    %1198 = vmatpush1.msra.mxu0 0.0
    %1199 = vmatprep.subr.mxu0 0.0
    %1200 = vmatpush1.msra.mxu0 0.0
    %1201 = vmatprep.subr.mxu0 0.0
    %1202 = vmatpush1.msra.mxu0 0.0
    %1203 = vmatprep.subr.mxu0 0.0
    %1204 = vmatpush1.msra.mxu0 0.0
    %1205 = vmatprep.subr.mxu0 0.0
    %1206 = vmatpush1.msra.mxu0 0.0
    %1207 = vmatprep.subr.mxu0 0.0
    %1208 = vmatpush1.msra.mxu0 0.0
    %1209 = vmatprep.mubr.f32.mxu0 0.0
    %1210 = vmatmul.mubr.f32.gmra.mrb[0].mxu0 %v1140
    %v1211 = vpop.f32.mrb[0].mxu0
    %v1212 = vadd.f32 0.0, %v1211
    %v1213 = vpop.f32.mrb[0].mxu0
    %1214 = vmatprep.mubr.f32.mxu0 0.0
    %1215 = vmatmul.mubr.f32.gmra.mrb[0].mxu0 %v1143
    %v1216 = vpop.f32.mrb[0].mxu0
    %v1217 = vadd.f32 0.0, %v1216
    %v1218 = vpop.f32.mrb[0].mxu0
    %1219 = vdwg.mxu0
    %v1221 = vsel %vm787, %v828, 0
    %v1224 = vsel %vm787, %v829, 0
    %1226 = vmatprep.subr.mxu0 0.0
    %1227 = vmatpush1.msra.mxu0 %v832
    %1228 = vmatprep.subr.mxu0 0.0
    %1229 = vmatpush1.msra.mxu0 %v833
    %1230 = vmatprep.subr.mxu0 0.0
    %1231 = vmatpush1.msra.mxu0 0.0
    %1232 = vmatprep.subr.mxu0 0.0
    %1233 = vmatpush1.msra.mxu0 0.0
    %1234 = vmatprep.subr.mxu0 0.0
    %1235 = vmatpush1.msra.mxu0 0.0
    %1236 = vmatprep.subr.mxu0 0.0
    %1237 = vmatpush1.msra.mxu0 0.0
    %1238 = vmatprep.subr.mxu0 0.0
    %1239 = vmatpush1.msra.mxu0 0.0
    %1240 = vmatprep.subr.mxu0 0.0
    %1241 = vmatpush1.msra.mxu0 0.0
    %1242 = vmatprep.subr.mxu0 0.0
    %1243 = vmatpush1.msra.mxu0 0.0
    %1244 = vmatprep.subr.mxu0 0.0
    %1245 = vmatpush1.msra.mxu0 0.0
    %1246 = vmatprep.subr.mxu0 0.0
    %1247 = vmatpush1.msra.mxu0 0.0
    %1248 = vmatprep.subr.mxu0 0.0
    %1249 = vmatpush1.msra.mxu0 0.0
    %1250 = vmatprep.subr.mxu0 0.0
    %1251 = vmatpush1.msra.mxu0 0.0
    %1252 = vmatprep.subr.mxu0 0.0
    %1253 = vmatpush1.msra.mxu0 0.0
    %1254 = vmatprep.subr.mxu0 0.0
    %1255 = vmatpush1.msra.mxu0 0.0
    %1256 = vmatprep.subr.mxu0 0.0
    %1257 = vmatpush1.msra.mxu0 0.0
    %1258 = vmatprep.subr.mxu0 0.0
    %1259 = vmatpush1.msra.mxu0 0.0
    %1260 = vmatprep.subr.mxu0 0.0
    %1261 = vmatpush1.msra.mxu0 0.0
    %1262 = vmatprep.subr.mxu0 0.0
    %1263 = vmatpush1.msra.mxu0 0.0
    %1264 = vmatprep.subr.mxu0 0.0
    %1265 = vmatpush1.msra.mxu0 0.0
    %1266 = vmatprep.subr.mxu0 0.0
    %1267 = vmatpush1.msra.mxu0 0.0
    %1268 = vmatprep.subr.mxu0 0.0
    %1269 = vmatpush1.msra.mxu0 0.0
    %1270 = vmatprep.subr.mxu0 0.0
    %1271 = vmatpush1.msra.mxu0 0.0
    %1272 = vmatprep.subr.mxu0 0.0
    %1273 = vmatpush1.msra.mxu0 0.0
    %1274 = vmatprep.subr.mxu0 0.0
    %1275 = vmatpush1.msra.mxu0 0.0
    %1276 = vmatprep.subr.mxu0 0.0
    %1277 = vmatpush1.msra.mxu0 0.0
    %1278 = vmatprep.subr.mxu0 0.0
    %1279 = vmatpush1.msra.mxu0 0.0
    %1280 = vmatprep.subr.mxu0 0.0
    %1281 = vmatpush1.msra.mxu0 0.0
    %1282 = vmatprep.subr.mxu0 0.0
    %1283 = vmatpush1.msra.mxu0 0.0
    %1284 = vmatprep.subr.mxu0 0.0
    %1285 = vmatpush1.msra.mxu0 0.0
    %1286 = vmatprep.subr.mxu0 0.0
    %1287 = vmatpush1.msra.mxu0 0.0
    %1288 = vmatprep.subr.mxu0 0.0
    %1289 = vmatpush1.msra.mxu0 0.0
    %1290 = vmatprep.mubr.f32.mxu0 0.0
    %1291 = vmatmul.mubr.f32.gmra.mrb[0].mxu0 %v1221
    %v1292 = vpop.f32.mrb[0].mxu0
    %v1293 = vadd.f32 %v1131, %v1292
    %v1294 = vpop.f32.mrb[0].mxu0
    %1295 = vmatprep.mubr.f32.mxu0 0.0
    %1296 = vmatmul.mubr.f32.gmra.mrb[0].mxu0 %v1224
    %v1297 = vpop.f32.mrb[0].mxu0
    %v1298 = vadd.f32 %v1136, %v1297
    %v1299 = vpop.f32.mrb[0].mxu0
    %1300 = vdwg.mxu0
    %v1302 = vsel %vm787, %v830, 0
    %v1305 = vsel %vm787, %v831, 0
    %1307 = vmatprep.subr.mxu0 0.0
    %1308 = vmatpush1.msra.mxu0 %v834
    %1309 = vmatprep.subr.mxu0 0.0
    %1310 = vmatpush1.msra.mxu0 %v835
    %1311 = vmatprep.subr.mxu0 0.0
    %1312 = vmatpush1.msra.mxu0 0.0
    %1313 = vmatprep.subr.mxu0 0.0
    %1314 = vmatpush1.msra.mxu0 0.0
    %1315 = vmatprep.subr.mxu0 0.0
    %1316 = vmatpush1.msra.mxu0 0.0
    %1317 = vmatprep.subr.mxu0 0.0
    %1318 = vmatpush1.msra.mxu0 0.0
    %1319 = vmatprep.subr.mxu0 0.0
    %1320 = vmatpush1.msra.mxu0 0.0
    %1321 = vmatprep.subr.mxu0 0.0
    %1322 = vmatpush1.msra.mxu0 0.0
    %1323 = vmatprep.subr.mxu0 0.0
    %1324 = vmatpush1.msra.mxu0 0.0
    %1325 = vmatprep.subr.mxu0 0.0
    %1326 = vmatpush1.msra.mxu0 0.0
    %1327 = vmatprep.subr.mxu0 0.0
    %1328 = vmatpush1.msra.mxu0 0.0
    %1329 = vmatprep.subr.mxu0 0.0
    %1330 = vmatpush1.msra.mxu0 0.0
    %1331 = vmatprep.subr.mxu0 0.0
    %1332 = vmatpush1.msra.mxu0 0.0
    %1333 = vmatprep.subr.mxu0 0.0
    %1334 = vmatpush1.msra.mxu0 0.0
    %1335 = vmatprep.subr.mxu0 0.0
    %1336 = vmatpush1.msra.mxu0 0.0
    %1337 = vmatprep.subr.mxu0 0.0
    %1338 = vmatpush1.msra.mxu0 0.0
    %1339 = vmatprep.subr.mxu0 0.0
    %1340 = vmatpush1.msra.mxu0 0.0
    %1341 = vmatprep.subr.mxu0 0.0
    %1342 = vmatpush1.msra.mxu0 0.0
    %1343 = vmatprep.subr.mxu0 0.0
    %1344 = vmatpush1.msra.mxu0 0.0
    %1345 = vmatprep.subr.mxu0 0.0
    %1346 = vmatpush1.msra.mxu0 0.0
    %1347 = vmatprep.subr.mxu0 0.0
    %1348 = vmatpush1.msra.mxu0 0.0
    %1349 = vmatprep.subr.mxu0 0.0
    %1350 = vmatpush1.msra.mxu0 0.0
    %1351 = vmatprep.subr.mxu0 0.0
    %1352 = vmatpush1.msra.mxu0 0.0
    %1353 = vmatprep.subr.mxu0 0.0
    %1354 = vmatpush1.msra.mxu0 0.0
    %1355 = vmatprep.subr.mxu0 0.0
    %1356 = vmatpush1.msra.mxu0 0.0
    %1357 = vmatprep.subr.mxu0 0.0
    %1358 = vmatpush1.msra.mxu0 0.0
    %1359 = vmatprep.subr.mxu0 0.0
    %1360 = vmatpush1.msra.mxu0 0.0
    %1361 = vmatprep.subr.mxu0 0.0
    %1362 = vmatpush1.msra.mxu0 0.0
    %1363 = vmatprep.subr.mxu0 0.0
    %1364 = vmatpush1.msra.mxu0 0.0
    %1365 = vmatprep.subr.mxu0 0.0
    %1366 = vmatpush1.msra.mxu0 0.0
    %1367 = vmatprep.subr.mxu0 0.0
    %1368 = vmatpush1.msra.mxu0 0.0
    %1369 = vmatprep.subr.mxu0 0.0
    %1370 = vmatpush1.msra.mxu0 0.0
    %1371 = vmatprep.mubr.f32.mxu0 0.0
    %1372 = vmatmul.mubr.f32.gmra.mrb[0].mxu0 %v1302
    %v1373 = vpop.f32.mrb[0].mxu0
    %v1374 = vadd.f32 %v1212, %v1373
    %v1375 = vpop.f32.mrb[0].mxu0
    %1376 = vmatprep.mubr.f32.mxu0 0.0
    %1377 = vmatmul.mubr.f32.gmra.mrb[0].mxu0 %v1305
    %v1378 = vpop.f32.mrb[0].mxu0
    %v1379 = vadd.f32 %v1217, %v1378
    %v1380 = vpop.f32.mrb[0].mxu0
    %1381 = vdwg.mxu0
    %v1382 = vmul.f32 %v487, %v235
    %v1383 = vmul.f32 %v492, %v235
    %v1384 = vmul.f32 %v497, %v235
    %v1385 = vmul.f32 %v502, %v235
    %v1387 = vsel %vm245, %v1382, 0
    %v1390 = vsel %vm245, %v1383, 0
    %1392 = vmatprep.subr.mxu0 0.0
    %1393 = vmatpush1.xpose.msra.mxu0 %v1387
    %1394 = vmatprep.subr.mxu0 0.0
    %1395 = vmatpush1.xpose.msra.mxu0 %v1390
    %1396 = vmatprep.subr.mxu0 0.0
    %1397 = vmatpush1.xpose.msra.mxu0 0.0
    %1398 = vmatprep.subr.mxu0 0.0
    %1399 = vmatpush1.xpose.msra.mxu0 0.0
    %1400 = vmatprep.subr.mxu0 0.0
    %1401 = vmatpush1.xpose.msra.mxu0 0.0
    %1402 = vmatprep.subr.mxu0 0.0
    %1403 = vmatpush1.xpose.msra.mxu0 0.0
    %1404 = vmatprep.subr.mxu0 0.0
    %1405 = vmatpush1.xpose.msra.mxu0 0.0
    %1406 = vmatprep.subr.mxu0 0.0
    %1407 = vmatpush1.xpose.msra.mxu0 0.0
    %1408 = vmatprep.subr.mxu0 0.0
    %1409 = vmatpush1.xpose.msra.mxu0 0.0
    %1410 = vmatprep.subr.mxu0 0.0
    %1411 = vmatpush1.xpose.msra.mxu0 0.0
    %1412 = vmatprep.subr.mxu0 0.0
    %1413 = vmatpush1.xpose.msra.mxu0 0.0
    %1414 = vmatprep.subr.mxu0 0.0
    %1415 = vmatpush1.xpose.msra.mxu0 0.0
    %1416 = vmatprep.subr.mxu0 0.0
    %1417 = vmatpush1.xpose.msra.mxu0 0.0
    %1418 = vmatprep.subr.mxu0 0.0
    %1419 = vmatpush1.xpose.msra.mxu0 0.0
    %1420 = vmatprep.subr.mxu0 0.0
    %1421 = vmatpush1.xpose.msra.mxu0 0.0
    %1422 = vmatprep.subr.mxu0 0.0
    %1423 = vmatpush1.xpose.msra.mxu0 0.0
    %1424 = vmatprep.subr.mxu0 0.0
    %1425 = vmatpush1.xpose.msra.mxu0 0.0
    %1426 = vmatprep.subr.mxu0 0.0
    %1427 = vmatpush1.xpose.msra.mxu0 0.0
    %1428 = vmatprep.subr.mxu0 0.0
    %1429 = vmatpush1.xpose.msra.mxu0 0.0
    %1430 = vmatprep.subr.mxu0 0.0
    %1431 = vmatpush1.xpose.msra.mxu0 0.0
    %1432 = vmatprep.subr.mxu0 0.0
    %1433 = vmatpush1.xpose.msra.mxu0 0.0
    %1434 = vmatprep.subr.mxu0 0.0
    %1435 = vmatpush1.xpose.msra.mxu0 0.0
    %1436 = vmatprep.subr.mxu0 0.0
    %1437 = vmatpush1.xpose.msra.mxu0 0.0
    %1438 = vmatprep.subr.mxu0 0.0
    %1439 = vmatpush1.xpose.msra.mxu0 0.0
    %1440 = vmatprep.subr.mxu0 0.0
    %1441 = vmatpush1.xpose.msra.mxu0 0.0
    %1442 = vmatprep.subr.mxu0 0.0
    %1443 = vmatpush1.xpose.msra.mxu0 0.0
    %1444 = vmatprep.subr.mxu0 0.0
    %1445 = vmatpush1.xpose.msra.mxu0 0.0
    %1446 = vmatprep.subr.mxu0 0.0
    %1447 = vmatpush1.xpose.msra.mxu0 0.0
    %1448 = vmatprep.subr.mxu0 0.0
    %1449 = vmatpush1.xpose.msra.mxu0 0.0
    %1450 = vmatprep.subr.mxu0 0.0
    %1451 = vmatpush1.xpose.msra.mxu0 0.0
    %1452 = vmatprep.subr.mxu0 0.0
    %1453 = vmatpush1.xpose.msra.mxu0 0.0
    %1454 = vmatprep.subr.mxu0 0.0
    %1455 = vmatpush1.xpose.msra.mxu0 0.0
    %1456 = vmatprep.mubr.f32.mxu0 0.0
    %1457 = vmatmul.mubr.f32.gmra.mrb[0].mxu0 %v606
    %v1458 = vpop.f32.mrb[0].mxu0
    %v1459 = vadd.f32 0.0, %v1458
    %v1460 = vpop.f32.mrb[0].mxu0
    %1461 = vmatprep.mubr.f32.mxu0 0.0
    %1462 = vmatmul.mubr.f32.gmra.mrb[0].mxu0 %v609
    %v1463 = vpop.f32.mrb[0].mxu0
    %v1464 = vadd.f32 0.0, %v1463
    %v1465 = vpop.f32.mrb[0].mxu0
    %1466 = vdwg.mxu0
    %v1468 = vsel %vm245, %v1384, 0
    %v1471 = vsel %vm245, %v1385, 0
    %1473 = vmatprep.subr.mxu0 0.0
    %1474 = vmatpush1.xpose.msra.mxu0 %v1468
    %1475 = vmatprep.subr.mxu0 0.0
    %1476 = vmatpush1.xpose.msra.mxu0 %v1471
    %1477 = vmatprep.subr.mxu0 0.0
    %1478 = vmatpush1.xpose.msra.mxu0 0.0
    %1479 = vmatprep.subr.mxu0 0.0
    %1480 = vmatpush1.xpose.msra.mxu0 0.0
    %1481 = vmatprep.subr.mxu0 0.0
    %1482 = vmatpush1.xpose.msra.mxu0 0.0
    %1483 = vmatprep.subr.mxu0 0.0
    %1484 = vmatpush1.xpose.msra.mxu0 0.0
    %1485 = vmatprep.subr.mxu0 0.0
    %1486 = vmatpush1.xpose.msra.mxu0 0.0
    %1487 = vmatprep.subr.mxu0 0.0
    %1488 = vmatpush1.xpose.msra.mxu0 0.0
    %1489 = vmatprep.subr.mxu0 0.0
    %1490 = vmatpush1.xpose.msra.mxu0 0.0
    %1491 = vmatprep.subr.mxu0 0.0
    %1492 = vmatpush1.xpose.msra.mxu0 0.0
    %1493 = vmatprep.subr.mxu0 0.0
    %1494 = vmatpush1.xpose.msra.mxu0 0.0
    %1495 = vmatprep.subr.mxu0 0.0
    %1496 = vmatpush1.xpose.msra.mxu0 0.0
    %1497 = vmatprep.subr.mxu0 0.0
    %1498 = vmatpush1.xpose.msra.mxu0 0.0
    %1499 = vmatprep.subr.mxu0 0.0
    %1500 = vmatpush1.xpose.msra.mxu0 0.0
    %1501 = vmatprep.subr.mxu0 0.0
    %1502 = vmatpush1.xpose.msra.mxu0 0.0
    %1503 = vmatprep.subr.mxu0 0.0
    %1504 = vmatpush1.xpose.msra.mxu0 0.0
    %1505 = vmatprep.subr.mxu0 0.0
    %1506 = vmatpush1.xpose.msra.mxu0 0.0
    %1507 = vmatprep.subr.mxu0 0.0
    %1508 = vmatpush1.xpose.msra.mxu0 0.0
    %1509 = vmatprep.subr.mxu0 0.0
    %1510 = vmatpush1.xpose.msra.mxu0 0.0
    %1511 = vmatprep.subr.mxu0 0.0
    %1512 = vmatpush1.xpose.msra.mxu0 0.0
    %1513 = vmatprep.subr.mxu0 0.0
    %1514 = vmatpush1.xpose.msra.mxu0 0.0
    %1515 = vmatprep.subr.mxu0 0.0
    %1516 = vmatpush1.xpose.msra.mxu0 0.0
    %1517 = vmatprep.subr.mxu0 0.0
    %1518 = vmatpush1.xpose.msra.mxu0 0.0
    %1519 = vmatprep.subr.mxu0 0.0
    %1520 = vmatpush1.xpose.msra.mxu0 0.0
    %1521 = vmatprep.subr.mxu0 0.0
    %1522 = vmatpush1.xpose.msra.mxu0 0.0
    %1523 = vmatprep.subr.mxu0 0.0
    %1524 = vmatpush1.xpose.msra.mxu0 0.0
    %1525 = vmatprep.subr.mxu0 0.0
    %1526 = vmatpush1.xpose.msra.mxu0 0.0
    %1527 = vmatprep.subr.mxu0 0.0
    %1528 = vmatpush1.xpose.msra.mxu0 0.0
    %1529 = vmatprep.subr.mxu0 0.0
    %1530 = vmatpush1.xpose.msra.mxu0 0.0
    %1531 = vmatprep.subr.mxu0 0.0
    %1532 = vmatpush1.xpose.msra.mxu0 0.0
    %1533 = vmatprep.subr.mxu0 0.0
    %1534 = vmatpush1.xpose.msra.mxu0 0.0
    %1535 = vmatprep.subr.mxu0 0.0
    %1536 = vmatpush1.xpose.msra.mxu0 0.0
    %1537 = vmatprep.mubr.f32.mxu0 0.0
    %1538 = vmatmul.mubr.f32.gmra.mrb[0].mxu0 %v693
    %v1539 = vpop.f32.mrb[0].mxu0
    %v1540 = vadd.f32 0.0, %v1539
    %v1541 = vpop.f32.mrb[0].mxu0
    %1542 = vmatprep.mubr.f32.mxu0 0.0
    %1543 = vmatmul.mubr.f32.gmra.mrb[0].mxu0 %v696
    %v1544 = vpop.f32.mrb[0].mxu0
    %v1545 = vadd.f32 0.0, %v1544
    %v1546 = vpop.f32.mrb[0].mxu0
    %1547 = vdwg.mxu0
    %v1548 = vmul.f32 %v1459, 0.35355338
    %v1549 = vmul.f32 %v1464, 0.35355338
    %v1550 = vmul.f32 %v1540, 0.35355338
    %v1551 = vmul.f32 %v1545, 0.35355338
    %v1552 = vadd.f32 %v1548, %v242
    %v1553 = vadd.f32 %v1549, %v242
    %v1554 = vadd.f32 %v1550, %v242
    %v1555 = vadd.f32 %v1551, %v242
    %v1556 = vsel %vm787, %v1552, -inf
    %1557 = vmax.xlane.f32.xlu0 %v1556
    %v1558 = vpop.xlane.xlu0 %1557
    %v1559 = vsel %vm787, %v1553, -inf
    %1560 = vmax.xlane.f32.xlu0 %v1559
    %v1561 = vpop.xlane.xlu0 %1560
    %v1562 = vsel %vm787, %v1554, -inf
    %1563 = vmax.xlane.f32.xlu0 %v1562
    %v1564 = vpop.xlane.xlu0 %1563
    %v1565 = vsel %vm787, %v1555, -inf
    %1566 = vmax.xlane.f32.xlu0 %v1565
    %v1567 = vpop.xlane.xlu0 %1566
    %v1568 = vsub.f32 %v1552, %v1558
    %v1569 = vsub.f32 %v1553, %v1561
    %v1570 = vsub.f32 %v1554, %v1564
    %v1571 = vsub.f32 %v1555, %v1567
    %v1572 = vmul.f32 %v1568, 1.442695
    %v1573 = vpow.pop %v1572
    %v1574 = vmul.f32 %v1569, 1.442695
    %v1575 = vpow.pop %v1574
    %v1576 = vmul.f32 %v1570, 1.442695
    %v1577 = vpow.pop %v1576
    %v1578 = vmul.f32 %v1571, 1.442695
    %v1579 = vpow.pop %v1578
    %v1580 = vsel %vm787, %v1573, 0.0
    %1581 = vadd.xlane.f32.xlu0 %v1580
    %v1582 = vpop.xlane.xlu0 %1581
    %v1583 = vsel %vm787, %v1575, 0.0
    %1584 = vadd.xlane.f32.xlu0 %v1583
    %v1585 = vpop.xlane.xlu0 %1584
    %v1586 = vsel %vm787, %v1577, 0.0
    %1587 = vadd.xlane.f32.xlu0 %v1586
    %v1588 = vpop.xlane.xlu0 %1587
    %v1589 = vsel %vm787, %v1579, 0.0
    %1590 = vadd.xlane.f32.xlu0 %v1589
    %v1591 = vpop.xlane.xlu0 %1590
    %v1592 = vrcp.pop %v1582
    %v1593 = vrcp.pop %v1585
    %v1594 = vrcp.pop %v1588
    %v1595 = vrcp.pop %v1591
    %v1596 = vmul.f32 %v1573, %v1592
    %v1597 = vmul.f32 %v1575, %v1593
    %v1598 = vmul.f32 %v1577, %v1594
    %v1599 = vmul.f32 %v1579, %v1595
    %v1600 = vmul.f32 %v583, %v235
    %v1601 = vmul.f32 %v588, %v235
    %v1602 = vmul.f32 %v593, %v235
    %v1603 = vmul.f32 %v598, %v235
    %v1605 = vsel %vm787, %v1596, 0
    %v1608 = vsel %vm787, %v1597, 0
    %1610 = vmatprep.subr.mxu0 0.0
    %1611 = vmatpush1.msra.mxu0 %v1600
    %1612 = vmatprep.subr.mxu0 0.0
    %1613 = vmatpush1.msra.mxu0 %v1601
    %1614 = vmatprep.subr.mxu0 0.0
    %1615 = vmatpush1.msra.mxu0 0.0
    %1616 = vmatprep.subr.mxu0 0.0
    %1617 = vmatpush1.msra.mxu0 0.0
    %1618 = vmatprep.subr.mxu0 0.0
    %1619 = vmatpush1.msra.mxu0 0.0
    %1620 = vmatprep.subr.mxu0 0.0
    %1621 = vmatpush1.msra.mxu0 0.0
    %1622 = vmatprep.subr.mxu0 0.0
    %1623 = vmatpush1.msra.mxu0 0.0
    %1624 = vmatprep.subr.mxu0 0.0
    %1625 = vmatpush1.msra.mxu0 0.0
    %1626 = vmatprep.subr.mxu0 0.0
    %1627 = vmatpush1.msra.mxu0 0.0
    %1628 = vmatprep.subr.mxu0 0.0
    %1629 = vmatpush1.msra.mxu0 0.0
    %1630 = vmatprep.subr.mxu0 0.0
    %1631 = vmatpush1.msra.mxu0 0.0
    %1632 = vmatprep.subr.mxu0 0.0
    %1633 = vmatpush1.msra.mxu0 0.0
    %1634 = vmatprep.subr.mxu0 0.0
    %1635 = vmatpush1.msra.mxu0 0.0
    %1636 = vmatprep.subr.mxu0 0.0
    %1637 = vmatpush1.msra.mxu0 0.0
    %1638 = vmatprep.subr.mxu0 0.0
    %1639 = vmatpush1.msra.mxu0 0.0
    %1640 = vmatprep.subr.mxu0 0.0
    %1641 = vmatpush1.msra.mxu0 0.0
    %1642 = vmatprep.subr.mxu0 0.0
    %1643 = vmatpush1.msra.mxu0 0.0
    %1644 = vmatprep.subr.mxu0 0.0
    %1645 = vmatpush1.msra.mxu0 0.0
    %1646 = vmatprep.subr.mxu0 0.0
    %1647 = vmatpush1.msra.mxu0 0.0
    %1648 = vmatprep.subr.mxu0 0.0
    %1649 = vmatpush1.msra.mxu0 0.0
    %1650 = vmatprep.subr.mxu0 0.0
    %1651 = vmatpush1.msra.mxu0 0.0
    %1652 = vmatprep.subr.mxu0 0.0
    %1653 = vmatpush1.msra.mxu0 0.0
    %1654 = vmatprep.subr.mxu0 0.0
    %1655 = vmatpush1.msra.mxu0 0.0
    %1656 = vmatprep.subr.mxu0 0.0
    %1657 = vmatpush1.msra.mxu0 0.0
    %1658 = vmatprep.subr.mxu0 0.0
    %1659 = vmatpush1.msra.mxu0 0.0
    %1660 = vmatprep.subr.mxu0 0.0
    %1661 = vmatpush1.msra.mxu0 0.0
    %1662 = vmatprep.subr.mxu0 0.0
    %1663 = vmatpush1.msra.mxu0 0.0
    %1664 = vmatprep.subr.mxu0 0.0
    %1665 = vmatpush1.msra.mxu0 0.0
    %1666 = vmatprep.subr.mxu0 0.0
    %1667 = vmatpush1.msra.mxu0 0.0
    %1668 = vmatprep.subr.mxu0 0.0
    %1669 = vmatpush1.msra.mxu0 0.0
    %1670 = vmatprep.subr.mxu0 0.0
    %1671 = vmatpush1.msra.mxu0 0.0
    %1672 = vmatprep.subr.mxu0 0.0
    %1673 = vmatpush1.msra.mxu0 0.0
    %1674 = vmatprep.mubr.f32.mxu0 0.0
    %1675 = vmatmul.mubr.f32.gmra.mrb[0].mxu0 %v1605
    %v1676 = vpop.f32.mrb[0].mxu0
    %v1677 = vadd.f32 0.0, %v1676
    %v1678 = vpop.f32.mrb[0].mxu0
    %1679 = vmatprep.mubr.f32.mxu0 0.0
    %1680 = vmatmul.mubr.f32.gmra.mrb[0].mxu0 %v1608
    %v1681 = vpop.f32.mrb[0].mxu0
    %v1682 = vadd.f32 0.0, %v1681
    %v1683 = vpop.f32.mrb[0].mxu0
    %1684 = vdwg.mxu0
    %v1686 = vsel %vm787, %v1598, 0
    %v1689 = vsel %vm787, %v1599, 0
    %1691 = vmatprep.subr.mxu0 0.0
    %1692 = vmatpush1.msra.mxu0 %v1602
    %1693 = vmatprep.subr.mxu0 0.0
    %1694 = vmatpush1.msra.mxu0 %v1603
    %1695 = vmatprep.subr.mxu0 0.0
    %1696 = vmatpush1.msra.mxu0 0.0
    %1697 = vmatprep.subr.mxu0 0.0
    %1698 = vmatpush1.msra.mxu0 0.0
    %1699 = vmatprep.subr.mxu0 0.0
    %1700 = vmatpush1.msra.mxu0 0.0
    %1701 = vmatprep.subr.mxu0 0.0
    %1702 = vmatpush1.msra.mxu0 0.0
    %1703 = vmatprep.subr.mxu0 0.0
    %1704 = vmatpush1.msra.mxu0 0.0
    %1705 = vmatprep.subr.mxu0 0.0
    %1706 = vmatpush1.msra.mxu0 0.0
    %1707 = vmatprep.subr.mxu0 0.0
    %1708 = vmatpush1.msra.mxu0 0.0
    %1709 = vmatprep.subr.mxu0 0.0
    %1710 = vmatpush1.msra.mxu0 0.0
    %1711 = vmatprep.subr.mxu0 0.0
    %1712 = vmatpush1.msra.mxu0 0.0
    %1713 = vmatprep.subr.mxu0 0.0
    %1714 = vmatpush1.msra.mxu0 0.0
    %1715 = vmatprep.subr.mxu0 0.0
    %1716 = vmatpush1.msra.mxu0 0.0
    %1717 = vmatprep.subr.mxu0 0.0
    %1718 = vmatpush1.msra.mxu0 0.0
    %1719 = vmatprep.subr.mxu0 0.0
    %1720 = vmatpush1.msra.mxu0 0.0
    %1721 = vmatprep.subr.mxu0 0.0
    %1722 = vmatpush1.msra.mxu0 0.0
    %1723 = vmatprep.subr.mxu0 0.0
    %1724 = vmatpush1.msra.mxu0 0.0
    %1725 = vmatprep.subr.mxu0 0.0
    %1726 = vmatpush1.msra.mxu0 0.0
    %1727 = vmatprep.subr.mxu0 0.0
    %1728 = vmatpush1.msra.mxu0 0.0
    %1729 = vmatprep.subr.mxu0 0.0
    %1730 = vmatpush1.msra.mxu0 0.0
    %1731 = vmatprep.subr.mxu0 0.0
    %1732 = vmatpush1.msra.mxu0 0.0
    %1733 = vmatprep.subr.mxu0 0.0
    %1734 = vmatpush1.msra.mxu0 0.0
    %1735 = vmatprep.subr.mxu0 0.0
    %1736 = vmatpush1.msra.mxu0 0.0
    %1737 = vmatprep.subr.mxu0 0.0
    %1738 = vmatpush1.msra.mxu0 0.0
    %1739 = vmatprep.subr.mxu0 0.0
    %1740 = vmatpush1.msra.mxu0 0.0
    %1741 = vmatprep.subr.mxu0 0.0
    %1742 = vmatpush1.msra.mxu0 0.0
    %1743 = vmatprep.subr.mxu0 0.0
    %1744 = vmatpush1.msra.mxu0 0.0
    %1745 = vmatprep.subr.mxu0 0.0
    %1746 = vmatpush1.msra.mxu0 0.0
    %1747 = vmatprep.subr.mxu0 0.0
    %1748 = vmatpush1.msra.mxu0 0.0
    %1749 = vmatprep.subr.mxu0 0.0
    %1750 = vmatpush1.msra.mxu0 0.0
    %1751 = vmatprep.subr.mxu0 0.0
    %1752 = vmatpush1.msra.mxu0 0.0
    %1753 = vmatprep.subr.mxu0 0.0
    %1754 = vmatpush1.msra.mxu0 0.0
    %1755 = vmatprep.mubr.f32.mxu0 0.0
    %1756 = vmatmul.mubr.f32.gmra.mrb[0].mxu0 %v1686
    %v1757 = vpop.f32.mrb[0].mxu0
    %v1758 = vadd.f32 0.0, %v1757
    %v1759 = vpop.f32.mrb[0].mxu0
    %1760 = vmatprep.mubr.f32.mxu0 0.0
    %1761 = vmatmul.mubr.f32.gmra.mrb[0].mxu0 %v1689
    %v1762 = vpop.f32.mrb[0].mxu0
    %v1763 = vadd.f32 0.0, %v1762
    %v1764 = vpop.f32.mrb[0].mxu0
    %1765 = vdwg.mxu0
    %v1766 = vadd.f32 %v1293, %v1677
    %v1767 = vadd.f32 %v1298, %v1682
    %v1768 = vadd.f32 %v1374, %v1758
    %v1769 = vadd.f32 %v1379, %v1763
    %v1770 = vmul.f32 %v487, %v240
    %v1771 = vmul.f32 %v492, %v240
    %v1772 = vmul.f32 %v497, %v240
    %v1773 = vmul.f32 %v502, %v240
    %v1775 = vsel %vm245, %v1770, 0
    %v1778 = vsel %vm245, %v1771, 0
    %1780 = vmatprep.subr.mxu0 0.0
    %1781 = vmatpush1.xpose.msra.mxu0 %v1775
    %1782 = vmatprep.subr.mxu0 0.0
    %1783 = vmatpush1.xpose.msra.mxu0 %v1778
    %1784 = vmatprep.subr.mxu0 0.0
    %1785 = vmatpush1.xpose.msra.mxu0 0.0
    %1786 = vmatprep.subr.mxu0 0.0
    %1787 = vmatpush1.xpose.msra.mxu0 0.0
    %1788 = vmatprep.subr.mxu0 0.0
    %1789 = vmatpush1.xpose.msra.mxu0 0.0
    %1790 = vmatprep.subr.mxu0 0.0
    %1791 = vmatpush1.xpose.msra.mxu0 0.0
    %1792 = vmatprep.subr.mxu0 0.0
    %1793 = vmatpush1.xpose.msra.mxu0 0.0
    %1794 = vmatprep.subr.mxu0 0.0
    %1795 = vmatpush1.xpose.msra.mxu0 0.0
    %1796 = vmatprep.subr.mxu0 0.0
    %1797 = vmatpush1.xpose.msra.mxu0 0.0
    %1798 = vmatprep.subr.mxu0 0.0
    %1799 = vmatpush1.xpose.msra.mxu0 0.0
    %1800 = vmatprep.subr.mxu0 0.0
    %1801 = vmatpush1.xpose.msra.mxu0 0.0
    %1802 = vmatprep.subr.mxu0 0.0
    %1803 = vmatpush1.xpose.msra.mxu0 0.0
    %1804 = vmatprep.subr.mxu0 0.0
    %1805 = vmatpush1.xpose.msra.mxu0 0.0
    %1806 = vmatprep.subr.mxu0 0.0
    %1807 = vmatpush1.xpose.msra.mxu0 0.0
    %1808 = vmatprep.subr.mxu0 0.0
    %1809 = vmatpush1.xpose.msra.mxu0 0.0
    %1810 = vmatprep.subr.mxu0 0.0
    %1811 = vmatpush1.xpose.msra.mxu0 0.0
    %1812 = vmatprep.subr.mxu0 0.0
    %1813 = vmatpush1.xpose.msra.mxu0 0.0
    %1814 = vmatprep.subr.mxu0 0.0
    %1815 = vmatpush1.xpose.msra.mxu0 0.0
    %1816 = vmatprep.subr.mxu0 0.0
    %1817 = vmatpush1.xpose.msra.mxu0 0.0
    %1818 = vmatprep.subr.mxu0 0.0
    %1819 = vmatpush1.xpose.msra.mxu0 0.0
    %1820 = vmatprep.subr.mxu0 0.0
    %1821 = vmatpush1.xpose.msra.mxu0 0.0
    %1822 = vmatprep.subr.mxu0 0.0
    %1823 = vmatpush1.xpose.msra.mxu0 0.0
    %1824 = vmatprep.subr.mxu0 0.0
    %1825 = vmatpush1.xpose.msra.mxu0 0.0
    %1826 = vmatprep.subr.mxu0 0.0
    %1827 = vmatpush1.xpose.msra.mxu0 0.0
    %1828 = vmatprep.subr.mxu0 0.0
    %1829 = vmatpush1.xpose.msra.mxu0 0.0
    %1830 = vmatprep.subr.mxu0 0.0
    %1831 = vmatpush1.xpose.msra.mxu0 0.0
    %1832 = vmatprep.subr.mxu0 0.0
    %1833 = vmatpush1.xpose.msra.mxu0 0.0
    %1834 = vmatprep.subr.mxu0 0.0
    %1835 = vmatpush1.xpose.msra.mxu0 0.0
    %1836 = vmatprep.subr.mxu0 0.0
    %1837 = vmatpush1.xpose.msra.mxu0 0.0
    %1838 = vmatprep.subr.mxu0 0.0
    %1839 = vmatpush1.xpose.msra.mxu0 0.0
    %1840 = vmatprep.subr.mxu0 0.0
    %1841 = vmatpush1.xpose.msra.mxu0 0.0
    %1842 = vmatprep.subr.mxu0 0.0
    %1843 = vmatpush1.xpose.msra.mxu0 0.0
    %1844 = vmatprep.mubr.f32.mxu0 0.0
    %1845 = vmatmul.mubr.f32.gmra.mrb[0].mxu0 %v606
    %v1846 = vpop.f32.mrb[0].mxu0
    %v1847 = vadd.f32 0.0, %v1846
    %v1848 = vpop.f32.mrb[0].mxu0
    %1849 = vmatprep.mubr.f32.mxu0 0.0
    %1850 = vmatmul.mubr.f32.gmra.mrb[0].mxu0 %v609
    %v1851 = vpop.f32.mrb[0].mxu0
    %v1852 = vadd.f32 0.0, %v1851
    %v1853 = vpop.f32.mrb[0].mxu0
    %1854 = vdwg.mxu0
    %v1856 = vsel %vm245, %v1772, 0
    %v1859 = vsel %vm245, %v1773, 0
    %1861 = vmatprep.subr.mxu0 0.0
    %1862 = vmatpush1.xpose.msra.mxu0 %v1856
    %1863 = vmatprep.subr.mxu0 0.0
    %1864 = vmatpush1.xpose.msra.mxu0 %v1859
    %1865 = vmatprep.subr.mxu0 0.0
    %1866 = vmatpush1.xpose.msra.mxu0 0.0
    %1867 = vmatprep.subr.mxu0 0.0
    %1868 = vmatpush1.xpose.msra.mxu0 0.0
    %1869 = vmatprep.subr.mxu0 0.0
    %1870 = vmatpush1.xpose.msra.mxu0 0.0
    %1871 = vmatprep.subr.mxu0 0.0
    %1872 = vmatpush1.xpose.msra.mxu0 0.0
    %1873 = vmatprep.subr.mxu0 0.0
    %1874 = vmatpush1.xpose.msra.mxu0 0.0
    %1875 = vmatprep.subr.mxu0 0.0
    %1876 = vmatpush1.xpose.msra.mxu0 0.0
    %1877 = vmatprep.subr.mxu0 0.0
    %1878 = vmatpush1.xpose.msra.mxu0 0.0
    %1879 = vmatprep.subr.mxu0 0.0
    %1880 = vmatpush1.xpose.msra.mxu0 0.0
    %1881 = vmatprep.subr.mxu0 0.0
    %1882 = vmatpush1.xpose.msra.mxu0 0.0
    %1883 = vmatprep.subr.mxu0 0.0
    %1884 = vmatpush1.xpose.msra.mxu0 0.0
    %1885 = vmatprep.subr.mxu0 0.0
    %1886 = vmatpush1.xpose.msra.mxu0 0.0
    %1887 = vmatprep.subr.mxu0 0.0
    %1888 = vmatpush1.xpose.msra.mxu0 0.0
    %1889 = vmatprep.subr.mxu0 0.0
    %1890 = vmatpush1.xpose.msra.mxu0 0.0
    %1891 = vmatprep.subr.mxu0 0.0
    %1892 = vmatpush1.xpose.msra.mxu0 0.0
    %1893 = vmatprep.subr.mxu0 0.0
    %1894 = vmatpush1.xpose.msra.mxu0 0.0
    %1895 = vmatprep.subr.mxu0 0.0
    %1896 = vmatpush1.xpose.msra.mxu0 0.0
    %1897 = vmatprep.subr.mxu0 0.0
    %1898 = vmatpush1.xpose.msra.mxu0 0.0
    %1899 = vmatprep.subr.mxu0 0.0
    %1900 = vmatpush1.xpose.msra.mxu0 0.0
    %1901 = vmatprep.subr.mxu0 0.0
    %1902 = vmatpush1.xpose.msra.mxu0 0.0
    %1903 = vmatprep.subr.mxu0 0.0
    %1904 = vmatpush1.xpose.msra.mxu0 0.0
    %1905 = vmatprep.subr.mxu0 0.0
    %1906 = vmatpush1.xpose.msra.mxu0 0.0
    %1907 = vmatprep.subr.mxu0 0.0
    %1908 = vmatpush1.xpose.msra.mxu0 0.0
    %1909 = vmatprep.subr.mxu0 0.0
    %1910 = vmatpush1.xpose.msra.mxu0 0.0
    %1911 = vmatprep.subr.mxu0 0.0
    %1912 = vmatpush1.xpose.msra.mxu0 0.0
    %1913 = vmatprep.subr.mxu0 0.0
    %1914 = vmatpush1.xpose.msra.mxu0 0.0
    %1915 = vmatprep.subr.mxu0 0.0
    %1916 = vmatpush1.xpose.msra.mxu0 0.0
    %1917 = vmatprep.subr.mxu0 0.0
    %1918 = vmatpush1.xpose.msra.mxu0 0.0
    %1919 = vmatprep.subr.mxu0 0.0
    %1920 = vmatpush1.xpose.msra.mxu0 0.0
    %1921 = vmatprep.subr.mxu0 0.0
    %1922 = vmatpush1.xpose.msra.mxu0 0.0
    %1923 = vmatprep.subr.mxu0 0.0
    %1924 = vmatpush1.xpose.msra.mxu0 0.0
    %1925 = vmatprep.mubr.f32.mxu0 0.0
    %1926 = vmatmul.mubr.f32.gmra.mrb[0].mxu0 %v693
    %v1927 = vpop.f32.mrb[0].mxu0
    %v1928 = vadd.f32 0.0, %v1927
    %v1929 = vpop.f32.mrb[0].mxu0
    %1930 = vmatprep.mubr.f32.mxu0 0.0
    %1931 = vmatmul.mubr.f32.gmra.mrb[0].mxu0 %v696
    %v1932 = vpop.f32.mrb[0].mxu0
    %v1933 = vadd.f32 0.0, %v1932
    %v1934 = vpop.f32.mrb[0].mxu0
    %1935 = vdwg.mxu0
    %v1936 = vmul.f32 %v1847, 0.35355338
    %v1937 = vmul.f32 %v1852, 0.35355338
    %v1938 = vmul.f32 %v1928, 0.35355338
    %v1939 = vmul.f32 %v1933, 0.35355338
    %v1940 = vadd.f32 %v1936, %v242
    %v1941 = vadd.f32 %v1937, %v242
    %v1942 = vadd.f32 %v1938, %v242
    %v1943 = vadd.f32 %v1939, %v242
    %v1944 = vsel %vm787, %v1940, -inf
    %1945 = vmax.xlane.f32.xlu0 %v1944
    %v1946 = vpop.xlane.xlu0 %1945
    %v1947 = vsel %vm787, %v1941, -inf
    %1948 = vmax.xlane.f32.xlu0 %v1947
    %v1949 = vpop.xlane.xlu0 %1948
    %v1950 = vsel %vm787, %v1942, -inf
    %1951 = vmax.xlane.f32.xlu0 %v1950
    %v1952 = vpop.xlane.xlu0 %1951
    %v1953 = vsel %vm787, %v1943, -inf
    %1954 = vmax.xlane.f32.xlu0 %v1953
    %v1955 = vpop.xlane.xlu0 %1954
    %v1956 = vsub.f32 %v1940, %v1946
    %v1957 = vsub.f32 %v1941, %v1949
    %v1958 = vsub.f32 %v1942, %v1952
    %v1959 = vsub.f32 %v1943, %v1955
    %v1960 = vmul.f32 %v1956, 1.442695
    %v1961 = vpow.pop %v1960
    %v1962 = vmul.f32 %v1957, 1.442695
    %v1963 = vpow.pop %v1962
    %v1964 = vmul.f32 %v1958, 1.442695
    %v1965 = vpow.pop %v1964
    %v1966 = vmul.f32 %v1959, 1.442695
    %v1967 = vpow.pop %v1966
    %v1968 = vsel %vm787, %v1961, 0.0
    %1969 = vadd.xlane.f32.xlu0 %v1968
    %v1970 = vpop.xlane.xlu0 %1969
    %v1971 = vsel %vm787, %v1963, 0.0
    %1972 = vadd.xlane.f32.xlu0 %v1971
    %v1973 = vpop.xlane.xlu0 %1972
    %v1974 = vsel %vm787, %v1965, 0.0
    %1975 = vadd.xlane.f32.xlu0 %v1974
    %v1976 = vpop.xlane.xlu0 %1975
    %v1977 = vsel %vm787, %v1967, 0.0
    %1978 = vadd.xlane.f32.xlu0 %v1977
    %v1979 = vpop.xlane.xlu0 %1978
    %v1980 = vrcp.pop %v1970
    %v1981 = vrcp.pop %v1973
    %v1982 = vrcp.pop %v1976
    %v1983 = vrcp.pop %v1979
    %v1984 = vmul.f32 %v1961, %v1980
    %v1985 = vmul.f32 %v1963, %v1981
    %v1986 = vmul.f32 %v1965, %v1982
    %v1987 = vmul.f32 %v1967, %v1983
    %v1988 = vmul.f32 %v583, %v240
    %v1989 = vmul.f32 %v588, %v240
    %v1990 = vmul.f32 %v593, %v240
    %v1991 = vmul.f32 %v598, %v240
    %v1993 = vsel %vm787, %v1984, 0
    %v1996 = vsel %vm787, %v1985, 0
    %1998 = vmatprep.subr.mxu0 0.0
    %1999 = vmatpush1.msra.mxu0 %v1988
    %2000 = vmatprep.subr.mxu0 0.0
    %2001 = vmatpush1.msra.mxu0 %v1989
    %2002 = vmatprep.subr.mxu0 0.0
    %2003 = vmatpush1.msra.mxu0 0.0
    %2004 = vmatprep.subr.mxu0 0.0
    %2005 = vmatpush1.msra.mxu0 0.0
    %2006 = vmatprep.subr.mxu0 0.0
    %2007 = vmatpush1.msra.mxu0 0.0
    %2008 = vmatprep.subr.mxu0 0.0
    %2009 = vmatpush1.msra.mxu0 0.0
    %2010 = vmatprep.subr.mxu0 0.0
    %2011 = vmatpush1.msra.mxu0 0.0
    %2012 = vmatprep.subr.mxu0 0.0
    %2013 = vmatpush1.msra.mxu0 0.0
    %2014 = vmatprep.subr.mxu0 0.0
    %2015 = vmatpush1.msra.mxu0 0.0
    %2016 = vmatprep.subr.mxu0 0.0
    %2017 = vmatpush1.msra.mxu0 0.0
    %2018 = vmatprep.subr.mxu0 0.0
    %2019 = vmatpush1.msra.mxu0 0.0
    %2020 = vmatprep.subr.mxu0 0.0
    %2021 = vmatpush1.msra.mxu0 0.0
    %2022 = vmatprep.subr.mxu0 0.0
    %2023 = vmatpush1.msra.mxu0 0.0
    %2024 = vmatprep.subr.mxu0 0.0
    %2025 = vmatpush1.msra.mxu0 0.0
    %2026 = vmatprep.subr.mxu0 0.0
    %2027 = vmatpush1.msra.mxu0 0.0
    %2028 = vmatprep.subr.mxu0 0.0
    %2029 = vmatpush1.msra.mxu0 0.0
    %2030 = vmatprep.subr.mxu0 0.0
    %2031 = vmatpush1.msra.mxu0 0.0
    %2032 = vmatprep.subr.mxu0 0.0
    %2033 = vmatpush1.msra.mxu0 0.0
    %2034 = vmatprep.subr.mxu0 0.0
    %2035 = vmatpush1.msra.mxu0 0.0
    %2036 = vmatprep.subr.mxu0 0.0
    %2037 = vmatpush1.msra.mxu0 0.0
    %2038 = vmatprep.subr.mxu0 0.0
    %2039 = vmatpush1.msra.mxu0 0.0
    %2040 = vmatprep.subr.mxu0 0.0
    %2041 = vmatpush1.msra.mxu0 0.0
    %2042 = vmatprep.subr.mxu0 0.0
    %2043 = vmatpush1.msra.mxu0 0.0
    %2044 = vmatprep.subr.mxu0 0.0
    %2045 = vmatpush1.msra.mxu0 0.0
    %2046 = vmatprep.subr.mxu0 0.0
    %2047 = vmatpush1.msra.mxu0 0.0
    %2048 = vmatprep.subr.mxu0 0.0
    %2049 = vmatpush1.msra.mxu0 0.0
    %2050 = vmatprep.subr.mxu0 0.0
    %2051 = vmatpush1.msra.mxu0 0.0
    %2052 = vmatprep.subr.mxu0 0.0
    %2053 = vmatpush1.msra.mxu0 0.0
    %2054 = vmatprep.subr.mxu0 0.0
    %2055 = vmatpush1.msra.mxu0 0.0
    %2056 = vmatprep.subr.mxu0 0.0
    %2057 = vmatpush1.msra.mxu0 0.0
    %2058 = vmatprep.subr.mxu0 0.0
    %2059 = vmatpush1.msra.mxu0 0.0
    %2060 = vmatprep.subr.mxu0 0.0
    %2061 = vmatpush1.msra.mxu0 0.0
    %2062 = vmatprep.mubr.f32.mxu0 0.0
    %2063 = vmatmul.mubr.f32.gmra.mrb[0].mxu0 %v1993
    %v2064 = vpop.f32.mrb[0].mxu0
    %v2065 = vadd.f32 0.0, %v2064
    %v2066 = vpop.f32.mrb[0].mxu0
    %2067 = vmatprep.mubr.f32.mxu0 0.0
    %2068 = vmatmul.mubr.f32.gmra.mrb[0].mxu0 %v1996
    %v2069 = vpop.f32.mrb[0].mxu0
    %v2070 = vadd.f32 0.0, %v2069
    %v2071 = vpop.f32.mrb[0].mxu0
    %2072 = vdwg.mxu0
    %v2074 = vsel %vm787, %v1986, 0
    %v2077 = vsel %vm787, %v1987, 0
    %2079 = vmatprep.subr.mxu0 0.0
    %2080 = vmatpush1.msra.mxu0 %v1990
    %2081 = vmatprep.subr.mxu0 0.0
    %2082 = vmatpush1.msra.mxu0 %v1991
    %2083 = vmatprep.subr.mxu0 0.0
    %2084 = vmatpush1.msra.mxu0 0.0
    %2085 = vmatprep.subr.mxu0 0.0
    %2086 = vmatpush1.msra.mxu0 0.0
    %2087 = vmatprep.subr.mxu0 0.0
    %2088 = vmatpush1.msra.mxu0 0.0
    %2089 = vmatprep.subr.mxu0 0.0
    %2090 = vmatpush1.msra.mxu0 0.0
    %2091 = vmatprep.subr.mxu0 0.0
    %2092 = vmatpush1.msra.mxu0 0.0
    %2093 = vmatprep.subr.mxu0 0.0
    %2094 = vmatpush1.msra.mxu0 0.0
    %2095 = vmatprep.subr.mxu0 0.0
    %2096 = vmatpush1.msra.mxu0 0.0
    %2097 = vmatprep.subr.mxu0 0.0
    %2098 = vmatpush1.msra.mxu0 0.0
    %2099 = vmatprep.subr.mxu0 0.0
    %2100 = vmatpush1.msra.mxu0 0.0
    %2101 = vmatprep.subr.mxu0 0.0
    %2102 = vmatpush1.msra.mxu0 0.0
    %2103 = vmatprep.subr.mxu0 0.0
    %2104 = vmatpush1.msra.mxu0 0.0
    %2105 = vmatprep.subr.mxu0 0.0
    %2106 = vmatpush1.msra.mxu0 0.0
    %2107 = vmatprep.subr.mxu0 0.0
    %2108 = vmatpush1.msra.mxu0 0.0
    %2109 = vmatprep.subr.mxu0 0.0
    %2110 = vmatpush1.msra.mxu0 0.0
    %2111 = vmatprep.subr.mxu0 0.0
    %2112 = vmatpush1.msra.mxu0 0.0
    %2113 = vmatprep.subr.mxu0 0.0
    %2114 = vmatpush1.msra.mxu0 0.0
    %2115 = vmatprep.subr.mxu0 0.0
    %2116 = vmatpush1.msra.mxu0 0.0
    %2117 = vmatprep.subr.mxu0 0.0
    %2118 = vmatpush1.msra.mxu0 0.0
    %2119 = vmatprep.subr.mxu0 0.0
    %2120 = vmatpush1.msra.mxu0 0.0
    %2121 = vmatprep.subr.mxu0 0.0
    %2122 = vmatpush1.msra.mxu0 0.0
    %2123 = vmatprep.subr.mxu0 0.0
    %2124 = vmatpush1.msra.mxu0 0.0
    %2125 = vmatprep.subr.mxu0 0.0
    %2126 = vmatpush1.msra.mxu0 0.0
    %2127 = vmatprep.subr.mxu0 0.0
    %2128 = vmatpush1.msra.mxu0 0.0
    %2129 = vmatprep.subr.mxu0 0.0
    %2130 = vmatpush1.msra.mxu0 0.0
    %2131 = vmatprep.subr.mxu0 0.0
    %2132 = vmatpush1.msra.mxu0 0.0
    %2133 = vmatprep.subr.mxu0 0.0
    %2134 = vmatpush1.msra.mxu0 0.0
    %2135 = vmatprep.subr.mxu0 0.0
    %2136 = vmatpush1.msra.mxu0 0.0
    %2137 = vmatprep.subr.mxu0 0.0
    %2138 = vmatpush1.msra.mxu0 0.0
    %2139 = vmatprep.subr.mxu0 0.0
    %2140 = vmatpush1.msra.mxu0 0.0
    %2141 = vmatprep.subr.mxu0 0.0
    %2142 = vmatpush1.msra.mxu0 0.0
    %2143 = vmatprep.mubr.f32.mxu0 0.0
    %2144 = vmatmul.mubr.f32.gmra.mrb[0].mxu0 %v2074
    %v2145 = vpop.f32.mrb[0].mxu0
    %v2146 = vadd.f32 0.0, %v2145
    %v2147 = vpop.f32.mrb[0].mxu0
    %2148 = vmatprep.mubr.f32.mxu0 0.0
    %2149 = vmatmul.mubr.f32.gmra.mrb[0].mxu0 %v2077
    %v2150 = vpop.f32.mrb[0].mxu0
    %v2151 = vadd.f32 0.0, %v2150
    %v2152 = vpop.f32.mrb[0].mxu0
    %2153 = vdwg.mxu0
    %v2154 = vadd.f32 %v1766, %v2065
    %v2155 = vadd.f32 %v1767, %v2070
    %v2156 = vadd.f32 %v1768, %v2146
    %v2157 = vadd.f32 %v1769, %v2151
    %v2158 = vld [vmem:[%s13] sm:$0xff]
    %v2159 = vld [vmem:[%s13 + $0x8] sm:$0xff]
    %v2160 = vld [vmem:[%s13 + $0x10] sm:$0xff]
    %v2161 = vld [vmem:[%s13 + $0x18] sm:$0xff]
    %v2162 = vld [vmem:[%s14] sm:$0x1]
    %v2164 = vlaneseq
    %v2165 = vshrl.u32 %v2164, 7
    %v2166 = vsub.s32 0, %v2165
    %v2167 = vrot.slane %v2162, %v2166
    %v2170 = vsel %vm245, %v2154, 0
    %v2173 = vsel %vm245, %v2155, 0
    %v2176 = vsel %vm245, %v2156, 0
    %v2179 = vsel %vm245, %v2157, 0
    %2181 = vmatprep.subr.mxu0 0.0
    %2182 = vmatpush1.msra.mxu0 %v2158
    %2183 = vmatprep.subr.mxu0 0.0
    %2184 = vmatpush1.msra.mxu0 %v2159
    %2185 = vmatprep.subr.mxu0 0.0
    %2186 = vmatpush1.msra.mxu0 %v2160
    %2187 = vmatprep.subr.mxu0 0.0
    %2188 = vmatpush1.msra.mxu0 %v2161
    %2189 = vmatprep.subr.mxu0 0.0
    %2190 = vmatpush1.msra.mxu0 0.0
    %2191 = vmatprep.subr.mxu0 0.0
    %2192 = vmatpush1.msra.mxu0 0.0
    %2193 = vmatprep.subr.mxu0 0.0
    %2194 = vmatpush1.msra.mxu0 0.0
    %2195 = vmatprep.subr.mxu0 0.0
    %2196 = vmatpush1.msra.mxu0 0.0
    %2197 = vmatprep.subr.mxu0 0.0
    %2198 = vmatpush1.msra.mxu0 0.0
    %2199 = vmatprep.subr.mxu0 0.0
    %2200 = vmatpush1.msra.mxu0 0.0
    %2201 = vmatprep.subr.mxu0 0.0
    %2202 = vmatpush1.msra.mxu0 0.0
    %2203 = vmatprep.subr.mxu0 0.0
    %2204 = vmatpush1.msra.mxu0 0.0
    %2205 = vmatprep.subr.mxu0 0.0
    %2206 = vmatpush1.msra.mxu0 0.0
    %2207 = vmatprep.subr.mxu0 0.0
    %2208 = vmatpush1.msra.mxu0 0.0
    %2209 = vmatprep.subr.mxu0 0.0
    %2210 = vmatpush1.msra.mxu0 0.0
    %2211 = vmatprep.subr.mxu0 0.0
    %2212 = vmatpush1.msra.mxu0 0.0
    %2213 = vmatprep.subr.mxu0 0.0
    %2214 = vmatpush1.msra.mxu0 0.0
    %2215 = vmatprep.subr.mxu0 0.0
    %2216 = vmatpush1.msra.mxu0 0.0
    %2217 = vmatprep.subr.mxu0 0.0
    %2218 = vmatpush1.msra.mxu0 0.0
    %2219 = vmatprep.subr.mxu0 0.0
    %2220 = vmatpush1.msra.mxu0 0.0
    %2221 = vmatprep.subr.mxu0 0.0
    %2222 = vmatpush1.msra.mxu0 0.0
    %2223 = vmatprep.subr.mxu0 0.0
    %2224 = vmatpush1.msra.mxu0 0.0
    %2225 = vmatprep.subr.mxu0 0.0
    %2226 = vmatpush1.msra.mxu0 0.0
    %2227 = vmatprep.subr.mxu0 0.0
    %2228 = vmatpush1.msra.mxu0 0.0
    %2229 = vmatprep.subr.mxu0 0.0
    %2230 = vmatpush1.msra.mxu0 0.0
    %2231 = vmatprep.subr.mxu0 0.0
    %2232 = vmatpush1.msra.mxu0 0.0
    %2233 = vmatprep.subr.mxu0 0.0
    %2234 = vmatpush1.msra.mxu0 0.0
    %2235 = vmatprep.subr.mxu0 0.0
    %2236 = vmatpush1.msra.mxu0 0.0
    %2237 = vmatprep.subr.mxu0 0.0
    %2238 = vmatpush1.msra.mxu0 0.0
    %2239 = vmatprep.subr.mxu0 0.0
    %2240 = vmatpush1.msra.mxu0 0.0
    %2241 = vmatprep.subr.mxu0 0.0
    %2242 = vmatpush1.msra.mxu0 0.0
    %2243 = vmatprep.subr.mxu0 0.0
    %2244 = vmatpush1.msra.mxu0 0.0
    %2245 = vmatprep.mubr.f32.mxu0 0.0
    %2246 = vmatmul.mubr.f32.gmra.mrb[0].mxu0 %v2170
    %v2247 = vpop.f32.mrb[0].mxu0
    %v2248 = vadd.f32 %v2167, %v2247
    %v2249 = vpop.f32.mrb[0].mxu0
    %2250 = vmatprep.mubr.f32.mxu0 0.0
    %2251 = vmatmul.mubr.f32.gmra.mrb[0].mxu0 %v2173
    %v2252 = vpop.f32.mrb[0].mxu0
    %v2253 = vadd.f32 %v2167, %v2252
    %v2254 = vpop.f32.mrb[0].mxu0
    %2255 = vmatprep.mubr.f32.mxu0 0.0
    %2256 = vmatmul.mubr.f32.gmra.mrb[0].mxu0 %v2176
    %v2257 = vpop.f32.mrb[0].mxu0
    %v2258 = vadd.f32 %v2167, %v2257
    %v2259 = vpop.f32.mrb[0].mxu0
    %2260 = vmatprep.mubr.f32.mxu0 0.0
    %2261 = vmatmul.mubr.f32.gmra.mrb[0].mxu0 %v2179
    %v2262 = vpop.f32.mrb[0].mxu0
    %v2263 = vadd.f32 %v2167, %v2262
    %v2264 = vpop.f32.mrb[0].mxu0
    %2265 = vdwg.mxu0
    %v2266 = vadd.f32 %v216, %v2248
    %v2267 = vadd.f32 %v217, %v2253
    %v2268 = vadd.f32 %v218, %v2258
    %v2269 = vadd.f32 %v217, %v2263
    %v2270 = vld [vmem:[%s15] sm:$0x1]
    %v2271 = vld [vmem:[%s16] sm:$0x1]
    %v2272 = vsel %vm245, %v2266, 0.0
    %2273 = vadd.xlane.f32.xlu0 %v2272
    %v2274 = vpop.xlane.xlu0 %2273
    %v2275 = vsel %vm245, %v2267, 0.0
    %2276 = vadd.xlane.f32.xlu0 %v2275
    %v2277 = vpop.xlane.xlu0 %2276
    %v2278 = vsel %vm245, %v2268, 0.0
    %2279 = vadd.xlane.f32.xlu0 %v2278
    %v2280 = vpop.xlane.xlu0 %2279
    %v2281 = vsel %vm245, %v2269, 0.0
    %2282 = vadd.xlane.f32.xlu0 %v2281
    %v2283 = vpop.xlane.xlu0 %2282
    %v2284 = vmul.f32 %v2274, %v255
    %v2285 = vmul.f32 %v2277, %v255
    %v2286 = vmul.f32 %v2280, %v255
    %v2287 = vmul.f32 %v2283, %v255
    %v2288 = vsub.f32 %v2266, %v2284
    %v2289 = vsub.f32 %v2267, %v2285
    %v2290 = vsub.f32 %v2268, %v2286
    %v2291 = vsub.f32 %v2269, %v2287
    %v2292 = vmul.f32 %v2288, %v2288
    %v2293 = vmul.f32 %v2289, %v2289
    %v2294 = vmul.f32 %v2290, %v2290
    %v2295 = vmul.f32 %v2291, %v2291
    %v2296 = vsel %vm245, %v2292, 0.0
    %2297 = vadd.xlane.f32.xlu0 %v2296
    %v2298 = vpop.xlane.xlu0 %2297
    %v2299 = vsel %vm245, %v2293, 0.0
    %2300 = vadd.xlane.f32.xlu0 %v2299
    %v2301 = vpop.xlane.xlu0 %2300
    %v2302 = vsel %vm245, %v2294, 0.0
    %2303 = vadd.xlane.f32.xlu0 %v2302
    %v2304 = vpop.xlane.xlu0 %2303
    %v2305 = vsel %vm245, %v2295, 0.0
    %2306 = vadd.xlane.f32.xlu0 %v2305
    %v2307 = vpop.xlane.xlu0 %2306
    %v2308 = vmul.f32 %v2298, %v255
    %v2309 = vmul.f32 %v2301, %v255
    %v2310 = vmul.f32 %v2304, %v255
    %v2311 = vmul.f32 %v2307, %v255
    %v2312 = vadd.f32 %v2308, 1e-05
    %v2313 = vadd.f32 %v2309, 1e-05
    %v2314 = vadd.f32 %v2310, 1e-05
    %v2315 = vadd.f32 %v2311, 1e-05
    %v2316 = vrsqrt.pop %v2312
    %v2317 = vrsqrt.pop %v2313
    %v2318 = vrsqrt.pop %v2314
    %v2319 = vrsqrt.pop %v2315
    %v2320 = vmul.f32 %v2288, %v2316
    %v2321 = vmul.f32 %v2289, %v2317
    %v2322 = vmul.f32 %v2290, %v2318
    %v2323 = vmul.f32 %v2291, %v2319
    %v2325 = vlaneseq
    %v2326 = vshrl.u32 %v2325, 7
    %v2327 = vsub.s32 0, %v2326
    %v2328 = vrot.slane %v2270, %v2327
    %v2330 = vmul.f32 %v2320, %v2328
    %v2331 = vmul.f32 %v2321, %v2328
    %v2332 = vmul.f32 %v2322, %v2328
    %v2333 = vmul.f32 %v2323, %v2328
    %v2335 = vlaneseq
    %v2336 = vshrl.u32 %v2335, 7
    %v2337 = vsub.s32 0, %v2336
    %v2338 = vrot.slane %v2271, %v2337
    %v2340 = vadd.f32 %v2330, %v2338
    %v2341 = vadd.f32 %v2331, %v2338
    %v2342 = vadd.f32 %v2332, %v2338
    %v2343 = vadd.f32 %v2333, %v2338
    %v2344 = vld [vmem:[%s17] sm:$0xff]
    %v2345 = vld [vmem:[%s17 + $0x8] sm:$0xff]
    %v2346 = vld [vmem:[%s17 + $0x10] sm:$0xff]
    %v2347 = vld [vmem:[%s17 + $0x18] sm:$0xff]
    %v2348 = vld [vmem:[%s18] sm:$0x1]
    %v2350 = vlaneseq
    %v2351 = vshrl.u32 %v2350, 7
    %v2352 = vsub.s32 0, %v2351
    %v2353 = vrot.slane %v2348, %v2352
    %v2356 = vsel %vm245, %v2340, 0
    %v2359 = vsel %vm245, %v2341, 0
    %v2362 = vsel %vm245, %v2342, 0
    %v2365 = vsel %vm245, %v2343, 0
    %2367 = vmatprep.subr.mxu0 0.0
    %2368 = vmatpush1.msra.mxu0 %v2344
    %2369 = vmatprep.subr.mxu0 0.0
    %2370 = vmatpush1.msra.mxu0 %v2345
    %2371 = vmatprep.subr.mxu0 0.0
    %2372 = vmatpush1.msra.mxu0 %v2346
    %2373 = vmatprep.subr.mxu0 0.0
    %2374 = vmatpush1.msra.mxu0 %v2347
    %2375 = vmatprep.subr.mxu0 0.0
    %2376 = vmatpush1.msra.mxu0 0.0
    %2377 = vmatprep.subr.mxu0 0.0
    %2378 = vmatpush1.msra.mxu0 0.0
    %2379 = vmatprep.subr.mxu0 0.0
    %2380 = vmatpush1.msra.mxu0 0.0
    %2381 = vmatprep.subr.mxu0 0.0
    %2382 = vmatpush1.msra.mxu0 0.0
    %2383 = vmatprep.subr.mxu0 0.0
    %2384 = vmatpush1.msra.mxu0 0.0
    %2385 = vmatprep.subr.mxu0 0.0
    %2386 = vmatpush1.msra.mxu0 0.0
    %2387 = vmatprep.subr.mxu0 0.0
    %2388 = vmatpush1.msra.mxu0 0.0
    %2389 = vmatprep.subr.mxu0 0.0
    %2390 = vmatpush1.msra.mxu0 0.0
    %2391 = vmatprep.subr.mxu0 0.0
    %2392 = vmatpush1.msra.mxu0 0.0
    %2393 = vmatprep.subr.mxu0 0.0
    %2394 = vmatpush1.msra.mxu0 0.0
    %2395 = vmatprep.subr.mxu0 0.0
    %2396 = vmatpush1.msra.mxu0 0.0
    %2397 = vmatprep.subr.mxu0 0.0
    %2398 = vmatpush1.msra.mxu0 0.0
    %2399 = vmatprep.subr.mxu0 0.0
    %2400 = vmatpush1.msra.mxu0 0.0
    %2401 = vmatprep.subr.mxu0 0.0
    %2402 = vmatpush1.msra.mxu0 0.0
    %2403 = vmatprep.subr.mxu0 0.0
    %2404 = vmatpush1.msra.mxu0 0.0
    %2405 = vmatprep.subr.mxu0 0.0
    %2406 = vmatpush1.msra.mxu0 0.0
    %2407 = vmatprep.subr.mxu0 0.0
    %2408 = vmatpush1.msra.mxu0 0.0
    %2409 = vmatprep.subr.mxu0 0.0
    %2410 = vmatpush1.msra.mxu0 0.0
    %2411 = vmatprep.subr.mxu0 0.0
    %2412 = vmatpush1.msra.mxu0 0.0
    %2413 = vmatprep.subr.mxu0 0.0
    %2414 = vmatpush1.msra.mxu0 0.0
    %2415 = vmatprep.subr.mxu0 0.0
    %2416 = vmatpush1.msra.mxu0 0.0
    %2417 = vmatprep.subr.mxu0 0.0
    %2418 = vmatpush1.msra.mxu0 0.0
    %2419 = vmatprep.subr.mxu0 0.0
    %2420 = vmatpush1.msra.mxu0 0.0
    %2421 = vmatprep.subr.mxu0 0.0
    %2422 = vmatpush1.msra.mxu0 0.0
    %2423 = vmatprep.subr.mxu0 0.0
    %2424 = vmatpush1.msra.mxu0 0.0
    %2425 = vmatprep.subr.mxu0 0.0
    %2426 = vmatpush1.msra.mxu0 0.0
    %2427 = vmatprep.subr.mxu0 0.0
    %2428 = vmatpush1.msra.mxu0 0.0
    %2429 = vmatprep.subr.mxu0 0.0
    %2430 = vmatpush1.msra.mxu0 0.0
    %2431 = vmatprep.mubr.f32.mxu0 0.0
    %2432 = vmatmul.mubr.f32.gmra.mrb[0].mxu0 %v2356
    %v2433 = vpop.f32.mrb[0].mxu0
    %v2434 = vadd.f32 %v2353, %v2433
    %v2435 = vpop.f32.mrb[0].mxu0
    %2436 = vmatprep.mubr.f32.mxu0 0.0
    %2437 = vmatmul.mubr.f32.gmra.mrb[0].mxu0 %v2359
    %v2438 = vpop.f32.mrb[0].mxu0
    %v2439 = vadd.f32 %v2353, %v2438
    %v2440 = vpop.f32.mrb[0].mxu0
    %2441 = vmatprep.mubr.f32.mxu0 0.0
    %2442 = vmatmul.mubr.f32.gmra.mrb[0].mxu0 %v2362
    %v2443 = vpop.f32.mrb[0].mxu0
    %v2444 = vadd.f32 %v2353, %v2443
    %v2445 = vpop.f32.mrb[0].mxu0
    %2446 = vmatprep.mubr.f32.mxu0 0.0
    %2447 = vmatmul.mubr.f32.gmra.mrb[0].mxu0 %v2365
    %v2448 = vpop.f32.mrb[0].mxu0
    %v2449 = vadd.f32 %v2353, %v2448
    %v2450 = vpop.f32.mrb[0].mxu0
    %2451 = vdwg.mxu0
    %v2452 = vmul.f32 %v2434, 0.5
    %v2453 = vmul.f32 %v2439, 0.5
    %v2454 = vmul.f32 %v2444, 0.5
    %v2455 = vmul.f32 %v2449, 0.5
    %v2456 = vmul.f32 %v2434, 0.70710677
    %v2457 = vmul.f32 %v2439, 0.70710677
    %v2458 = vmul.f32 %v2444, 0.70710677
    %v2459 = vmul.f32 %v2449, 0.70710677
    %v2460 = verf.f32.pop %v2456
    %v2461 = verf.f32.pop %v2457
    %v2462 = verf.f32.pop %v2458
    %v2463 = verf.f32.pop %v2459
    %v2464 = vadd.f32 %v2460, 1.0
    %v2465 = vadd.f32 %v2461, 1.0
    %v2466 = vadd.f32 %v2462, 1.0
    %v2467 = vadd.f32 %v2463, 1.0
    %v2468 = vmul.f32 %v2452, %v2464
    %v2469 = vmul.f32 %v2453, %v2465
    %v2470 = vmul.f32 %v2454, %v2466
    %v2471 = vmul.f32 %v2455, %v2467
    %v2472 = vld [vmem:[%s19] sm:$0xff]
    %v2473 = vld [vmem:[%s19 + $0x8] sm:$0xff]
    %v2474 = vld [vmem:[%s19 + $0x10] sm:$0xff]
    %v2475 = vld [vmem:[%s19 + $0x18] sm:$0xff]
    %v2476 = vld [vmem:[%s19 + $0x20] sm:$0xff]
    %v2477 = vld [vmem:[%s19 + $0x28] sm:$0xff]
    %v2478 = vld [vmem:[%s19 + $0x30] sm:$0xff]
    %v2479 = vld [vmem:[%s19 + $0x38] sm:$0xff]
    %vm2480 = vcmask 523264
    %v2482 = vsel %vm2480, %v2468, 0
    %v2485 = vsel %vm2480, %v2469, 0
    %v2488 = vsel %vm2480, %v2470, 0
    %v2491 = vsel %vm2480, %v2471, 0
    %2493 = vmatprep.subr.mxu0 0.0
    %2494 = vmatpush1.msra.mxu0 %v2472
    %2495 = vmatprep.subr.mxu0 0.0
    %2496 = vmatpush1.msra.mxu0 %v2473
    %2497 = vmatprep.subr.mxu0 0.0
    %2498 = vmatpush1.msra.mxu0 %v2474
    %2499 = vmatprep.subr.mxu0 0.0
    %2500 = vmatpush1.msra.mxu0 %v2475
    %2501 = vmatprep.subr.mxu0 0.0
    %2502 = vmatpush1.msra.mxu0 %v2476
    %2503 = vmatprep.subr.mxu0 0.0
    %2504 = vmatpush1.msra.mxu0 %v2477
    %2505 = vmatprep.subr.mxu0 0.0
    %2506 = vmatpush1.msra.mxu0 %v2478
    %2507 = vmatprep.subr.mxu0 0.0
    %2508 = vmatpush1.msra.mxu0 %v2479
    %2509 = vmatprep.subr.mxu0 0.0
    %2510 = vmatpush1.msra.mxu0 0.0
    %2511 = vmatprep.subr.mxu0 0.0
    %2512 = vmatpush1.msra.mxu0 0.0
    %2513 = vmatprep.subr.mxu0 0.0
    %2514 = vmatpush1.msra.mxu0 0.0
    %2515 = vmatprep.subr.mxu0 0.0
    %2516 = vmatpush1.msra.mxu0 0.0
    %2517 = vmatprep.subr.mxu0 0.0
    %2518 = vmatpush1.msra.mxu0 0.0
    %2519 = vmatprep.subr.mxu0 0.0
    %2520 = vmatpush1.msra.mxu0 0.0
    %2521 = vmatprep.subr.mxu0 0.0
    %2522 = vmatpush1.msra.mxu0 0.0
    %2523 = vmatprep.subr.mxu0 0.0
    %2524 = vmatpush1.msra.mxu0 0.0
    %2525 = vmatprep.subr.mxu0 0.0
    %2526 = vmatpush1.msra.mxu0 0.0
    %2527 = vmatprep.subr.mxu0 0.0
    %2528 = vmatpush1.msra.mxu0 0.0
    %2529 = vmatprep.subr.mxu0 0.0
    %2530 = vmatpush1.msra.mxu0 0.0
    %2531 = vmatprep.subr.mxu0 0.0
    %2532 = vmatpush1.msra.mxu0 0.0
    %2533 = vmatprep.subr.mxu0 0.0
    %2534 = vmatpush1.msra.mxu0 0.0
    %2535 = vmatprep.subr.mxu0 0.0
    %2536 = vmatpush1.msra.mxu0 0.0
    %2537 = vmatprep.subr.mxu0 0.0
    %2538 = vmatpush1.msra.mxu0 0.0
    %2539 = vmatprep.subr.mxu0 0.0
    %2540 = vmatpush1.msra.mxu0 0.0
    %2541 = vmatprep.subr.mxu0 0.0
    %2542 = vmatpush1.msra.mxu0 0.0
    %2543 = vmatprep.subr.mxu0 0.0
    %2544 = vmatpush1.msra.mxu0 0.0
    %2545 = vmatprep.subr.mxu0 0.0
    %2546 = vmatpush1.msra.mxu0 0.0
    %2547 = vmatprep.subr.mxu0 0.0
    %2548 = vmatpush1.msra.mxu0 0.0
    %2549 = vmatprep.subr.mxu0 0.0
    %2550 = vmatpush1.msra.mxu0 0.0
    %2551 = vmatprep.subr.mxu0 0.0
    %2552 = vmatpush1.msra.mxu0 0.0
    %2553 = vmatprep.subr.mxu0 0.0
    %2554 = vmatpush1.msra.mxu0 0.0
    %2555 = vmatprep.subr.mxu0 0.0
    %2556 = vmatpush1.msra.mxu0 0.0
    %2557 = vmatprep.mubr.f32.mxu0 0.0
    %2558 = vmatmul.mubr.f32.gmra.mrb[0].mxu0 %v2482
    %v2559 = vpop.f32.mrb[0].mxu0
    %v2560 = vadd.f32 0.0, %v2559
    %v2561 = vpop.f32.mrb[0].mxu0
    %2562 = vmatprep.mubr.f32.mxu0 0.0
    %2563 = vmatmul.mubr.f32.gmra.mrb[0].mxu0 %v2485
    %v2564 = vpop.f32.mrb[0].mxu0
    %v2565 = vadd.f32 0.0, %v2564
    %v2566 = vpop.f32.mrb[0].mxu0
    %2567 = vmatprep.mubr.f32.mxu0 0.0
    %2568 = vmatmul.mubr.f32.gmra.mrb[0].mxu0 %v2488
    %v2569 = vpop.f32.mrb[0].mxu0
    %v2570 = vadd.f32 0.0, %v2569
    %v2571 = vpop.f32.mrb[0].mxu0
    %2572 = vmatprep.mubr.f32.mxu0 0.0
    %2573 = vmatmul.mubr.f32.gmra.mrb[0].mxu0 %v2491
    %v2574 = vpop.f32.mrb[0].mxu0
    %v2575 = vadd.f32 0.0, %v2574
    %v2576 = vpop.f32.mrb[0].mxu0
    %2577 = vdwg.mxu0
    %v2578 = vadd.f32 %v2266, %v2560
    %v2579 = vadd.f32 %v2267, %v2565
    %v2580 = vadd.f32 %v2268, %v2570
    %v2581 = vadd.f32 %v2269, %v2575
    %v2582 = vld [vmem:[%s20] sm:$0x1]
    %v2584 = vlaneseq
    %v2585 = vshrl.u32 %v2584, 7
    %v2586 = vsub.s32 0, %v2585
    %v2587 = vrot.slane %v2582, %v2586
    %v2589 = vadd.f32 %v2578, %v2587
    %v2590 = vadd.f32 %v2579, %v2587
    %v2591 = vadd.f32 %v2580, %v2587
    %v2592 = vadd.f32 %v2581, %v2587
    %s2593 = scalar_lea.vmem %s5, 1
    %v2594 = vld [vmem:[%s2593] sm:$0x1]
    %s2595 = scalar_lea.vmem %s6, 1
    %v2596 = vld [vmem:[%s2595] sm:$0x1]
    %v2597 = vsel %vm245, %v2589, 0.0
    %2598 = vadd.xlane.f32.xlu0 %v2597
    %v2599 = vpop.xlane.xlu0 %2598
    %v2600 = vsel %vm245, %v2590, 0.0
    %2601 = vadd.xlane.f32.xlu0 %v2600
    %v2602 = vpop.xlane.xlu0 %2601
    %v2603 = vsel %vm245, %v2591, 0.0
    %2604 = vadd.xlane.f32.xlu0 %v2603
    %v2605 = vpop.xlane.xlu0 %2604
    %v2606 = vsel %vm245, %v2592, 0.0
    %2607 = vadd.xlane.f32.xlu0 %v2606
    %v2608 = vpop.xlane.xlu0 %2607
    %v2609 = vmul.f32 %v2599, %v255
    %v2610 = vmul.f32 %v2602, %v255
    %v2611 = vmul.f32 %v2605, %v255
    %v2612 = vmul.f32 %v2608, %v255
    %v2613 = vsub.f32 %v2589, %v2609
    %v2614 = vsub.f32 %v2590, %v2610
    %v2615 = vsub.f32 %v2591, %v2611
    %v2616 = vsub.f32 %v2592, %v2612
    %v2617 = vmul.f32 %v2613, %v2613
    %v2618 = vmul.f32 %v2614, %v2614
    %v2619 = vmul.f32 %v2615, %v2615
    %v2620 = vmul.f32 %v2616, %v2616
    %v2621 = vsel %vm245, %v2617, 0.0
    %2622 = vadd.xlane.f32.xlu0 %v2621
    %v2623 = vpop.xlane.xlu0 %2622
    %v2624 = vsel %vm245, %v2618, 0.0
    %2625 = vadd.xlane.f32.xlu0 %v2624
    %v2626 = vpop.xlane.xlu0 %2625
    %v2627 = vsel %vm245, %v2619, 0.0
    %2628 = vadd.xlane.f32.xlu0 %v2627
    %v2629 = vpop.xlane.xlu0 %2628
    %v2630 = vsel %vm245, %v2620, 0.0
    %2631 = vadd.xlane.f32.xlu0 %v2630
    %v2632 = vpop.xlane.xlu0 %2631
    %v2633 = vmul.f32 %v2623, %v255
    %v2634 = vmul.f32 %v2626, %v255
    %v2635 = vmul.f32 %v2629, %v255
    %v2636 = vmul.f32 %v2632, %v255
    %v2637 = vadd.f32 %v2633, 1e-05
    %v2638 = vadd.f32 %v2634, 1e-05
    %v2639 = vadd.f32 %v2635, 1e-05
    %v2640 = vadd.f32 %v2636, 1e-05
    %v2641 = vrsqrt.pop %v2637
    %v2642 = vrsqrt.pop %v2638
    %v2643 = vrsqrt.pop %v2639
    %v2644 = vrsqrt.pop %v2640
    %v2645 = vmul.f32 %v2613, %v2641
    %v2646 = vmul.f32 %v2614, %v2642
    %v2647 = vmul.f32 %v2615, %v2643
    %v2648 = vmul.f32 %v2616, %v2644
    %v2650 = vlaneseq
    %v2651 = vshrl.u32 %v2650, 7
    %v2652 = vsub.s32 0, %v2651
    %v2653 = vrot.slane %v2594, %v2652
    %v2655 = vmul.f32 %v2645, %v2653
    %v2656 = vmul.f32 %v2646, %v2653
    %v2657 = vmul.f32 %v2647, %v2653
    %v2658 = vmul.f32 %v2648, %v2653
    %v2660 = vlaneseq
    %v2661 = vshrl.u32 %v2660, 7
    %v2662 = vsub.s32 0, %v2661
    %v2663 = vrot.slane %v2596, %v2662
    %v2665 = vadd.f32 %v2655, %v2663
    %v2666 = vadd.f32 %v2656, %v2663
    %v2667 = vadd.f32 %v2657, %v2663
    %v2668 = vadd.f32 %v2658, %v2663
    %s2669 = scalar_lea.vmem %s7, 32
    %v2670 = vld [vmem:[%s2669] sm:$0xff]
    %v2671 = vld [vmem:[%s2669 + $0x8] sm:$0xff]
    %v2672 = vld [vmem:[%s2669 + $0x10] sm:$0xff]
    %v2673 = vld [vmem:[%s2669 + $0x18] sm:$0xff]
    %s2674 = scalar_lea.vmem %s8, 1
    %v2675 = vld [vmem:[%s2674] sm:$0x1]
    %v2677 = vlaneseq
    %v2678 = vshrl.u32 %v2677, 7
    %v2679 = vsub.s32 0, %v2678
    %v2680 = vrot.slane %v2675, %v2679
    %v2683 = vsel %vm245, %v2665, 0
    %v2686 = vsel %vm245, %v2666, 0
    %v2689 = vsel %vm245, %v2667, 0
    %v2692 = vsel %vm245, %v2668, 0
    %2694 = vmatprep.subr.mxu0 0.0
    %2695 = vmatpush1.msra.mxu0 %v2670
    %2696 = vmatprep.subr.mxu0 0.0
    %2697 = vmatpush1.msra.mxu0 %v2671
    %2698 = vmatprep.subr.mxu0 0.0
    %2699 = vmatpush1.msra.mxu0 %v2672
    %2700 = vmatprep.subr.mxu0 0.0
    %2701 = vmatpush1.msra.mxu0 %v2673
    %2702 = vmatprep.subr.mxu0 0.0
    %2703 = vmatpush1.msra.mxu0 0.0
    %2704 = vmatprep.subr.mxu0 0.0
    %2705 = vmatpush1.msra.mxu0 0.0
    %2706 = vmatprep.subr.mxu0 0.0
    %2707 = vmatpush1.msra.mxu0 0.0
    %2708 = vmatprep.subr.mxu0 0.0
    %2709 = vmatpush1.msra.mxu0 0.0
    %2710 = vmatprep.subr.mxu0 0.0
    %2711 = vmatpush1.msra.mxu0 0.0
    %2712 = vmatprep.subr.mxu0 0.0
    %2713 = vmatpush1.msra.mxu0 0.0
    %2714 = vmatprep.subr.mxu0 0.0
    %2715 = vmatpush1.msra.mxu0 0.0
    %2716 = vmatprep.subr.mxu0 0.0
    %2717 = vmatpush1.msra.mxu0 0.0
    %2718 = vmatprep.subr.mxu0 0.0
    %2719 = vmatpush1.msra.mxu0 0.0
    %2720 = vmatprep.subr.mxu0 0.0
    %2721 = vmatpush1.msra.mxu0 0.0
    %2722 = vmatprep.subr.mxu0 0.0
    %2723 = vmatpush1.msra.mxu0 0.0
    %2724 = vmatprep.subr.mxu0 0.0
    %2725 = vmatpush1.msra.mxu0 0.0
    %2726 = vmatprep.subr.mxu0 0.0
    %2727 = vmatpush1.msra.mxu0 0.0
    %2728 = vmatprep.subr.mxu0 0.0
    %2729 = vmatpush1.msra.mxu0 0.0
    %2730 = vmatprep.subr.mxu0 0.0
    %2731 = vmatpush1.msra.mxu0 0.0
    %2732 = vmatprep.subr.mxu0 0.0
    %2733 = vmatpush1.msra.mxu0 0.0
    %2734 = vmatprep.subr.mxu0 0.0
    %2735 = vmatpush1.msra.mxu0 0.0
    %2736 = vmatprep.subr.mxu0 0.0
    %2737 = vmatpush1.msra.mxu0 0.0
    %2738 = vmatprep.subr.mxu0 0.0
    %2739 = vmatpush1.msra.mxu0 0.0
    %2740 = vmatprep.subr.mxu0 0.0
    %2741 = vmatpush1.msra.mxu0 0.0
    %2742 = vmatprep.subr.mxu0 0.0
    %2743 = vmatpush1.msra.mxu0 0.0
    %2744 = vmatprep.subr.mxu0 0.0
    %2745 = vmatpush1.msra.mxu0 0.0
    %2746 = vmatprep.subr.mxu0 0.0
    %2747 = vmatpush1.msra.mxu0 0.0
    %2748 = vmatprep.subr.mxu0 0.0
    %2749 = vmatpush1.msra.mxu0 0.0
    %2750 = vmatprep.subr.mxu0 0.0
    %2751 = vmatpush1.msra.mxu0 0.0
    %2752 = vmatprep.subr.mxu0 0.0
    %2753 = vmatpush1.msra.mxu0 0.0
    %2754 = vmatprep.subr.mxu0 0.0
    %2755 = vmatpush1.msra.mxu0 0.0
    %2756 = vmatprep.subr.mxu0 0.0
    %2757 = vmatpush1.msra.mxu0 0.0
    %2758 = vmatprep.mubr.f32.mxu0 0.0
    %2759 = vmatmul.mubr.f32.gmra.mrb[0].mxu0 %v2683
    %v2760 = vpop.f32.mrb[0].mxu0
    %v2761 = vadd.f32 %v2680, %v2760
    %v2762 = vpop.f32.mrb[0].mxu0
    %2763 = vmatprep.mubr.f32.mxu0 0.0
    %2764 = vmatmul.mubr.f32.gmra.mrb[0].mxu0 %v2686
    %v2765 = vpop.f32.mrb[0].mxu0
    %v2766 = vadd.f32 %v2680, %v2765
    %v2767 = vpop.f32.mrb[0].mxu0
    %2768 = vmatprep.mubr.f32.mxu0 0.0
    %2769 = vmatmul.mubr.f32.gmra.mrb[0].mxu0 %v2689
    %v2770 = vpop.f32.mrb[0].mxu0
    %v2771 = vadd.f32 %v2680, %v2770
    %v2772 = vpop.f32.mrb[0].mxu0
    %2773 = vmatprep.mubr.f32.mxu0 0.0
    %2774 = vmatmul.mubr.f32.gmra.mrb[0].mxu0 %v2692
    %v2775 = vpop.f32.mrb[0].mxu0
    %v2776 = vadd.f32 %v2680, %v2775
    %v2777 = vpop.f32.mrb[0].mxu0
    %2778 = vdwg.mxu0
    %s2779 = scalar_lea.vmem %s9, 32
    %v2780 = vld [vmem:[%s2779] sm:$0xff]
    %v2781 = vld [vmem:[%s2779 + $0x8] sm:$0xff]
    %v2782 = vld [vmem:[%s2779 + $0x10] sm:$0xff]
    %v2783 = vld [vmem:[%s2779 + $0x18] sm:$0xff]
    %s2784 = scalar_lea.vmem %s10, 1
    %v2785 = vld [vmem:[%s2784] sm:$0x1]
    %v2787 = vlaneseq
    %v2788 = vshrl.u32 %v2787, 7
    %v2789 = vsub.s32 0, %v2788
    %v2790 = vrot.slane %v2785, %v2789
    %2792 = vmatprep.subr.mxu0 0.0
    %2793 = vmatpush1.msra.mxu0 %v2780
    %2794 = vmatprep.subr.mxu0 0.0
    %2795 = vmatpush1.msra.mxu0 %v2781
    %2796 = vmatprep.subr.mxu0 0.0
    %2797 = vmatpush1.msra.mxu0 %v2782
    %2798 = vmatprep.subr.mxu0 0.0
    %2799 = vmatpush1.msra.mxu0 %v2783
    %2800 = vmatprep.subr.mxu0 0.0
    %2801 = vmatpush1.msra.mxu0 0.0
    %2802 = vmatprep.subr.mxu0 0.0
    %2803 = vmatpush1.msra.mxu0 0.0
    %2804 = vmatprep.subr.mxu0 0.0
    %2805 = vmatpush1.msra.mxu0 0.0
    %2806 = vmatprep.subr.mxu0 0.0
    %2807 = vmatpush1.msra.mxu0 0.0
    %2808 = vmatprep.subr.mxu0 0.0
    %2809 = vmatpush1.msra.mxu0 0.0
    %2810 = vmatprep.subr.mxu0 0.0
    %2811 = vmatpush1.msra.mxu0 0.0
    %2812 = vmatprep.subr.mxu0 0.0
    %2813 = vmatpush1.msra.mxu0 0.0
    %2814 = vmatprep.subr.mxu0 0.0
    %2815 = vmatpush1.msra.mxu0 0.0
    %2816 = vmatprep.subr.mxu0 0.0
    %2817 = vmatpush1.msra.mxu0 0.0
    %2818 = vmatprep.subr.mxu0 0.0
    %2819 = vmatpush1.msra.mxu0 0.0
    %2820 = vmatprep.subr.mxu0 0.0
    %2821 = vmatpush1.msra.mxu0 0.0
    %2822 = vmatprep.subr.mxu0 0.0
    %2823 = vmatpush1.msra.mxu0 0.0
    %2824 = vmatprep.subr.mxu0 0.0
    %2825 = vmatpush1.msra.mxu0 0.0
    %2826 = vmatprep.subr.mxu0 0.0
    %2827 = vmatpush1.msra.mxu0 0.0
    %2828 = vmatprep.subr.mxu0 0.0
    %2829 = vmatpush1.msra.mxu0 0.0
    %2830 = vmatprep.subr.mxu0 0.0
    %2831 = vmatpush1.msra.mxu0 0.0
    %2832 = vmatprep.subr.mxu0 0.0
    %2833 = vmatpush1.msra.mxu0 0.0
    %2834 = vmatprep.subr.mxu0 0.0
    %2835 = vmatpush1.msra.mxu0 0.0
    %2836 = vmatprep.subr.mxu0 0.0
    %2837 = vmatpush1.msra.mxu0 0.0
    %2838 = vmatprep.subr.mxu0 0.0
    %2839 = vmatpush1.msra.mxu0 0.0
    %2840 = vmatprep.subr.mxu0 0.0
    %2841 = vmatpush1.msra.mxu0 0.0
    %2842 = vmatprep.subr.mxu0 0.0
    %2843 = vmatpush1.msra.mxu0 0.0
    %2844 = vmatprep.subr.mxu0 0.0
    %2845 = vmatpush1.msra.mxu0 0.0
    %2846 = vmatprep.subr.mxu0 0.0
    %2847 = vmatpush1.msra.mxu0 0.0
    %2848 = vmatprep.subr.mxu0 0.0
    %2849 = vmatpush1.msra.mxu0 0.0
    %2850 = vmatprep.subr.mxu0 0.0
    %2851 = vmatpush1.msra.mxu0 0.0
    %2852 = vmatprep.subr.mxu0 0.0
    %2853 = vmatpush1.msra.mxu0 0.0
    %2854 = vmatprep.subr.mxu0 0.0
    %2855 = vmatpush1.msra.mxu0 0.0
    %2856 = vmatprep.mubr.f32.mxu0 0.0
    %2857 = vmatmul.mubr.f32.gmra.mrb[0].mxu0 %v2683
    %v2858 = vpop.f32.mrb[0].mxu0
    %v2859 = vadd.f32 %v2790, %v2858
    %v2860 = vpop.f32.mrb[0].mxu0
    %2861 = vmatprep.mubr.f32.mxu0 0.0
    %2862 = vmatmul.mubr.f32.gmra.mrb[0].mxu0 %v2686
    %v2863 = vpop.f32.mrb[0].mxu0
    %v2864 = vadd.f32 %v2790, %v2863
    %v2865 = vpop.f32.mrb[0].mxu0
    %2866 = vmatprep.mubr.f32.mxu0 0.0
    %2867 = vmatmul.mubr.f32.gmra.mrb[0].mxu0 %v2689
    %v2868 = vpop.f32.mrb[0].mxu0
    %v2869 = vadd.f32 %v2790, %v2868
    %v2870 = vpop.f32.mrb[0].mxu0
    %2871 = vmatprep.mubr.f32.mxu0 0.0
    %2872 = vmatmul.mubr.f32.gmra.mrb[0].mxu0 %v2692
    %v2873 = vpop.f32.mrb[0].mxu0
    %v2874 = vadd.f32 %v2790, %v2873
    %v2875 = vpop.f32.mrb[0].mxu0
    %2876 = vdwg.mxu0
    %s2877 = scalar_lea.vmem %s11, 32
    %v2878 = vld [vmem:[%s2877] sm:$0xff]
    %v2879 = vld [vmem:[%s2877 + $0x8] sm:$0xff]
    %v2880 = vld [vmem:[%s2877 + $0x10] sm:$0xff]
    %v2881 = vld [vmem:[%s2877 + $0x18] sm:$0xff]
    %s2882 = scalar_lea.vmem %s12, 1
    %v2883 = vld [vmem:[%s2882] sm:$0x1]
    %v2885 = vlaneseq
    %v2886 = vshrl.u32 %v2885, 7
    %v2887 = vsub.s32 0, %v2886
    %v2888 = vrot.slane %v2883, %v2887
    %2890 = vmatprep.subr.mxu0 0.0
    %2891 = vmatpush1.msra.mxu0 %v2878
    %2892 = vmatprep.subr.mxu0 0.0
    %2893 = vmatpush1.msra.mxu0 %v2879
    %2894 = vmatprep.subr.mxu0 0.0
    %2895 = vmatpush1.msra.mxu0 %v2880
    %2896 = vmatprep.subr.mxu0 0.0
    %2897 = vmatpush1.msra.mxu0 %v2881
    %2898 = vmatprep.subr.mxu0 0.0
    %2899 = vmatpush1.msra.mxu0 0.0
    %2900 = vmatprep.subr.mxu0 0.0
    %2901 = vmatpush1.msra.mxu0 0.0
    %2902 = vmatprep.subr.mxu0 0.0
    %2903 = vmatpush1.msra.mxu0 0.0
    %2904 = vmatprep.subr.mxu0 0.0
    %2905 = vmatpush1.msra.mxu0 0.0
    %2906 = vmatprep.subr.mxu0 0.0
    %2907 = vmatpush1.msra.mxu0 0.0
    %2908 = vmatprep.subr.mxu0 0.0
    %2909 = vmatpush1.msra.mxu0 0.0
    %2910 = vmatprep.subr.mxu0 0.0
    %2911 = vmatpush1.msra.mxu0 0.0
    %2912 = vmatprep.subr.mxu0 0.0
    %2913 = vmatpush1.msra.mxu0 0.0
    %2914 = vmatprep.subr.mxu0 0.0
    %2915 = vmatpush1.msra.mxu0 0.0
    %2916 = vmatprep.subr.mxu0 0.0
    %2917 = vmatpush1.msra.mxu0 0.0
    %2918 = vmatprep.subr.mxu0 0.0
    %2919 = vmatpush1.msra.mxu0 0.0
    %2920 = vmatprep.subr.mxu0 0.0
    %2921 = vmatpush1.msra.mxu0 0.0
    %2922 = vmatprep.subr.mxu0 0.0
    %2923 = vmatpush1.msra.mxu0 0.0
    %2924 = vmatprep.subr.mxu0 0.0
    %2925 = vmatpush1.msra.mxu0 0.0
    %2926 = vmatprep.subr.mxu0 0.0
    %2927 = vmatpush1.msra.mxu0 0.0
    %2928 = vmatprep.subr.mxu0 0.0
    %2929 = vmatpush1.msra.mxu0 0.0
    %2930 = vmatprep.subr.mxu0 0.0
    %2931 = vmatpush1.msra.mxu0 0.0
    %2932 = vmatprep.subr.mxu0 0.0
    %2933 = vmatpush1.msra.mxu0 0.0
    %2934 = vmatprep.subr.mxu0 0.0
    %2935 = vmatpush1.msra.mxu0 0.0
    %2936 = vmatprep.subr.mxu0 0.0
    %2937 = vmatpush1.msra.mxu0 0.0
    %2938 = vmatprep.subr.mxu0 0.0
    %2939 = vmatpush1.msra.mxu0 0.0
    %2940 = vmatprep.subr.mxu0 0.0
    %2941 = vmatpush1.msra.mxu0 0.0
    %2942 = vmatprep.subr.mxu0 0.0
    %2943 = vmatpush1.msra.mxu0 0.0
    %2944 = vmatprep.subr.mxu0 0.0
    %2945 = vmatpush1.msra.mxu0 0.0
    %2946 = vmatprep.subr.mxu0 0.0
    %2947 = vmatpush1.msra.mxu0 0.0
    %2948 = vmatprep.subr.mxu0 0.0
    %2949 = vmatpush1.msra.mxu0 0.0
    %2950 = vmatprep.subr.mxu0 0.0
    %2951 = vmatpush1.msra.mxu0 0.0
    %2952 = vmatprep.subr.mxu0 0.0
    %2953 = vmatpush1.msra.mxu0 0.0
    %2954 = vmatprep.mubr.f32.mxu0 0.0
    %2955 = vmatmul.mubr.f32.gmra.mrb[0].mxu0 %v2683
    %v2956 = vpop.f32.mrb[0].mxu0
    %v2957 = vadd.f32 %v2888, %v2956
    %v2958 = vpop.f32.mrb[0].mxu0
    %2959 = vmatprep.mubr.f32.mxu0 0.0
    %2960 = vmatmul.mubr.f32.gmra.mrb[0].mxu0 %v2686
    %v2961 = vpop.f32.mrb[0].mxu0
    %v2962 = vadd.f32 %v2888, %v2961
    %v2963 = vpop.f32.mrb[0].mxu0
    %2964 = vmatprep.mubr.f32.mxu0 0.0
    %2965 = vmatmul.mubr.f32.gmra.mrb[0].mxu0 %v2689
    %v2966 = vpop.f32.mrb[0].mxu0
    %v2967 = vadd.f32 %v2888, %v2966
    %v2968 = vpop.f32.mrb[0].mxu0
    %2969 = vmatprep.mubr.f32.mxu0 0.0
    %2970 = vmatmul.mubr.f32.gmra.mrb[0].mxu0 %v2692
    %v2971 = vpop.f32.mrb[0].mxu0
    %v2972 = vadd.f32 %v2888, %v2971
    %v2973 = vpop.f32.mrb[0].mxu0
    %2974 = vdwg.mxu0
    %v2975 = vmul.f32 %v2859, %v225
    %v2976 = vmul.f32 %v2864, %v225
    %v2977 = vmul.f32 %v2869, %v225
    %v2978 = vmul.f32 %v2874, %v225
    %v2980 = vsel %vm245, %v2761, 0
    %v2983 = vsel %vm245, %v2766, 0
    %v2986 = vsel %vm245, %v2975, 0
    %v2989 = vsel %vm245, %v2976, 0
    %2991 = vmatprep.subr.mxu0 0.0
    %2992 = vmatpush1.xpose.msra.mxu0 %v2986
    %2993 = vmatprep.subr.mxu0 0.0
    %2994 = vmatpush1.xpose.msra.mxu0 %v2989
    %2995 = vmatprep.subr.mxu0 0.0
    %2996 = vmatpush1.xpose.msra.mxu0 0.0
    %2997 = vmatprep.subr.mxu0 0.0
    %2998 = vmatpush1.xpose.msra.mxu0 0.0
    %2999 = vmatprep.subr.mxu0 0.0
    %3000 = vmatpush1.xpose.msra.mxu0 0.0
    %3001 = vmatprep.subr.mxu0 0.0
    %3002 = vmatpush1.xpose.msra.mxu0 0.0
    %3003 = vmatprep.subr.mxu0 0.0
    %3004 = vmatpush1.xpose.msra.mxu0 0.0
    %3005 = vmatprep.subr.mxu0 0.0
    %3006 = vmatpush1.xpose.msra.mxu0 0.0
    %3007 = vmatprep.subr.mxu0 0.0
    %3008 = vmatpush1.xpose.msra.mxu0 0.0
    %3009 = vmatprep.subr.mxu0 0.0
    %3010 = vmatpush1.xpose.msra.mxu0 0.0
    %3011 = vmatprep.subr.mxu0 0.0
    %3012 = vmatpush1.xpose.msra.mxu0 0.0
    %3013 = vmatprep.subr.mxu0 0.0
    %3014 = vmatpush1.xpose.msra.mxu0 0.0
    %3015 = vmatprep.subr.mxu0 0.0
    %3016 = vmatpush1.xpose.msra.mxu0 0.0
    %3017 = vmatprep.subr.mxu0 0.0
    %3018 = vmatpush1.xpose.msra.mxu0 0.0
    %3019 = vmatprep.subr.mxu0 0.0
    %3020 = vmatpush1.xpose.msra.mxu0 0.0
    %3021 = vmatprep.subr.mxu0 0.0
    %3022 = vmatpush1.xpose.msra.mxu0 0.0
    %3023 = vmatprep.subr.mxu0 0.0
    %3024 = vmatpush1.xpose.msra.mxu0 0.0
    %3025 = vmatprep.subr.mxu0 0.0
    %3026 = vmatpush1.xpose.msra.mxu0 0.0
    %3027 = vmatprep.subr.mxu0 0.0
    %3028 = vmatpush1.xpose.msra.mxu0 0.0
    %3029 = vmatprep.subr.mxu0 0.0
    %3030 = vmatpush1.xpose.msra.mxu0 0.0
    %3031 = vmatprep.subr.mxu0 0.0
    %3032 = vmatpush1.xpose.msra.mxu0 0.0
    %3033 = vmatprep.subr.mxu0 0.0
    %3034 = vmatpush1.xpose.msra.mxu0 0.0
    %3035 = vmatprep.subr.mxu0 0.0
    %3036 = vmatpush1.xpose.msra.mxu0 0.0
    %3037 = vmatprep.subr.mxu0 0.0
    %3038 = vmatpush1.xpose.msra.mxu0 0.0
    %3039 = vmatprep.subr.mxu0 0.0
    %3040 = vmatpush1.xpose.msra.mxu0 0.0
    %3041 = vmatprep.subr.mxu0 0.0
    %3042 = vmatpush1.xpose.msra.mxu0 0.0
    %3043 = vmatprep.subr.mxu0 0.0
    %3044 = vmatpush1.xpose.msra.mxu0 0.0
    %3045 = vmatprep.subr.mxu0 0.0
    %3046 = vmatpush1.xpose.msra.mxu0 0.0
    %3047 = vmatprep.subr.mxu0 0.0
    %3048 = vmatpush1.xpose.msra.mxu0 0.0
    %3049 = vmatprep.subr.mxu0 0.0
    %3050 = vmatpush1.xpose.msra.mxu0 0.0
    %3051 = vmatprep.subr.mxu0 0.0
    %3052 = vmatpush1.xpose.msra.mxu0 0.0
    %3053 = vmatprep.subr.mxu0 0.0
    %3054 = vmatpush1.xpose.msra.mxu0 0.0
    %3055 = vmatprep.mubr.f32.mxu0 0.0
    %3056 = vmatmul.mubr.f32.gmra.mrb[0].mxu0 %v2980
    %v3057 = vpop.f32.mrb[0].mxu0
    %v3058 = vadd.f32 0.0, %v3057
    %v3059 = vpop.f32.mrb[0].mxu0
    %3060 = vmatprep.mubr.f32.mxu0 0.0
    %3061 = vmatmul.mubr.f32.gmra.mrb[0].mxu0 %v2983
    %v3062 = vpop.f32.mrb[0].mxu0
    %v3063 = vadd.f32 0.0, %v3062
    %v3064 = vpop.f32.mrb[0].mxu0
    %3065 = vdwg.mxu0
    %v3067 = vsel %vm245, %v2771, 0
    %v3070 = vsel %vm245, %v2776, 0
    %v3073 = vsel %vm245, %v2977, 0
    %v3076 = vsel %vm245, %v2978, 0
    %3078 = vmatprep.subr.mxu0 0.0
    %3079 = vmatpush1.xpose.msra.mxu0 %v3073
    %3080 = vmatprep.subr.mxu0 0.0
    %3081 = vmatpush1.xpose.msra.mxu0 %v3076
    %3082 = vmatprep.subr.mxu0 0.0
    %3083 = vmatpush1.xpose.msra.mxu0 0.0
    %3084 = vmatprep.subr.mxu0 0.0
    %3085 = vmatpush1.xpose.msra.mxu0 0.0
    %3086 = vmatprep.subr.mxu0 0.0
    %3087 = vmatpush1.xpose.msra.mxu0 0.0
    %3088 = vmatprep.subr.mxu0 0.0
    %3089 = vmatpush1.xpose.msra.mxu0 0.0
    %3090 = vmatprep.subr.mxu0 0.0
    %3091 = vmatpush1.xpose.msra.mxu0 0.0
    %3092 = vmatprep.subr.mxu0 0.0
    %3093 = vmatpush1.xpose.msra.mxu0 0.0
    %3094 = vmatprep.subr.mxu0 0.0
    %3095 = vmatpush1.xpose.msra.mxu0 0.0
    %3096 = vmatprep.subr.mxu0 0.0
    %3097 = vmatpush1.xpose.msra.mxu0 0.0
    %3098 = vmatprep.subr.mxu0 0.0
    %3099 = vmatpush1.xpose.msra.mxu0 0.0
    %3100 = vmatprep.subr.mxu0 0.0
    %3101 = vmatpush1.xpose.msra.mxu0 0.0
    %3102 = vmatprep.subr.mxu0 0.0
    %3103 = vmatpush1.xpose.msra.mxu0 0.0
    %3104 = vmatprep.subr.mxu0 0.0
    %3105 = vmatpush1.xpose.msra.mxu0 0.0
    %3106 = vmatprep.subr.mxu0 0.0
    %3107 = vmatpush1.xpose.msra.mxu0 0.0
    %3108 = vmatprep.subr.mxu0 0.0
    %3109 = vmatpush1.xpose.msra.mxu0 0.0
    %3110 = vmatprep.subr.mxu0 0.0
    %3111 = vmatpush1.xpose.msra.mxu0 0.0
    %3112 = vmatprep.subr.mxu0 0.0
    %3113 = vmatpush1.xpose.msra.mxu0 0.0
    %3114 = vmatprep.subr.mxu0 0.0
    %3115 = vmatpush1.xpose.msra.mxu0 0.0
    %3116 = vmatprep.subr.mxu0 0.0
    %3117 = vmatpush1.xpose.msra.mxu0 0.0
    %3118 = vmatprep.subr.mxu0 0.0
    %3119 = vmatpush1.xpose.msra.mxu0 0.0
    %3120 = vmatprep.subr.mxu0 0.0
    %3121 = vmatpush1.xpose.msra.mxu0 0.0
    %3122 = vmatprep.subr.mxu0 0.0
    %3123 = vmatpush1.xpose.msra.mxu0 0.0
    %3124 = vmatprep.subr.mxu0 0.0
    %3125 = vmatpush1.xpose.msra.mxu0 0.0
    %3126 = vmatprep.subr.mxu0 0.0
    %3127 = vmatpush1.xpose.msra.mxu0 0.0
    %3128 = vmatprep.subr.mxu0 0.0
    %3129 = vmatpush1.xpose.msra.mxu0 0.0
    %3130 = vmatprep.subr.mxu0 0.0
    %3131 = vmatpush1.xpose.msra.mxu0 0.0
    %3132 = vmatprep.subr.mxu0 0.0
    %3133 = vmatpush1.xpose.msra.mxu0 0.0
    %3134 = vmatprep.subr.mxu0 0.0
    %3135 = vmatpush1.xpose.msra.mxu0 0.0
    %3136 = vmatprep.subr.mxu0 0.0
    %3137 = vmatpush1.xpose.msra.mxu0 0.0
    %3138 = vmatprep.subr.mxu0 0.0
    %3139 = vmatpush1.xpose.msra.mxu0 0.0
    %3140 = vmatprep.subr.mxu0 0.0
    %3141 = vmatpush1.xpose.msra.mxu0 0.0
    %3142 = vmatprep.mubr.f32.mxu0 0.0
    %3143 = vmatmul.mubr.f32.gmra.mrb[0].mxu0 %v3067
    %v3144 = vpop.f32.mrb[0].mxu0
    %v3145 = vadd.f32 0.0, %v3144
    %v3146 = vpop.f32.mrb[0].mxu0
    %3147 = vmatprep.mubr.f32.mxu0 0.0
    %3148 = vmatmul.mubr.f32.gmra.mrb[0].mxu0 %v3070
    %v3149 = vpop.f32.mrb[0].mxu0
    %v3150 = vadd.f32 0.0, %v3149
    %v3151 = vpop.f32.mrb[0].mxu0
    %3152 = vdwg.mxu0
    %v3153 = vmul.f32 %v3058, 0.35355338
    %v3154 = vmul.f32 %v3063, 0.35355338
    %v3155 = vmul.f32 %v3145, 0.35355338
    %v3156 = vmul.f32 %v3150, 0.35355338
    %v3157 = vadd.f32 %v3153, %v242
    %v3158 = vadd.f32 %v3154, %v242
    %v3159 = vadd.f32 %v3155, %v242
    %v3160 = vadd.f32 %v3156, %v242
    %v3161 = vsel %vm787, %v3157, -inf
    %3162 = vmax.xlane.f32.xlu0 %v3161
    %v3163 = vpop.xlane.xlu0 %3162
    %v3164 = vsel %vm787, %v3158, -inf
    %3165 = vmax.xlane.f32.xlu0 %v3164
    %v3166 = vpop.xlane.xlu0 %3165
    %v3167 = vsel %vm787, %v3159, -inf
    %3168 = vmax.xlane.f32.xlu0 %v3167
    %v3169 = vpop.xlane.xlu0 %3168
    %v3170 = vsel %vm787, %v3160, -inf
    %3171 = vmax.xlane.f32.xlu0 %v3170
    %v3172 = vpop.xlane.xlu0 %3171
    %v3173 = vsub.f32 %v3157, %v3163
    %v3174 = vsub.f32 %v3158, %v3166
    %v3175 = vsub.f32 %v3159, %v3169
    %v3176 = vsub.f32 %v3160, %v3172
    %v3177 = vmul.f32 %v3173, 1.442695
    %v3178 = vpow.pop %v3177
    %v3179 = vmul.f32 %v3174, 1.442695
    %v3180 = vpow.pop %v3179
    %v3181 = vmul.f32 %v3175, 1.442695
    %v3182 = vpow.pop %v3181
    %v3183 = vmul.f32 %v3176, 1.442695
    %v3184 = vpow.pop %v3183
    %v3185 = vsel %vm787, %v3178, 0.0
    %3186 = vadd.xlane.f32.xlu0 %v3185
    %v3187 = vpop.xlane.xlu0 %3186
    %v3188 = vsel %vm787, %v3180, 0.0
    %3189 = vadd.xlane.f32.xlu0 %v3188
    %v3190 = vpop.xlane.xlu0 %3189
    %v3191 = vsel %vm787, %v3182, 0.0
    %3192 = vadd.xlane.f32.xlu0 %v3191
    %v3193 = vpop.xlane.xlu0 %3192
    %v3194 = vsel %vm787, %v3184, 0.0
    %3195 = vadd.xlane.f32.xlu0 %v3194
    %v3196 = vpop.xlane.xlu0 %3195
    %v3197 = vrcp.pop %v3187
    %v3198 = vrcp.pop %v3190
    %v3199 = vrcp.pop %v3193
    %v3200 = vrcp.pop %v3196
    %v3201 = vmul.f32 %v3178, %v3197
    %v3202 = vmul.f32 %v3180, %v3198
    %v3203 = vmul.f32 %v3182, %v3199
    %v3204 = vmul.f32 %v3184, %v3200
    %v3205 = vmul.f32 %v2957, %v225
    %v3206 = vmul.f32 %v2962, %v225
    %v3207 = vmul.f32 %v2967, %v225
    %v3208 = vmul.f32 %v2972, %v225
    %v3209 = vmul.f32 %v2859, %v230
    %v3210 = vmul.f32 %v2864, %v230
    %v3211 = vmul.f32 %v2869, %v230
    %v3212 = vmul.f32 %v2874, %v230
    %v3214 = vsel %vm245, %v3209, 0
    %v3217 = vsel %vm245, %v3210, 0
    %3219 = vmatprep.subr.mxu0 0.0
    %3220 = vmatpush1.xpose.msra.mxu0 %v3214
    %3221 = vmatprep.subr.mxu0 0.0
    %3222 = vmatpush1.xpose.msra.mxu0 %v3217
    %3223 = vmatprep.subr.mxu0 0.0
    %3224 = vmatpush1.xpose.msra.mxu0 0.0
    %3225 = vmatprep.subr.mxu0 0.0
    %3226 = vmatpush1.xpose.msra.mxu0 0.0
    %3227 = vmatprep.subr.mxu0 0.0
    %3228 = vmatpush1.xpose.msra.mxu0 0.0
    %3229 = vmatprep.subr.mxu0 0.0
    %3230 = vmatpush1.xpose.msra.mxu0 0.0
    %3231 = vmatprep.subr.mxu0 0.0
    %3232 = vmatpush1.xpose.msra.mxu0 0.0
    %3233 = vmatprep.subr.mxu0 0.0
    %3234 = vmatpush1.xpose.msra.mxu0 0.0
    %3235 = vmatprep.subr.mxu0 0.0
    %3236 = vmatpush1.xpose.msra.mxu0 0.0
    %3237 = vmatprep.subr.mxu0 0.0
    %3238 = vmatpush1.xpose.msra.mxu0 0.0
    %3239 = vmatprep.subr.mxu0 0.0
    %3240 = vmatpush1.xpose.msra.mxu0 0.0
    %3241 = vmatprep.subr.mxu0 0.0
    %3242 = vmatpush1.xpose.msra.mxu0 0.0
    %3243 = vmatprep.subr.mxu0 0.0
    %3244 = vmatpush1.xpose.msra.mxu0 0.0
    %3245 = vmatprep.subr.mxu0 0.0
    %3246 = vmatpush1.xpose.msra.mxu0 0.0
    %3247 = vmatprep.subr.mxu0 0.0
    %3248 = vmatpush1.xpose.msra.mxu0 0.0
    %3249 = vmatprep.subr.mxu0 0.0
    %3250 = vmatpush1.xpose.msra.mxu0 0.0
    %3251 = vmatprep.subr.mxu0 0.0
    %3252 = vmatpush1.xpose.msra.mxu0 0.0
    %3253 = vmatprep.subr.mxu0 0.0
    %3254 = vmatpush1.xpose.msra.mxu0 0.0
    %3255 = vmatprep.subr.mxu0 0.0
    %3256 = vmatpush1.xpose.msra.mxu0 0.0
    %3257 = vmatprep.subr.mxu0 0.0
    %3258 = vmatpush1.xpose.msra.mxu0 0.0
    %3259 = vmatprep.subr.mxu0 0.0
    %3260 = vmatpush1.xpose.msra.mxu0 0.0
    %3261 = vmatprep.subr.mxu0 0.0
    %3262 = vmatpush1.xpose.msra.mxu0 0.0
    %3263 = vmatprep.subr.mxu0 0.0
    %3264 = vmatpush1.xpose.msra.mxu0 0.0
    %3265 = vmatprep.subr.mxu0 0.0
    %3266 = vmatpush1.xpose.msra.mxu0 0.0
    %3267 = vmatprep.subr.mxu0 0.0
    %3268 = vmatpush1.xpose.msra.mxu0 0.0
    %3269 = vmatprep.subr.mxu0 0.0
    %3270 = vmatpush1.xpose.msra.mxu0 0.0
    %3271 = vmatprep.subr.mxu0 0.0
    %3272 = vmatpush1.xpose.msra.mxu0 0.0
    %3273 = vmatprep.subr.mxu0 0.0
    %3274 = vmatpush1.xpose.msra.mxu0 0.0
    %3275 = vmatprep.subr.mxu0 0.0
    %3276 = vmatpush1.xpose.msra.mxu0 0.0
    %3277 = vmatprep.subr.mxu0 0.0
    %3278 = vmatpush1.xpose.msra.mxu0 0.0
    %3279 = vmatprep.subr.mxu0 0.0
    %3280 = vmatpush1.xpose.msra.mxu0 0.0
    %3281 = vmatprep.subr.mxu0 0.0
    %3282 = vmatpush1.xpose.msra.mxu0 0.0
    %3283 = vmatprep.mubr.f32.mxu0 0.0
    %3284 = vmatmul.mubr.f32.gmra.mrb[0].mxu0 %v2980
    %v3285 = vpop.f32.mrb[0].mxu0
    %v3286 = vadd.f32 0.0, %v3285
    %v3287 = vpop.f32.mrb[0].mxu0
    %3288 = vmatprep.mubr.f32.mxu0 0.0
    %3289 = vmatmul.mubr.f32.gmra.mrb[0].mxu0 %v2983
    %v3290 = vpop.f32.mrb[0].mxu0
    %v3291 = vadd.f32 0.0, %v3290
    %v3292 = vpop.f32.mrb[0].mxu0
    %3293 = vdwg.mxu0
    %v3295 = vsel %vm245, %v3211, 0
    %v3298 = vsel %vm245, %v3212, 0
    %3300 = vmatprep.subr.mxu0 0.0
    %3301 = vmatpush1.xpose.msra.mxu0 %v3295
    %3302 = vmatprep.subr.mxu0 0.0
    %3303 = vmatpush1.xpose.msra.mxu0 %v3298
    %3304 = vmatprep.subr.mxu0 0.0
    %3305 = vmatpush1.xpose.msra.mxu0 0.0
    %3306 = vmatprep.subr.mxu0 0.0
    %3307 = vmatpush1.xpose.msra.mxu0 0.0
    %3308 = vmatprep.subr.mxu0 0.0
    %3309 = vmatpush1.xpose.msra.mxu0 0.0
    %3310 = vmatprep.subr.mxu0 0.0
    %3311 = vmatpush1.xpose.msra.mxu0 0.0
    %3312 = vmatprep.subr.mxu0 0.0
    %3313 = vmatpush1.xpose.msra.mxu0 0.0
    %3314 = vmatprep.subr.mxu0 0.0
    %3315 = vmatpush1.xpose.msra.mxu0 0.0
    %3316 = vmatprep.subr.mxu0 0.0
    %3317 = vmatpush1.xpose.msra.mxu0 0.0
    %3318 = vmatprep.subr.mxu0 0.0
    %3319 = vmatpush1.xpose.msra.mxu0 0.0
    %3320 = vmatprep.subr.mxu0 0.0
    %3321 = vmatpush1.xpose.msra.mxu0 0.0
    %3322 = vmatprep.subr.mxu0 0.0
    %3323 = vmatpush1.xpose.msra.mxu0 0.0
    %3324 = vmatprep.subr.mxu0 0.0
    %3325 = vmatpush1.xpose.msra.mxu0 0.0
    %3326 = vmatprep.subr.mxu0 0.0
    %3327 = vmatpush1.xpose.msra.mxu0 0.0
    %3328 = vmatprep.subr.mxu0 0.0
    %3329 = vmatpush1.xpose.msra.mxu0 0.0
    %3330 = vmatprep.subr.mxu0 0.0
    %3331 = vmatpush1.xpose.msra.mxu0 0.0
    %3332 = vmatprep.subr.mxu0 0.0
    %3333 = vmatpush1.xpose.msra.mxu0 0.0
    %3334 = vmatprep.subr.mxu0 0.0
    %3335 = vmatpush1.xpose.msra.mxu0 0.0
    %3336 = vmatprep.subr.mxu0 0.0
    %3337 = vmatpush1.xpose.msra.mxu0 0.0
    %3338 = vmatprep.subr.mxu0 0.0
    %3339 = vmatpush1.xpose.msra.mxu0 0.0
    %3340 = vmatprep.subr.mxu0 0.0
    %3341 = vmatpush1.xpose.msra.mxu0 0.0
    %3342 = vmatprep.subr.mxu0 0.0
    %3343 = vmatpush1.xpose.msra.mxu0 0.0
    %3344 = vmatprep.subr.mxu0 0.0
    %3345 = vmatpush1.xpose.msra.mxu0 0.0
    %3346 = vmatprep.subr.mxu0 0.0
    %3347 = vmatpush1.xpose.msra.mxu0 0.0
    %3348 = vmatprep.subr.mxu0 0.0
    %3349 = vmatpush1.xpose.msra.mxu0 0.0
    %3350 = vmatprep.subr.mxu0 0.0
    %3351 = vmatpush1.xpose.msra.mxu0 0.0
    %3352 = vmatprep.subr.mxu0 0.0
    %3353 = vmatpush1.xpose.msra.mxu0 0.0
    %3354 = vmatprep.subr.mxu0 0.0
    %3355 = vmatpush1.xpose.msra.mxu0 0.0
    %3356 = vmatprep.subr.mxu0 0.0
    %3357 = vmatpush1.xpose.msra.mxu0 0.0
    %3358 = vmatprep.subr.mxu0 0.0
    %3359 = vmatpush1.xpose.msra.mxu0 0.0
    %3360 = vmatprep.subr.mxu0 0.0
    %3361 = vmatpush1.xpose.msra.mxu0 0.0
    %3362 = vmatprep.subr.mxu0 0.0
    %3363 = vmatpush1.xpose.msra.mxu0 0.0
    %3364 = vmatprep.mubr.f32.mxu0 0.0
    %3365 = vmatmul.mubr.f32.gmra.mrb[0].mxu0 %v3067
    %v3366 = vpop.f32.mrb[0].mxu0
    %v3367 = vadd.f32 0.0, %v3366
    %v3368 = vpop.f32.mrb[0].mxu0
    %3369 = vmatprep.mubr.f32.mxu0 0.0
    %3370 = vmatmul.mubr.f32.gmra.mrb[0].mxu0 %v3070
    %v3371 = vpop.f32.mrb[0].mxu0
    %v3372 = vadd.f32 0.0, %v3371
    %v3373 = vpop.f32.mrb[0].mxu0
    %3374 = vdwg.mxu0
    %v3375 = vmul.f32 %v3286, 0.35355338
    %v3376 = vmul.f32 %v3291, 0.35355338
    %v3377 = vmul.f32 %v3367, 0.35355338
    %v3378 = vmul.f32 %v3372, 0.35355338
    %v3379 = vadd.f32 %v3375, %v242
    %v3380 = vadd.f32 %v3376, %v242
    %v3381 = vadd.f32 %v3377, %v242
    %v3382 = vadd.f32 %v3378, %v242
    %v3383 = vsel %vm787, %v3379, -inf
    %3384 = vmax.xlane.f32.xlu0 %v3383
    %v3385 = vpop.xlane.xlu0 %3384
    %v3386 = vsel %vm787, %v3380, -inf
    %3387 = vmax.xlane.f32.xlu0 %v3386
    %v3388 = vpop.xlane.xlu0 %3387
    %v3389 = vsel %vm787, %v3381, -inf
    %3390 = vmax.xlane.f32.xlu0 %v3389
    %v3391 = vpop.xlane.xlu0 %3390
    %v3392 = vsel %vm787, %v3382, -inf
    %3393 = vmax.xlane.f32.xlu0 %v3392
    %v3394 = vpop.xlane.xlu0 %3393
    %v3395 = vsub.f32 %v3379, %v3385
    %v3396 = vsub.f32 %v3380, %v3388
    %v3397 = vsub.f32 %v3381, %v3391
    %v3398 = vsub.f32 %v3382, %v3394
    %v3399 = vmul.f32 %v3395, 1.442695
    %v3400 = vpow.pop %v3399
    %v3401 = vmul.f32 %v3396, 1.442695
    %v3402 = vpow.pop %v3401
    %v3403 = vmul.f32 %v3397, 1.442695
    %v3404 = vpow.pop %v3403
    %v3405 = vmul.f32 %v3398, 1.442695
    %v3406 = vpow.pop %v3405
    %v3407 = vsel %vm787, %v3400, 0.0
    %3408 = vadd.xlane.f32.xlu0 %v3407
    %v3409 = vpop.xlane.xlu0 %3408
    %v3410 = vsel %vm787, %v3402, 0.0
    %3411 = vadd.xlane.f32.xlu0 %v3410
    %v3412 = vpop.xlane.xlu0 %3411
    %v3413 = vsel %vm787, %v3404, 0.0
    %3414 = vadd.xlane.f32.xlu0 %v3413
    %v3415 = vpop.xlane.xlu0 %3414
    %v3416 = vsel %vm787, %v3406, 0.0
    %3417 = vadd.xlane.f32.xlu0 %v3416
    %v3418 = vpop.xlane.xlu0 %3417
    %v3419 = vrcp.pop %v3409
    %v3420 = vrcp.pop %v3412
    %v3421 = vrcp.pop %v3415
    %v3422 = vrcp.pop %v3418
    %v3423 = vmul.f32 %v3400, %v3419
    %v3424 = vmul.f32 %v3402, %v3420
    %v3425 = vmul.f32 %v3404, %v3421
    %v3426 = vmul.f32 %v3406, %v3422
    %v3427 = vmul.f32 %v2957, %v230
    %v3428 = vmul.f32 %v2962, %v230
    %v3429 = vmul.f32 %v2967, %v230
    %v3430 = vmul.f32 %v2972, %v230
    %v3432 = vsel %vm787, %v3423, 0
    %v3435 = vsel %vm787, %v3424, 0
    %3437 = vmatprep.subr.mxu0 0.0
    %3438 = vmatpush1.msra.mxu0 %v3427
    %3439 = vmatprep.subr.mxu0 0.0
    %3440 = vmatpush1.msra.mxu0 %v3428
    %3441 = vmatprep.subr.mxu0 0.0
    %3442 = vmatpush1.msra.mxu0 0.0
    %3443 = vmatprep.subr.mxu0 0.0
    %3444 = vmatpush1.msra.mxu0 0.0
    %3445 = vmatprep.subr.mxu0 0.0
    %3446 = vmatpush1.msra.mxu0 0.0
    %3447 = vmatprep.subr.mxu0 0.0
    %3448 = vmatpush1.msra.mxu0 0.0
    %3449 = vmatprep.subr.mxu0 0.0
    %3450 = vmatpush1.msra.mxu0 0.0
    %3451 = vmatprep.subr.mxu0 0.0
    %3452 = vmatpush1.msra.mxu0 0.0
    %3453 = vmatprep.subr.mxu0 0.0
    %3454 = vmatpush1.msra.mxu0 0.0
    %3455 = vmatprep.subr.mxu0 0.0
    %3456 = vmatpush1.msra.mxu0 0.0
    %3457 = vmatprep.subr.mxu0 0.0
    %3458 = vmatpush1.msra.mxu0 0.0
    %3459 = vmatprep.subr.mxu0 0.0
    %3460 = vmatpush1.msra.mxu0 0.0
    %3461 = vmatprep.subr.mxu0 0.0
    %3462 = vmatpush1.msra.mxu0 0.0
    %3463 = vmatprep.subr.mxu0 0.0
    %3464 = vmatpush1.msra.mxu0 0.0
    %3465 = vmatprep.subr.mxu0 0.0
    %3466 = vmatpush1.msra.mxu0 0.0
    %3467 = vmatprep.subr.mxu0 0.0
    %3468 = vmatpush1.msra.mxu0 0.0
    %3469 = vmatprep.subr.mxu0 0.0
    %3470 = vmatpush1.msra.mxu0 0.0
    %3471 = vmatprep.subr.mxu0 0.0
    %3472 = vmatpush1.msra.mxu0 0.0
    %3473 = vmatprep.subr.mxu0 0.0
    %3474 = vmatpush1.msra.mxu0 0.0
    %3475 = vmatprep.subr.mxu0 0.0
    %3476 = vmatpush1.msra.mxu0 0.0
    %3477 = vmatprep.subr.mxu0 0.0
    %3478 = vmatpush1.msra.mxu0 0.0
    %3479 = vmatprep.subr.mxu0 0.0
    %3480 = vmatpush1.msra.mxu0 0.0
    %3481 = vmatprep.subr.mxu0 0.0
    %3482 = vmatpush1.msra.mxu0 0.0
    %3483 = vmatprep.subr.mxu0 0.0
    %3484 = vmatpush1.msra.mxu0 0.0
    %3485 = vmatprep.subr.mxu0 0.0
    %3486 = vmatpush1.msra.mxu0 0.0
    %3487 = vmatprep.subr.mxu0 0.0
    %3488 = vmatpush1.msra.mxu0 0.0
    %3489 = vmatprep.subr.mxu0 0.0
    %3490 = vmatpush1.msra.mxu0 0.0
    %3491 = vmatprep.subr.mxu0 0.0
    %3492 = vmatpush1.msra.mxu0 0.0
    %3493 = vmatprep.subr.mxu0 0.0
    %3494 = vmatpush1.msra.mxu0 0.0
    %3495 = vmatprep.subr.mxu0 0.0
    %3496 = vmatpush1.msra.mxu0 0.0
    %3497 = vmatprep.subr.mxu0 0.0
    %3498 = vmatpush1.msra.mxu0 0.0
    %3499 = vmatprep.subr.mxu0 0.0
    %3500 = vmatpush1.msra.mxu0 0.0
    %3501 = vmatprep.mubr.f32.mxu0 0.0
    %3502 = vmatmul.mubr.f32.gmra.mrb[0].mxu0 %v3432
    %v3503 = vpop.f32.mrb[0].mxu0
    %v3504 = vadd.f32 0.0, %v3503
    %v3505 = vpop.f32.mrb[0].mxu0
    %3506 = vmatprep.mubr.f32.mxu0 0.0
    %3507 = vmatmul.mubr.f32.gmra.mrb[0].mxu0 %v3435
    %v3508 = vpop.f32.mrb[0].mxu0
    %v3509 = vadd.f32 0.0, %v3508
    %v3510 = vpop.f32.mrb[0].mxu0
    %3511 = vdwg.mxu0
    %v3513 = vsel %vm787, %v3425, 0
    %v3516 = vsel %vm787, %v3426, 0
    %3518 = vmatprep.subr.mxu0 0.0
    %3519 = vmatpush1.msra.mxu0 %v3429
    %3520 = vmatprep.subr.mxu0 0.0
    %3521 = vmatpush1.msra.mxu0 %v3430
    %3522 = vmatprep.subr.mxu0 0.0
    %3523 = vmatpush1.msra.mxu0 0.0
    %3524 = vmatprep.subr.mxu0 0.0
    %3525 = vmatpush1.msra.mxu0 0.0
    %3526 = vmatprep.subr.mxu0 0.0
    %3527 = vmatpush1.msra.mxu0 0.0
    %3528 = vmatprep.subr.mxu0 0.0
    %3529 = vmatpush1.msra.mxu0 0.0
    %3530 = vmatprep.subr.mxu0 0.0
    %3531 = vmatpush1.msra.mxu0 0.0
    %3532 = vmatprep.subr.mxu0 0.0
    %3533 = vmatpush1.msra.mxu0 0.0
    %3534 = vmatprep.subr.mxu0 0.0
    %3535 = vmatpush1.msra.mxu0 0.0
    %3536 = vmatprep.subr.mxu0 0.0
    %3537 = vmatpush1.msra.mxu0 0.0
    %3538 = vmatprep.subr.mxu0 0.0
    %3539 = vmatpush1.msra.mxu0 0.0
    %3540 = vmatprep.subr.mxu0 0.0
    %3541 = vmatpush1.msra.mxu0 0.0
    %3542 = vmatprep.subr.mxu0 0.0
    %3543 = vmatpush1.msra.mxu0 0.0
    %3544 = vmatprep.subr.mxu0 0.0
    %3545 = vmatpush1.msra.mxu0 0.0
    %3546 = vmatprep.subr.mxu0 0.0
    %3547 = vmatpush1.msra.mxu0 0.0
    %3548 = vmatprep.subr.mxu0 0.0
    %3549 = vmatpush1.msra.mxu0 0.0
    %3550 = vmatprep.subr.mxu0 0.0
    %3551 = vmatpush1.msra.mxu0 0.0
    %3552 = vmatprep.subr.mxu0 0.0
    %3553 = vmatpush1.msra.mxu0 0.0
    %3554 = vmatprep.subr.mxu0 0.0
    %3555 = vmatpush1.msra.mxu0 0.0
    %3556 = vmatprep.subr.mxu0 0.0
    %3557 = vmatpush1.msra.mxu0 0.0
    %3558 = vmatprep.subr.mxu0 0.0
    %3559 = vmatpush1.msra.mxu0 0.0
    %3560 = vmatprep.subr.mxu0 0.0
    %3561 = vmatpush1.msra.mxu0 0.0
    %3562 = vmatprep.subr.mxu0 0.0
    %3563 = vmatpush1.msra.mxu0 0.0
    %3564 = vmatprep.subr.mxu0 0.0
    %3565 = vmatpush1.msra.mxu0 0.0
    %3566 = vmatprep.subr.mxu0 0.0
    %3567 = vmatpush1.msra.mxu0 0.0
    %3568 = vmatprep.subr.mxu0 0.0
    %3569 = vmatpush1.msra.mxu0 0.0
    %3570 = vmatprep.subr.mxu0 0.0
    %3571 = vmatpush1.msra.mxu0 0.0
    %3572 = vmatprep.subr.mxu0 0.0
    %3573 = vmatpush1.msra.mxu0 0.0
    %3574 = vmatprep.subr.mxu0 0.0
    %3575 = vmatpush1.msra.mxu0 0.0
    %3576 = vmatprep.subr.mxu0 0.0
    %3577 = vmatpush1.msra.mxu0 0.0
    %3578 = vmatprep.subr.mxu0 0.0
    %3579 = vmatpush1.msra.mxu0 0.0
    %3580 = vmatprep.subr.mxu0 0.0
    %3581 = vmatpush1.msra.mxu0 0.0
    %3582 = vmatprep.mubr.f32.mxu0 0.0
    %3583 = vmatmul.mubr.f32.gmra.mrb[0].mxu0 %v3513
    %v3584 = vpop.f32.mrb[0].mxu0
    %v3585 = vadd.f32 0.0, %v3584
    %v3586 = vpop.f32.mrb[0].mxu0
    %3587 = vmatprep.mubr.f32.mxu0 0.0
    %3588 = vmatmul.mubr.f32.gmra.mrb[0].mxu0 %v3516
    %v3589 = vpop.f32.mrb[0].mxu0
    %v3590 = vadd.f32 0.0, %v3589
    %v3591 = vpop.f32.mrb[0].mxu0
    %3592 = vdwg.mxu0
    %v3594 = vsel %vm787, %v3201, 0
    %v3597 = vsel %vm787, %v3202, 0
    %3599 = vmatprep.subr.mxu0 0.0
    %3600 = vmatpush1.msra.mxu0 %v3205
    %3601 = vmatprep.subr.mxu0 0.0
    %3602 = vmatpush1.msra.mxu0 %v3206
    %3603 = vmatprep.subr.mxu0 0.0
    %3604 = vmatpush1.msra.mxu0 0.0
    %3605 = vmatprep.subr.mxu0 0.0
    %3606 = vmatpush1.msra.mxu0 0.0
    %3607 = vmatprep.subr.mxu0 0.0
    %3608 = vmatpush1.msra.mxu0 0.0
    %3609 = vmatprep.subr.mxu0 0.0
    %3610 = vmatpush1.msra.mxu0 0.0
    %3611 = vmatprep.subr.mxu0 0.0
    %3612 = vmatpush1.msra.mxu0 0.0
    %3613 = vmatprep.subr.mxu0 0.0
    %3614 = vmatpush1.msra.mxu0 0.0
    %3615 = vmatprep.subr.mxu0 0.0
    %3616 = vmatpush1.msra.mxu0 0.0
    %3617 = vmatprep.subr.mxu0 0.0
    %3618 = vmatpush1.msra.mxu0 0.0
    %3619 = vmatprep.subr.mxu0 0.0
    %3620 = vmatpush1.msra.mxu0 0.0
    %3621 = vmatprep.subr.mxu0 0.0
    %3622 = vmatpush1.msra.mxu0 0.0
    %3623 = vmatprep.subr.mxu0 0.0
    %3624 = vmatpush1.msra.mxu0 0.0
    %3625 = vmatprep.subr.mxu0 0.0
    %3626 = vmatpush1.msra.mxu0 0.0
    %3627 = vmatprep.subr.mxu0 0.0
    %3628 = vmatpush1.msra.mxu0 0.0
    %3629 = vmatprep.subr.mxu0 0.0
    %3630 = vmatpush1.msra.mxu0 0.0
    %3631 = vmatprep.subr.mxu0 0.0
    %3632 = vmatpush1.msra.mxu0 0.0
    %3633 = vmatprep.subr.mxu0 0.0
    %3634 = vmatpush1.msra.mxu0 0.0
    %3635 = vmatprep.subr.mxu0 0.0
    %3636 = vmatpush1.msra.mxu0 0.0
    %3637 = vmatprep.subr.mxu0 0.0
    %3638 = vmatpush1.msra.mxu0 0.0
    %3639 = vmatprep.subr.mxu0 0.0
    %3640 = vmatpush1.msra.mxu0 0.0
    %3641 = vmatprep.subr.mxu0 0.0
    %3642 = vmatpush1.msra.mxu0 0.0
    %3643 = vmatprep.subr.mxu0 0.0
    %3644 = vmatpush1.msra.mxu0 0.0
    %3645 = vmatprep.subr.mxu0 0.0
    %3646 = vmatpush1.msra.mxu0 0.0
    %3647 = vmatprep.subr.mxu0 0.0
    %3648 = vmatpush1.msra.mxu0 0.0
    %3649 = vmatprep.subr.mxu0 0.0
    %3650 = vmatpush1.msra.mxu0 0.0
    %3651 = vmatprep.subr.mxu0 0.0
    %3652 = vmatpush1.msra.mxu0 0.0
    %3653 = vmatprep.subr.mxu0 0.0
    %3654 = vmatpush1.msra.mxu0 0.0
    %3655 = vmatprep.subr.mxu0 0.0
    %3656 = vmatpush1.msra.mxu0 0.0
    %3657 = vmatprep.subr.mxu0 0.0
    %3658 = vmatpush1.msra.mxu0 0.0
    %3659 = vmatprep.subr.mxu0 0.0
    %3660 = vmatpush1.msra.mxu0 0.0
    %3661 = vmatprep.subr.mxu0 0.0
    %3662 = vmatpush1.msra.mxu0 0.0
    %3663 = vmatprep.mubr.f32.mxu0 0.0
    %3664 = vmatmul.mubr.f32.gmra.mrb[0].mxu0 %v3594
    %v3665 = vpop.f32.mrb[0].mxu0
    %v3666 = vadd.f32 %v3504, %v3665
    %v3667 = vpop.f32.mrb[0].mxu0
    %3668 = vmatprep.mubr.f32.mxu0 0.0
    %3669 = vmatmul.mubr.f32.gmra.mrb[0].mxu0 %v3597
    %v3670 = vpop.f32.mrb[0].mxu0
    %v3671 = vadd.f32 %v3509, %v3670
    %v3672 = vpop.f32.mrb[0].mxu0
    %3673 = vdwg.mxu0
    %v3675 = vsel %vm787, %v3203, 0
    %v3678 = vsel %vm787, %v3204, 0
    %3680 = vmatprep.subr.mxu0 0.0
    %3681 = vmatpush1.msra.mxu0 %v3207
    %3682 = vmatprep.subr.mxu0 0.0
    %3683 = vmatpush1.msra.mxu0 %v3208
    %3684 = vmatprep.subr.mxu0 0.0
    %3685 = vmatpush1.msra.mxu0 0.0
    %3686 = vmatprep.subr.mxu0 0.0
    %3687 = vmatpush1.msra.mxu0 0.0
    %3688 = vmatprep.subr.mxu0 0.0
    %3689 = vmatpush1.msra.mxu0 0.0
    %3690 = vmatprep.subr.mxu0 0.0
    %3691 = vmatpush1.msra.mxu0 0.0
    %3692 = vmatprep.subr.mxu0 0.0
    %3693 = vmatpush1.msra.mxu0 0.0
    %3694 = vmatprep.subr.mxu0 0.0
    %3695 = vmatpush1.msra.mxu0 0.0
    %3696 = vmatprep.subr.mxu0 0.0
    %3697 = vmatpush1.msra.mxu0 0.0
    %3698 = vmatprep.subr.mxu0 0.0
    %3699 = vmatpush1.msra.mxu0 0.0
    %3700 = vmatprep.subr.mxu0 0.0
    %3701 = vmatpush1.msra.mxu0 0.0
    %3702 = vmatprep.subr.mxu0 0.0
    %3703 = vmatpush1.msra.mxu0 0.0
    %3704 = vmatprep.subr.mxu0 0.0
    %3705 = vmatpush1.msra.mxu0 0.0
    %3706 = vmatprep.subr.mxu0 0.0
    %3707 = vmatpush1.msra.mxu0 0.0
    %3708 = vmatprep.subr.mxu0 0.0
    %3709 = vmatpush1.msra.mxu0 0.0
    %3710 = vmatprep.subr.mxu0 0.0
    %3711 = vmatpush1.msra.mxu0 0.0
    %3712 = vmatprep.subr.mxu0 0.0
    %3713 = vmatpush1.msra.mxu0 0.0
    %3714 = vmatprep.subr.mxu0 0.0
    %3715 = vmatpush1.msra.mxu0 0.0
    %3716 = vmatprep.subr.mxu0 0.0
    %3717 = vmatpush1.msra.mxu0 0.0
    %3718 = vmatprep.subr.mxu0 0.0
    %3719 = vmatpush1.msra.mxu0 0.0
    %3720 = vmatprep.subr.mxu0 0.0
    %3721 = vmatpush1.msra.mxu0 0.0
    %3722 = vmatprep.subr.mxu0 0.0
    %3723 = vmatpush1.msra.mxu0 0.0
    %3724 = vmatprep.subr.mxu0 0.0
    %3725 = vmatpush1.msra.mxu0 0.0
    %3726 = vmatprep.subr.mxu0 0.0
    %3727 = vmatpush1.msra.mxu0 0.0
    %3728 = vmatprep.subr.mxu0 0.0
    %3729 = vmatpush1.msra.mxu0 0.0
    %3730 = vmatprep.subr.mxu0 0.0
    %3731 = vmatpush1.msra.mxu0 0.0
    %3732 = vmatprep.subr.mxu0 0.0
    %3733 = vmatpush1.msra.mxu0 0.0
    %3734 = vmatprep.subr.mxu0 0.0
    %3735 = vmatpush1.msra.mxu0 0.0
    %3736 = vmatprep.subr.mxu0 0.0
    %3737 = vmatpush1.msra.mxu0 0.0
    %3738 = vmatprep.subr.mxu0 0.0
    %3739 = vmatpush1.msra.mxu0 0.0
    %3740 = vmatprep.subr.mxu0 0.0
    %3741 = vmatpush1.msra.mxu0 0.0
    %3742 = vmatprep.subr.mxu0 0.0
    %3743 = vmatpush1.msra.mxu0 0.0
    %3744 = vmatprep.mubr.f32.mxu0 0.0
    %3745 = vmatmul.mubr.f32.gmra.mrb[0].mxu0 %v3675
    %v3746 = vpop.f32.mrb[0].mxu0
    %v3747 = vadd.f32 %v3585, %v3746
    %v3748 = vpop.f32.mrb[0].mxu0
    %3749 = vmatprep.mubr.f32.mxu0 0.0
    %3750 = vmatmul.mubr.f32.gmra.mrb[0].mxu0 %v3678
    %v3751 = vpop.f32.mrb[0].mxu0
    %v3752 = vadd.f32 %v3590, %v3751
    %v3753 = vpop.f32.mrb[0].mxu0
    %3754 = vdwg.mxu0
    %v3755 = vmul.f32 %v2859, %v235
    %v3756 = vmul.f32 %v2864, %v235
    %v3757 = vmul.f32 %v2869, %v235
    %v3758 = vmul.f32 %v2874, %v235
    %v3760 = vsel %vm245, %v3755, 0
    %v3763 = vsel %vm245, %v3756, 0
    %3765 = vmatprep.subr.mxu0 0.0
    %3766 = vmatpush1.xpose.msra.mxu0 %v3760
    %3767 = vmatprep.subr.mxu0 0.0
    %3768 = vmatpush1.xpose.msra.mxu0 %v3763
    %3769 = vmatprep.subr.mxu0 0.0
    %3770 = vmatpush1.xpose.msra.mxu0 0.0
    %3771 = vmatprep.subr.mxu0 0.0
    %3772 = vmatpush1.xpose.msra.mxu0 0.0
    %3773 = vmatprep.subr.mxu0 0.0
    %3774 = vmatpush1.xpose.msra.mxu0 0.0
    %3775 = vmatprep.subr.mxu0 0.0
    %3776 = vmatpush1.xpose.msra.mxu0 0.0
    %3777 = vmatprep.subr.mxu0 0.0
    %3778 = vmatpush1.xpose.msra.mxu0 0.0
    %3779 = vmatprep.subr.mxu0 0.0
    %3780 = vmatpush1.xpose.msra.mxu0 0.0
    %3781 = vmatprep.subr.mxu0 0.0
    %3782 = vmatpush1.xpose.msra.mxu0 0.0
    %3783 = vmatprep.subr.mxu0 0.0
    %3784 = vmatpush1.xpose.msra.mxu0 0.0
    %3785 = vmatprep.subr.mxu0 0.0
    %3786 = vmatpush1.xpose.msra.mxu0 0.0
    %3787 = vmatprep.subr.mxu0 0.0
    %3788 = vmatpush1.xpose.msra.mxu0 0.0
    %3789 = vmatprep.subr.mxu0 0.0
    %3790 = vmatpush1.xpose.msra.mxu0 0.0
    %3791 = vmatprep.subr.mxu0 0.0
    %3792 = vmatpush1.xpose.msra.mxu0 0.0
    %3793 = vmatprep.subr.mxu0 0.0
    %3794 = vmatpush1.xpose.msra.mxu0 0.0
    %3795 = vmatprep.subr.mxu0 0.0
    %3796 = vmatpush1.xpose.msra.mxu0 0.0
    %3797 = vmatprep.subr.mxu0 0.0
    %3798 = vmatpush1.xpose.msra.mxu0 0.0
    %3799 = vmatprep.subr.mxu0 0.0
    %3800 = vmatpush1.xpose.msra.mxu0 0.0
    %3801 = vmatprep.subr.mxu0 0.0
    %3802 = vmatpush1.xpose.msra.mxu0 0.0
    %3803 = vmatprep.subr.mxu0 0.0
    %3804 = vmatpush1.xpose.msra.mxu0 0.0
    %3805 = vmatprep.subr.mxu0 0.0
    %3806 = vmatpush1.xpose.msra.mxu0 0.0
    %3807 = vmatprep.subr.mxu0 0.0
    %3808 = vmatpush1.xpose.msra.mxu0 0.0
    %3809 = vmatprep.subr.mxu0 0.0
    %3810 = vmatpush1.xpose.msra.mxu0 0.0
    %3811 = vmatprep.subr.mxu0 0.0
    %3812 = vmatpush1.xpose.msra.mxu0 0.0
    %3813 = vmatprep.subr.mxu0 0.0
    %3814 = vmatpush1.xpose.msra.mxu0 0.0
    %3815 = vmatprep.subr.mxu0 0.0
    %3816 = vmatpush1.xpose.msra.mxu0 0.0
    %3817 = vmatprep.subr.mxu0 0.0
    %3818 = vmatpush1.xpose.msra.mxu0 0.0
    %3819 = vmatprep.subr.mxu0 0.0
    %3820 = vmatpush1.xpose.msra.mxu0 0.0
    %3821 = vmatprep.subr.mxu0 0.0
    %3822 = vmatpush1.xpose.msra.mxu0 0.0
    %3823 = vmatprep.subr.mxu0 0.0
    %3824 = vmatpush1.xpose.msra.mxu0 0.0
    %3825 = vmatprep.subr.mxu0 0.0
    %3826 = vmatpush1.xpose.msra.mxu0 0.0
    %3827 = vmatprep.subr.mxu0 0.0
    %3828 = vmatpush1.xpose.msra.mxu0 0.0
    %3829 = vmatprep.mubr.f32.mxu0 0.0
    %3830 = vmatmul.mubr.f32.gmra.mrb[0].mxu0 %v2980
    %v3831 = vpop.f32.mrb[0].mxu0
    %v3832 = vadd.f32 0.0, %v3831
    %v3833 = vpop.f32.mrb[0].mxu0
    %3834 = vmatprep.mubr.f32.mxu0 0.0
    %3835 = vmatmul.mubr.f32.gmra.mrb[0].mxu0 %v2983
    %v3836 = vpop.f32.mrb[0].mxu0
    %v3837 = vadd.f32 0.0, %v3836
    %v3838 = vpop.f32.mrb[0].mxu0
    %3839 = vdwg.mxu0
    %v3841 = vsel %vm245, %v3757, 0
    %v3844 = vsel %vm245, %v3758, 0
    %3846 = vmatprep.subr.mxu0 0.0
    %3847 = vmatpush1.xpose.msra.mxu0 %v3841
    %3848 = vmatprep.subr.mxu0 0.0
    %3849 = vmatpush1.xpose.msra.mxu0 %v3844
    %3850 = vmatprep.subr.mxu0 0.0
    %3851 = vmatpush1.xpose.msra.mxu0 0.0
    %3852 = vmatprep.subr.mxu0 0.0
    %3853 = vmatpush1.xpose.msra.mxu0 0.0
    %3854 = vmatprep.subr.mxu0 0.0
    %3855 = vmatpush1.xpose.msra.mxu0 0.0
    %3856 = vmatprep.subr.mxu0 0.0
    %3857 = vmatpush1.xpose.msra.mxu0 0.0
    %3858 = vmatprep.subr.mxu0 0.0
    %3859 = vmatpush1.xpose.msra.mxu0 0.0
    %3860 = vmatprep.subr.mxu0 0.0
    %3861 = vmatpush1.xpose.msra.mxu0 0.0
    %3862 = vmatprep.subr.mxu0 0.0
    %3863 = vmatpush1.xpose.msra.mxu0 0.0
    %3864 = vmatprep.subr.mxu0 0.0
    %3865 = vmatpush1.xpose.msra.mxu0 0.0
    %3866 = vmatprep.subr.mxu0 0.0
    %3867 = vmatpush1.xpose.msra.mxu0 0.0
    %3868 = vmatprep.subr.mxu0 0.0
    %3869 = vmatpush1.xpose.msra.mxu0 0.0
    %3870 = vmatprep.subr.mxu0 0.0
    %3871 = vmatpush1.xpose.msra.mxu0 0.0
    %3872 = vmatprep.subr.mxu0 0.0
    %3873 = vmatpush1.xpose.msra.mxu0 0.0
    %3874 = vmatprep.subr.mxu0 0.0
    %3875 = vmatpush1.xpose.msra.mxu0 0.0
    %3876 = vmatprep.subr.mxu0 0.0
    %3877 = vmatpush1.xpose.msra.mxu0 0.0
    %3878 = vmatprep.subr.mxu0 0.0
    %3879 = vmatpush1.xpose.msra.mxu0 0.0
    %3880 = vmatprep.subr.mxu0 0.0
    %3881 = vmatpush1.xpose.msra.mxu0 0.0
    %3882 = vmatprep.subr.mxu0 0.0
    %3883 = vmatpush1.xpose.msra.mxu0 0.0
    %3884 = vmatprep.subr.mxu0 0.0
    %3885 = vmatpush1.xpose.msra.mxu0 0.0
    %3886 = vmatprep.subr.mxu0 0.0
    %3887 = vmatpush1.xpose.msra.mxu0 0.0
    %3888 = vmatprep.subr.mxu0 0.0
    %3889 = vmatpush1.xpose.msra.mxu0 0.0
    %3890 = vmatprep.subr.mxu0 0.0
    %3891 = vmatpush1.xpose.msra.mxu0 0.0
    %3892 = vmatprep.subr.mxu0 0.0
    %3893 = vmatpush1.xpose.msra.mxu0 0.0
    %3894 = vmatprep.subr.mxu0 0.0
    %3895 = vmatpush1.xpose.msra.mxu0 0.0
    %3896 = vmatprep.subr.mxu0 0.0
    %3897 = vmatpush1.xpose.msra.mxu0 0.0
    %3898 = vmatprep.subr.mxu0 0.0
    %3899 = vmatpush1.xpose.msra.mxu0 0.0
    %3900 = vmatprep.subr.mxu0 0.0
    %3901 = vmatpush1.xpose.msra.mxu0 0.0
    %3902 = vmatprep.subr.mxu0 0.0
    %3903 = vmatpush1.xpose.msra.mxu0 0.0
    %3904 = vmatprep.subr.mxu0 0.0
    %3905 = vmatpush1.xpose.msra.mxu0 0.0
    %3906 = vmatprep.subr.mxu0 0.0
    %3907 = vmatpush1.xpose.msra.mxu0 0.0
    %3908 = vmatprep.subr.mxu0 0.0
    %3909 = vmatpush1.xpose.msra.mxu0 0.0
    %3910 = vmatprep.mubr.f32.mxu0 0.0
    %3911 = vmatmul.mubr.f32.gmra.mrb[0].mxu0 %v3067
    %v3912 = vpop.f32.mrb[0].mxu0
    %v3913 = vadd.f32 0.0, %v3912
    %v3914 = vpop.f32.mrb[0].mxu0
    %3915 = vmatprep.mubr.f32.mxu0 0.0
    %3916 = vmatmul.mubr.f32.gmra.mrb[0].mxu0 %v3070
    %v3917 = vpop.f32.mrb[0].mxu0
    %v3918 = vadd.f32 0.0, %v3917
    %v3919 = vpop.f32.mrb[0].mxu0
    %3920 = vdwg.mxu0
    %v3921 = vmul.f32 %v3832, 0.35355338
    %v3922 = vmul.f32 %v3837, 0.35355338
    %v3923 = vmul.f32 %v3913, 0.35355338
    %v3924 = vmul.f32 %v3918, 0.35355338
    %v3925 = vadd.f32 %v3921, %v242
    %v3926 = vadd.f32 %v3922, %v242
    %v3927 = vadd.f32 %v3923, %v242
    %v3928 = vadd.f32 %v3924, %v242
    %v3929 = vsel %vm787, %v3925, -inf
    %3930 = vmax.xlane.f32.xlu0 %v3929
    %v3931 = vpop.xlane.xlu0 %3930
    %v3932 = vsel %vm787, %v3926, -inf
    %3933 = vmax.xlane.f32.xlu0 %v3932
    %v3934 = vpop.xlane.xlu0 %3933
    %v3935 = vsel %vm787, %v3927, -inf
    %3936 = vmax.xlane.f32.xlu0 %v3935
    %v3937 = vpop.xlane.xlu0 %3936
    %v3938 = vsel %vm787, %v3928, -inf
    %3939 = vmax.xlane.f32.xlu0 %v3938
    %v3940 = vpop.xlane.xlu0 %3939
    %v3941 = vsub.f32 %v3925, %v3931
    %v3942 = vsub.f32 %v3926, %v3934
    %v3943 = vsub.f32 %v3927, %v3937
    %v3944 = vsub.f32 %v3928, %v3940
    %v3945 = vmul.f32 %v3941, 1.442695
    %v3946 = vpow.pop %v3945
    %v3947 = vmul.f32 %v3942, 1.442695
    %v3948 = vpow.pop %v3947
    %v3949 = vmul.f32 %v3943, 1.442695
    %v3950 = vpow.pop %v3949
    %v3951 = vmul.f32 %v3944, 1.442695
    %v3952 = vpow.pop %v3951
    %v3953 = vsel %vm787, %v3946, 0.0
    %3954 = vadd.xlane.f32.xlu0 %v3953
    %v3955 = vpop.xlane.xlu0 %3954
    %v3956 = vsel %vm787, %v3948, 0.0
    %3957 = vadd.xlane.f32.xlu0 %v3956
    %v3958 = vpop.xlane.xlu0 %3957
    %v3959 = vsel %vm787, %v3950, 0.0
    %3960 = vadd.xlane.f32.xlu0 %v3959
    %v3961 = vpop.xlane.xlu0 %3960
    %v3962 = vsel %vm787, %v3952, 0.0
    %3963 = vadd.xlane.f32.xlu0 %v3962
    %v3964 = vpop.xlane.xlu0 %3963
    %v3965 = vrcp.pop %v3955
    %v3966 = vrcp.pop %v3958
    %v3967 = vrcp.pop %v3961
    %v3968 = vrcp.pop %v3964
    %v3969 = vmul.f32 %v3946, %v3965
    %v3970 = vmul.f32 %v3948, %v3966
    %v3971 = vmul.f32 %v3950, %v3967
    %v3972 = vmul.f32 %v3952, %v3968
    %v3973 = vmul.f32 %v2957, %v235
    %v3974 = vmul.f32 %v2962, %v235
    %v3975 = vmul.f32 %v2967, %v235
    %v3976 = vmul.f32 %v2972, %v235
    %v3978 = vsel %vm787, %v3969, 0
    %v3981 = vsel %vm787, %v3970, 0
    %3983 = vmatprep.subr.mxu0 0.0
    %3984 = vmatpush1.msra.mxu0 %v3973
    %3985 = vmatprep.subr.mxu0 0.0
    %3986 = vmatpush1.msra.mxu0 %v3974
    %3987 = vmatprep.subr.mxu0 0.0
    %3988 = vmatpush1.msra.mxu0 0.0
    %3989 = vmatprep.subr.mxu0 0.0
    %3990 = vmatpush1.msra.mxu0 0.0
    %3991 = vmatprep.subr.mxu0 0.0
    %3992 = vmatpush1.msra.mxu0 0.0
    %3993 = vmatprep.subr.mxu0 0.0
    %3994 = vmatpush1.msra.mxu0 0.0
    %3995 = vmatprep.subr.mxu0 0.0
    %3996 = vmatpush1.msra.mxu0 0.0
    %3997 = vmatprep.subr.mxu0 0.0
    %3998 = vmatpush1.msra.mxu0 0.0
    %3999 = vmatprep.subr.mxu0 0.0
    %4000 = vmatpush1.msra.mxu0 0.0
    %4001 = vmatprep.subr.mxu0 0.0
    %4002 = vmatpush1.msra.mxu0 0.0
    %4003 = vmatprep.subr.mxu0 0.0
    %4004 = vmatpush1.msra.mxu0 0.0
    %4005 = vmatprep.subr.mxu0 0.0
    %4006 = vmatpush1.msra.mxu0 0.0
    %4007 = vmatprep.subr.mxu0 0.0
    %4008 = vmatpush1.msra.mxu0 0.0
    %4009 = vmatprep.subr.mxu0 0.0
    %4010 = vmatpush1.msra.mxu0 0.0
    %4011 = vmatprep.subr.mxu0 0.0
    %4012 = vmatpush1.msra.mxu0 0.0
    %4013 = vmatprep.subr.mxu0 0.0
    %4014 = vmatpush1.msra.mxu0 0.0
    %4015 = vmatprep.subr.mxu0 0.0
    %4016 = vmatpush1.msra.mxu0 0.0
    %4017 = vmatprep.subr.mxu0 0.0
    %4018 = vmatpush1.msra.mxu0 0.0
    %4019 = vmatprep.subr.mxu0 0.0
    %4020 = vmatpush1.msra.mxu0 0.0
    %4021 = vmatprep.subr.mxu0 0.0
    %4022 = vmatpush1.msra.mxu0 0.0
    %4023 = vmatprep.subr.mxu0 0.0
    %4024 = vmatpush1.msra.mxu0 0.0
    %4025 = vmatprep.subr.mxu0 0.0
    %4026 = vmatpush1.msra.mxu0 0.0
    %4027 = vmatprep.subr.mxu0 0.0
    %4028 = vmatpush1.msra.mxu0 0.0
    %4029 = vmatprep.subr.mxu0 0.0
    %4030 = vmatpush1.msra.mxu0 0.0
    %4031 = vmatprep.subr.mxu0 0.0
    %4032 = vmatpush1.msra.mxu0 0.0
    %4033 = vmatprep.subr.mxu0 0.0
    %4034 = vmatpush1.msra.mxu0 0.0
    %4035 = vmatprep.subr.mxu0 0.0
    %4036 = vmatpush1.msra.mxu0 0.0
    %4037 = vmatprep.subr.mxu0 0.0
    %4038 = vmatpush1.msra.mxu0 0.0
    %4039 = vmatprep.subr.mxu0 0.0
    %4040 = vmatpush1.msra.mxu0 0.0
    %4041 = vmatprep.subr.mxu0 0.0
    %4042 = vmatpush1.msra.mxu0 0.0
    %4043 = vmatprep.subr.mxu0 0.0
    %4044 = vmatpush1.msra.mxu0 0.0
    %4045 = vmatprep.subr.mxu0 0.0
    %4046 = vmatpush1.msra.mxu0 0.0
    %4047 = vmatprep.mubr.f32.mxu0 0.0
    %4048 = vmatmul.mubr.f32.gmra.mrb[0].mxu0 %v3978
    %v4049 = vpop.f32.mrb[0].mxu0
    %v4050 = vadd.f32 0.0, %v4049
    %v4051 = vpop.f32.mrb[0].mxu0
    %4052 = vmatprep.mubr.f32.mxu0 0.0
    %4053 = vmatmul.mubr.f32.gmra.mrb[0].mxu0 %v3981
    %v4054 = vpop.f32.mrb[0].mxu0
    %v4055 = vadd.f32 0.0, %v4054
    %v4056 = vpop.f32.mrb[0].mxu0
    %4057 = vdwg.mxu0
    %v4059 = vsel %vm787, %v3971, 0
    %v4062 = vsel %vm787, %v3972, 0
    %4064 = vmatprep.subr.mxu0 0.0
    %4065 = vmatpush1.msra.mxu0 %v3975
    %4066 = vmatprep.subr.mxu0 0.0
    %4067 = vmatpush1.msra.mxu0 %v3976
    %4068 = vmatprep.subr.mxu0 0.0
    %4069 = vmatpush1.msra.mxu0 0.0
    %4070 = vmatprep.subr.mxu0 0.0
    %4071 = vmatpush1.msra.mxu0 0.0
    %4072 = vmatprep.subr.mxu0 0.0
    %4073 = vmatpush1.msra.mxu0 0.0
    %4074 = vmatprep.subr.mxu0 0.0
    %4075 = vmatpush1.msra.mxu0 0.0
    %4076 = vmatprep.subr.mxu0 0.0
    %4077 = vmatpush1.msra.mxu0 0.0
    %4078 = vmatprep.subr.mxu0 0.0
    %4079 = vmatpush1.msra.mxu0 0.0
    %4080 = vmatprep.subr.mxu0 0.0
    %4081 = vmatpush1.msra.mxu0 0.0
    %4082 = vmatprep.subr.mxu0 0.0
    %4083 = vmatpush1.msra.mxu0 0.0
    %4084 = vmatprep.subr.mxu0 0.0
    %4085 = vmatpush1.msra.mxu0 0.0
    %4086 = vmatprep.subr.mxu0 0.0
    %4087 = vmatpush1.msra.mxu0 0.0
    %4088 = vmatprep.subr.mxu0 0.0
    %4089 = vmatpush1.msra.mxu0 0.0
    %4090 = vmatprep.subr.mxu0 0.0
    %4091 = vmatpush1.msra.mxu0 0.0
    %4092 = vmatprep.subr.mxu0 0.0
    %4093 = vmatpush1.msra.mxu0 0.0
    %4094 = vmatprep.subr.mxu0 0.0
    %4095 = vmatpush1.msra.mxu0 0.0
    %4096 = vmatprep.subr.mxu0 0.0
    %4097 = vmatpush1.msra.mxu0 0.0
    %4098 = vmatprep.subr.mxu0 0.0
    %4099 = vmatpush1.msra.mxu0 0.0
    %4100 = vmatprep.subr.mxu0 0.0
    %4101 = vmatpush1.msra.mxu0 0.0
    %4102 = vmatprep.subr.mxu0 0.0
    %4103 = vmatpush1.msra.mxu0 0.0
    %4104 = vmatprep.subr.mxu0 0.0
    %4105 = vmatpush1.msra.mxu0 0.0
    %4106 = vmatprep.subr.mxu0 0.0
    %4107 = vmatpush1.msra.mxu0 0.0
    %4108 = vmatprep.subr.mxu0 0.0
    %4109 = vmatpush1.msra.mxu0 0.0
    %4110 = vmatprep.subr.mxu0 0.0
    %4111 = vmatpush1.msra.mxu0 0.0
    %4112 = vmatprep.subr.mxu0 0.0
    %4113 = vmatpush1.msra.mxu0 0.0
    %4114 = vmatprep.subr.mxu0 0.0
    %4115 = vmatpush1.msra.mxu0 0.0
    %4116 = vmatprep.subr.mxu0 0.0
    %4117 = vmatpush1.msra.mxu0 0.0
    %4118 = vmatprep.subr.mxu0 0.0
    %4119 = vmatpush1.msra.mxu0 0.0
    %4120 = vmatprep.subr.mxu0 0.0
    %4121 = vmatpush1.msra.mxu0 0.0
    %4122 = vmatprep.subr.mxu0 0.0
    %4123 = vmatpush1.msra.mxu0 0.0
    %4124 = vmatprep.subr.mxu0 0.0
    %4125 = vmatpush1.msra.mxu0 0.0
    %4126 = vmatprep.subr.mxu0 0.0
    %4127 = vmatpush1.msra.mxu0 0.0
    %4128 = vmatprep.mubr.f32.mxu0 0.0
    %4129 = vmatmul.mubr.f32.gmra.mrb[0].mxu0 %v4059
    %v4130 = vpop.f32.mrb[0].mxu0
    %v4131 = vadd.f32 0.0, %v4130
    %v4132 = vpop.f32.mrb[0].mxu0
    %4133 = vmatprep.mubr.f32.mxu0 0.0
    %4134 = vmatmul.mubr.f32.gmra.mrb[0].mxu0 %v4062
    %v4135 = vpop.f32.mrb[0].mxu0
    %v4136 = vadd.f32 0.0, %v4135
    %v4137 = vpop.f32.mrb[0].mxu0
    %4138 = vdwg.mxu0
    %v4139 = vadd.f32 %v3666, %v4050
    %v4140 = vadd.f32 %v3671, %v4055
    %v4141 = vadd.f32 %v3747, %v4131
    %v4142 = vadd.f32 %v3752, %v4136
    %v4143 = vmul.f32 %v2859, %v240
    %v4144 = vmul.f32 %v2864, %v240
    %v4145 = vmul.f32 %v2869, %v240
    %v4146 = vmul.f32 %v2874, %v240
    %v4148 = vsel %vm245, %v4143, 0
    %v4151 = vsel %vm245, %v4144, 0
    %4153 = vmatprep.subr.mxu0 0.0
    %4154 = vmatpush1.xpose.msra.mxu0 %v4148
    %4155 = vmatprep.subr.mxu0 0.0
    %4156 = vmatpush1.xpose.msra.mxu0 %v4151
    %4157 = vmatprep.subr.mxu0 0.0
    %4158 = vmatpush1.xpose.msra.mxu0 0.0
    %4159 = vmatprep.subr.mxu0 0.0
    %4160 = vmatpush1.xpose.msra.mxu0 0.0
    %4161 = vmatprep.subr.mxu0 0.0
    %4162 = vmatpush1.xpose.msra.mxu0 0.0
    %4163 = vmatprep.subr.mxu0 0.0
    %4164 = vmatpush1.xpose.msra.mxu0 0.0
    %4165 = vmatprep.subr.mxu0 0.0
    %4166 = vmatpush1.xpose.msra.mxu0 0.0
    %4167 = vmatprep.subr.mxu0 0.0
    %4168 = vmatpush1.xpose.msra.mxu0 0.0
    %4169 = vmatprep.subr.mxu0 0.0
    %4170 = vmatpush1.xpose.msra.mxu0 0.0
    %4171 = vmatprep.subr.mxu0 0.0
    %4172 = vmatpush1.xpose.msra.mxu0 0.0
    %4173 = vmatprep.subr.mxu0 0.0
    %4174 = vmatpush1.xpose.msra.mxu0 0.0
    %4175 = vmatprep.subr.mxu0 0.0
    %4176 = vmatpush1.xpose.msra.mxu0 0.0
    %4177 = vmatprep.subr.mxu0 0.0
    %4178 = vmatpush1.xpose.msra.mxu0 0.0
    %4179 = vmatprep.subr.mxu0 0.0
    %4180 = vmatpush1.xpose.msra.mxu0 0.0
    %4181 = vmatprep.subr.mxu0 0.0
    %4182 = vmatpush1.xpose.msra.mxu0 0.0
    %4183 = vmatprep.subr.mxu0 0.0
    %4184 = vmatpush1.xpose.msra.mxu0 0.0
    %4185 = vmatprep.subr.mxu0 0.0
    %4186 = vmatpush1.xpose.msra.mxu0 0.0
    %4187 = vmatprep.subr.mxu0 0.0
    %4188 = vmatpush1.xpose.msra.mxu0 0.0
    %4189 = vmatprep.subr.mxu0 0.0
    %4190 = vmatpush1.xpose.msra.mxu0 0.0
    %4191 = vmatprep.subr.mxu0 0.0
    %4192 = vmatpush1.xpose.msra.mxu0 0.0
    %4193 = vmatprep.subr.mxu0 0.0
    %4194 = vmatpush1.xpose.msra.mxu0 0.0
    %4195 = vmatprep.subr.mxu0 0.0
    %4196 = vmatpush1.xpose.msra.mxu0 0.0
    %4197 = vmatprep.subr.mxu0 0.0
    %4198 = vmatpush1.xpose.msra.mxu0 0.0
    %4199 = vmatprep.subr.mxu0 0.0
    %4200 = vmatpush1.xpose.msra.mxu0 0.0
    %4201 = vmatprep.subr.mxu0 0.0
    %4202 = vmatpush1.xpose.msra.mxu0 0.0
    %4203 = vmatprep.subr.mxu0 0.0
    %4204 = vmatpush1.xpose.msra.mxu0 0.0
    %4205 = vmatprep.subr.mxu0 0.0
    %4206 = vmatpush1.xpose.msra.mxu0 0.0
    %4207 = vmatprep.subr.mxu0 0.0
    %4208 = vmatpush1.xpose.msra.mxu0 0.0
    %4209 = vmatprep.subr.mxu0 0.0
    %4210 = vmatpush1.xpose.msra.mxu0 0.0
    %4211 = vmatprep.subr.mxu0 0.0
    %4212 = vmatpush1.xpose.msra.mxu0 0.0
    %4213 = vmatprep.subr.mxu0 0.0
    %4214 = vmatpush1.xpose.msra.mxu0 0.0
    %4215 = vmatprep.subr.mxu0 0.0
    %4216 = vmatpush1.xpose.msra.mxu0 0.0
    %4217 = vmatprep.mubr.f32.mxu0 0.0
    %4218 = vmatmul.mubr.f32.gmra.mrb[0].mxu0 %v2980
    %v4219 = vpop.f32.mrb[0].mxu0
    %v4220 = vadd.f32 0.0, %v4219
    %v4221 = vpop.f32.mrb[0].mxu0
    %4222 = vmatprep.mubr.f32.mxu0 0.0
    %4223 = vmatmul.mubr.f32.gmra.mrb[0].mxu0 %v2983
    %v4224 = vpop.f32.mrb[0].mxu0
    %v4225 = vadd.f32 0.0, %v4224
    %v4226 = vpop.f32.mrb[0].mxu0
    %4227 = vdwg.mxu0
    %v4229 = vsel %vm245, %v4145, 0
    %v4232 = vsel %vm245, %v4146, 0
    %4234 = vmatprep.subr.mxu0 0.0
    %4235 = vmatpush1.xpose.msra.mxu0 %v4229
    %4236 = vmatprep.subr.mxu0 0.0
    %4237 = vmatpush1.xpose.msra.mxu0 %v4232
    %4238 = vmatprep.subr.mxu0 0.0
    %4239 = vmatpush1.xpose.msra.mxu0 0.0
    %4240 = vmatprep.subr.mxu0 0.0
    %4241 = vmatpush1.xpose.msra.mxu0 0.0
    %4242 = vmatprep.subr.mxu0 0.0
    %4243 = vmatpush1.xpose.msra.mxu0 0.0
    %4244 = vmatprep.subr.mxu0 0.0
    %4245 = vmatpush1.xpose.msra.mxu0 0.0
    %4246 = vmatprep.subr.mxu0 0.0
    %4247 = vmatpush1.xpose.msra.mxu0 0.0
    %4248 = vmatprep.subr.mxu0 0.0
    %4249 = vmatpush1.xpose.msra.mxu0 0.0
    %4250 = vmatprep.subr.mxu0 0.0
    %4251 = vmatpush1.xpose.msra.mxu0 0.0
    %4252 = vmatprep.subr.mxu0 0.0
    %4253 = vmatpush1.xpose.msra.mxu0 0.0
    %4254 = vmatprep.subr.mxu0 0.0
    %4255 = vmatpush1.xpose.msra.mxu0 0.0
    %4256 = vmatprep.subr.mxu0 0.0
    %4257 = vmatpush1.xpose.msra.mxu0 0.0
    %4258 = vmatprep.subr.mxu0 0.0
    %4259 = vmatpush1.xpose.msra.mxu0 0.0
    %4260 = vmatprep.subr.mxu0 0.0
    %4261 = vmatpush1.xpose.msra.mxu0 0.0
    %4262 = vmatprep.subr.mxu0 0.0
    %4263 = vmatpush1.xpose.msra.mxu0 0.0
    %4264 = vmatprep.subr.mxu0 0.0
    %4265 = vmatpush1.xpose.msra.mxu0 0.0
    %4266 = vmatprep.subr.mxu0 0.0
    %4267 = vmatpush1.xpose.msra.mxu0 0.0
    %4268 = vmatprep.subr.mxu0 0.0
    %4269 = vmatpush1.xpose.msra.mxu0 0.0
    %4270 = vmatprep.subr.mxu0 0.0
    %4271 = vmatpush1.xpose.msra.mxu0 0.0
    %4272 = vmatprep.subr.mxu0 0.0
    %4273 = vmatpush1.xpose.msra.mxu0 0.0
    %4274 = vmatprep.subr.mxu0 0.0
    %4275 = vmatpush1.xpose.msra.mxu0 0.0
    %4276 = vmatprep.subr.mxu0 0.0
    %4277 = vmatpush1.xpose.msra.mxu0 0.0
    %4278 = vmatprep.subr.mxu0 0.0
    %4279 = vmatpush1.xpose.msra.mxu0 0.0
    %4280 = vmatprep.subr.mxu0 0.0
    %4281 = vmatpush1.xpose.msra.mxu0 0.0
    %4282 = vmatprep.subr.mxu0 0.0
    %4283 = vmatpush1.xpose.msra.mxu0 0.0
    %4284 = vmatprep.subr.mxu0 0.0
    %4285 = vmatpush1.xpose.msra.mxu0 0.0
    %4286 = vmatprep.subr.mxu0 0.0
    %4287 = vmatpush1.xpose.msra.mxu0 0.0
    %4288 = vmatprep.subr.mxu0 0.0
    %4289 = vmatpush1.xpose.msra.mxu0 0.0
    %4290 = vmatprep.subr.mxu0 0.0
    %4291 = vmatpush1.xpose.msra.mxu0 0.0
    %4292 = vmatprep.subr.mxu0 0.0
    %4293 = vmatpush1.xpose.msra.mxu0 0.0
    %4294 = vmatprep.subr.mxu0 0.0
    %4295 = vmatpush1.xpose.msra.mxu0 0.0
    %4296 = vmatprep.subr.mxu0 0.0
    %4297 = vmatpush1.xpose.msra.mxu0 0.0
    %4298 = vmatprep.mubr.f32.mxu0 0.0
    %4299 = vmatmul.mubr.f32.gmra.mrb[0].mxu0 %v3067
    %v4300 = vpop.f32.mrb[0].mxu0
    %v4301 = vadd.f32 0.0, %v4300
    %v4302 = vpop.f32.mrb[0].mxu0
    %4303 = vmatprep.mubr.f32.mxu0 0.0
    %4304 = vmatmul.mubr.f32.gmra.mrb[0].mxu0 %v3070
    %v4305 = vpop.f32.mrb[0].mxu0
    %v4306 = vadd.f32 0.0, %v4305
    %v4307 = vpop.f32.mrb[0].mxu0
    %4308 = vdwg.mxu0
    %v4309 = vmul.f32 %v4220, 0.35355338
    %v4310 = vmul.f32 %v4225, 0.35355338
    %v4311 = vmul.f32 %v4301, 0.35355338
    %v4312 = vmul.f32 %v4306, 0.35355338
    %v4313 = vadd.f32 %v4309, %v242
    %v4314 = vadd.f32 %v4310, %v242
    %v4315 = vadd.f32 %v4311, %v242
    %v4316 = vadd.f32 %v4312, %v242
    %v4317 = vsel %vm787, %v4313, -inf
    %4318 = vmax.xlane.f32.xlu0 %v4317
    %v4319 = vpop.xlane.xlu0 %4318
    %v4320 = vsel %vm787, %v4314, -inf
    %4321 = vmax.xlane.f32.xlu0 %v4320
    %v4322 = vpop.xlane.xlu0 %4321
    %v4323 = vsel %vm787, %v4315, -inf
    %4324 = vmax.xlane.f32.xlu0 %v4323
    %v4325 = vpop.xlane.xlu0 %4324
    %v4326 = vsel %vm787, %v4316, -inf
    %4327 = vmax.xlane.f32.xlu0 %v4326
    %v4328 = vpop.xlane.xlu0 %4327
    %v4329 = vsub.f32 %v4313, %v4319
    %v4330 = vsub.f32 %v4314, %v4322
    %v4331 = vsub.f32 %v4315, %v4325
    %v4332 = vsub.f32 %v4316, %v4328
    %v4333 = vmul.f32 %v4329, 1.442695
    %v4334 = vpow.pop %v4333
    %v4335 = vmul.f32 %v4330, 1.442695
    %v4336 = vpow.pop %v4335
    %v4337 = vmul.f32 %v4331, 1.442695
    %v4338 = vpow.pop %v4337
    %v4339 = vmul.f32 %v4332, 1.442695
    %v4340 = vpow.pop %v4339
    %v4341 = vsel %vm787, %v4334, 0.0
    %4342 = vadd.xlane.f32.xlu0 %v4341
    %v4343 = vpop.xlane.xlu0 %4342
    %v4344 = vsel %vm787, %v4336, 0.0
    %4345 = vadd.xlane.f32.xlu0 %v4344
    %v4346 = vpop.xlane.xlu0 %4345
    %v4347 = vsel %vm787, %v4338, 0.0
    %4348 = vadd.xlane.f32.xlu0 %v4347
    %v4349 = vpop.xlane.xlu0 %4348
    %v4350 = vsel %vm787, %v4340, 0.0
    %4351 = vadd.xlane.f32.xlu0 %v4350
    %v4352 = vpop.xlane.xlu0 %4351
    %v4353 = vrcp.pop %v4343
    %v4354 = vrcp.pop %v4346
    %v4355 = vrcp.pop %v4349
    %v4356 = vrcp.pop %v4352
    %v4357 = vmul.f32 %v4334, %v4353
    %v4358 = vmul.f32 %v4336, %v4354
    %v4359 = vmul.f32 %v4338, %v4355
    %v4360 = vmul.f32 %v4340, %v4356
    %v4361 = vmul.f32 %v2957, %v240
    %v4362 = vmul.f32 %v2962, %v240
    %v4363 = vmul.f32 %v2967, %v240
    %v4364 = vmul.f32 %v2972, %v240
    %v4366 = vsel %vm787, %v4357, 0
    %v4369 = vsel %vm787, %v4358, 0
    %4371 = vmatprep.subr.mxu0 0.0
    %4372 = vmatpush1.msra.mxu0 %v4361
    %4373 = vmatprep.subr.mxu0 0.0
    %4374 = vmatpush1.msra.mxu0 %v4362
    %4375 = vmatprep.subr.mxu0 0.0
    %4376 = vmatpush1.msra.mxu0 0.0
    %4377 = vmatprep.subr.mxu0 0.0
    %4378 = vmatpush1.msra.mxu0 0.0
    %4379 = vmatprep.subr.mxu0 0.0
    %4380 = vmatpush1.msra.mxu0 0.0
    %4381 = vmatprep.subr.mxu0 0.0
    %4382 = vmatpush1.msra.mxu0 0.0
    %4383 = vmatprep.subr.mxu0 0.0
    %4384 = vmatpush1.msra.mxu0 0.0
    %4385 = vmatprep.subr.mxu0 0.0
    %4386 = vmatpush1.msra.mxu0 0.0
    %4387 = vmatprep.subr.mxu0 0.0
    %4388 = vmatpush1.msra.mxu0 0.0
    %4389 = vmatprep.subr.mxu0 0.0
    %4390 = vmatpush1.msra.mxu0 0.0
    %4391 = vmatprep.subr.mxu0 0.0
    %4392 = vmatpush1.msra.mxu0 0.0
    %4393 = vmatprep.subr.mxu0 0.0
    %4394 = vmatpush1.msra.mxu0 0.0
    %4395 = vmatprep.subr.mxu0 0.0
    %4396 = vmatpush1.msra.mxu0 0.0
    %4397 = vmatprep.subr.mxu0 0.0
    %4398 = vmatpush1.msra.mxu0 0.0
    %4399 = vmatprep.subr.mxu0 0.0
    %4400 = vmatpush1.msra.mxu0 0.0
    %4401 = vmatprep.subr.mxu0 0.0
    %4402 = vmatpush1.msra.mxu0 0.0
    %4403 = vmatprep.subr.mxu0 0.0
    %4404 = vmatpush1.msra.mxu0 0.0
    %4405 = vmatprep.subr.mxu0 0.0
    %4406 = vmatpush1.msra.mxu0 0.0
    %4407 = vmatprep.subr.mxu0 0.0
    %4408 = vmatpush1.msra.mxu0 0.0
    %4409 = vmatprep.subr.mxu0 0.0
    %4410 = vmatpush1.msra.mxu0 0.0
    %4411 = vmatprep.subr.mxu0 0.0
    %4412 = vmatpush1.msra.mxu0 0.0
    %4413 = vmatprep.subr.mxu0 0.0
    %4414 = vmatpush1.msra.mxu0 0.0
    %4415 = vmatprep.subr.mxu0 0.0
    %4416 = vmatpush1.msra.mxu0 0.0
    %4417 = vmatprep.subr.mxu0 0.0
    %4418 = vmatpush1.msra.mxu0 0.0
    %4419 = vmatprep.subr.mxu0 0.0
    %4420 = vmatpush1.msra.mxu0 0.0
    %4421 = vmatprep.subr.mxu0 0.0
    %4422 = vmatpush1.msra.mxu0 0.0
    %4423 = vmatprep.subr.mxu0 0.0
    %4424 = vmatpush1.msra.mxu0 0.0
    %4425 = vmatprep.subr.mxu0 0.0
    %4426 = vmatpush1.msra.mxu0 0.0
    %4427 = vmatprep.subr.mxu0 0.0
    %4428 = vmatpush1.msra.mxu0 0.0
    %4429 = vmatprep.subr.mxu0 0.0
    %4430 = vmatpush1.msra.mxu0 0.0
    %4431 = vmatprep.subr.mxu0 0.0
    %4432 = vmatpush1.msra.mxu0 0.0
    %4433 = vmatprep.subr.mxu0 0.0
    %4434 = vmatpush1.msra.mxu0 0.0
    %4435 = vmatprep.mubr.f32.mxu0 0.0
    %4436 = vmatmul.mubr.f32.gmra.mrb[0].mxu0 %v4366
    %v4437 = vpop.f32.mrb[0].mxu0
    %v4438 = vadd.f32 0.0, %v4437
    %v4439 = vpop.f32.mrb[0].mxu0
    %4440 = vmatprep.mubr.f32.mxu0 0.0
    %4441 = vmatmul.mubr.f32.gmra.mrb[0].mxu0 %v4369
    %v4442 = vpop.f32.mrb[0].mxu0
    %v4443 = vadd.f32 0.0, %v4442
    %v4444 = vpop.f32.mrb[0].mxu0
    %4445 = vdwg.mxu0
    %v4447 = vsel %vm787, %v4359, 0
    %v4450 = vsel %vm787, %v4360, 0
    %4452 = vmatprep.subr.mxu0 0.0
    %4453 = vmatpush1.msra.mxu0 %v4363
    %4454 = vmatprep.subr.mxu0 0.0
    %4455 = vmatpush1.msra.mxu0 %v4364
    %4456 = vmatprep.subr.mxu0 0.0
    %4457 = vmatpush1.msra.mxu0 0.0
    %4458 = vmatprep.subr.mxu0 0.0
    %4459 = vmatpush1.msra.mxu0 0.0
    %4460 = vmatprep.subr.mxu0 0.0
    %4461 = vmatpush1.msra.mxu0 0.0
    %4462 = vmatprep.subr.mxu0 0.0
    %4463 = vmatpush1.msra.mxu0 0.0
    %4464 = vmatprep.subr.mxu0 0.0
    %4465 = vmatpush1.msra.mxu0 0.0
    %4466 = vmatprep.subr.mxu0 0.0
    %4467 = vmatpush1.msra.mxu0 0.0
    %4468 = vmatprep.subr.mxu0 0.0
    %4469 = vmatpush1.msra.mxu0 0.0
    %4470 = vmatprep.subr.mxu0 0.0
    %4471 = vmatpush1.msra.mxu0 0.0
    %4472 = vmatprep.subr.mxu0 0.0
    %4473 = vmatpush1.msra.mxu0 0.0
    %4474 = vmatprep.subr.mxu0 0.0
    %4475 = vmatpush1.msra.mxu0 0.0
    %4476 = vmatprep.subr.mxu0 0.0
    %4477 = vmatpush1.msra.mxu0 0.0
    %4478 = vmatprep.subr.mxu0 0.0
    %4479 = vmatpush1.msra.mxu0 0.0
    %4480 = vmatprep.subr.mxu0 0.0
    %4481 = vmatpush1.msra.mxu0 0.0
    %4482 = vmatprep.subr.mxu0 0.0
    %4483 = vmatpush1.msra.mxu0 0.0
    %4484 = vmatprep.subr.mxu0 0.0
    %4485 = vmatpush1.msra.mxu0 0.0
    %4486 = vmatprep.subr.mxu0 0.0
    %4487 = vmatpush1.msra.mxu0 0.0
    %4488 = vmatprep.subr.mxu0 0.0
    %4489 = vmatpush1.msra.mxu0 0.0
    %4490 = vmatprep.subr.mxu0 0.0
    %4491 = vmatpush1.msra.mxu0 0.0
    %4492 = vmatprep.subr.mxu0 0.0
    %4493 = vmatpush1.msra.mxu0 0.0
    %4494 = vmatprep.subr.mxu0 0.0
    %4495 = vmatpush1.msra.mxu0 0.0
    %4496 = vmatprep.subr.mxu0 0.0
    %4497 = vmatpush1.msra.mxu0 0.0
    %4498 = vmatprep.subr.mxu0 0.0
    %4499 = vmatpush1.msra.mxu0 0.0
    %4500 = vmatprep.subr.mxu0 0.0
    %4501 = vmatpush1.msra.mxu0 0.0
    %4502 = vmatprep.subr.mxu0 0.0
    %4503 = vmatpush1.msra.mxu0 0.0
    %4504 = vmatprep.subr.mxu0 0.0
    %4505 = vmatpush1.msra.mxu0 0.0
    %4506 = vmatprep.subr.mxu0 0.0
    %4507 = vmatpush1.msra.mxu0 0.0
    %4508 = vmatprep.subr.mxu0 0.0
    %4509 = vmatpush1.msra.mxu0 0.0
    %4510 = vmatprep.subr.mxu0 0.0
    %4511 = vmatpush1.msra.mxu0 0.0
    %4512 = vmatprep.subr.mxu0 0.0
    %4513 = vmatpush1.msra.mxu0 0.0
    %4514 = vmatprep.subr.mxu0 0.0
    %4515 = vmatpush1.msra.mxu0 0.0
    %4516 = vmatprep.mubr.f32.mxu0 0.0
    %4517 = vmatmul.mubr.f32.gmra.mrb[0].mxu0 %v4447
    %v4518 = vpop.f32.mrb[0].mxu0
    %v4519 = vadd.f32 0.0, %v4518
    %v4520 = vpop.f32.mrb[0].mxu0
    %4521 = vmatprep.mubr.f32.mxu0 0.0
    %4522 = vmatmul.mubr.f32.gmra.mrb[0].mxu0 %v4450
    %v4523 = vpop.f32.mrb[0].mxu0
    %v4524 = vadd.f32 0.0, %v4523
    %v4525 = vpop.f32.mrb[0].mxu0
    %4526 = vdwg.mxu0
    %v4527 = vadd.f32 %v4139, %v4438
    %v4528 = vadd.f32 %v4140, %v4443
    %v4529 = vadd.f32 %v4141, %v4519
    %v4530 = vadd.f32 %v4142, %v4524
    %s4531 = scalar_lea.vmem %s13, 32
    %v4532 = vld [vmem:[%s4531] sm:$0xff]
    %v4533 = vld [vmem:[%s4531 + $0x8] sm:$0xff]
    %v4534 = vld [vmem:[%s4531 + $0x10] sm:$0xff]
    %v4535 = vld [vmem:[%s4531 + $0x18] sm:$0xff]
    %s4536 = scalar_lea.vmem %s14, 1
    %v4537 = vld [vmem:[%s4536] sm:$0x1]
    %v4539 = vlaneseq
    %v4540 = vshrl.u32 %v4539, 7
    %v4541 = vsub.s32 0, %v4540
    %v4542 = vrot.slane %v4537, %v4541
    %v4545 = vsel %vm245, %v4527, 0
    %v4548 = vsel %vm245, %v4528, 0
    %v4551 = vsel %vm245, %v4529, 0
    %v4554 = vsel %vm245, %v4530, 0
    %4556 = vmatprep.subr.mxu0 0.0
    %4557 = vmatpush1.msra.mxu0 %v4532
    %4558 = vmatprep.subr.mxu0 0.0
    %4559 = vmatpush1.msra.mxu0 %v4533
    %4560 = vmatprep.subr.mxu0 0.0
    %4561 = vmatpush1.msra.mxu0 %v4534
    %4562 = vmatprep.subr.mxu0 0.0
    %4563 = vmatpush1.msra.mxu0 %v4535
    %4564 = vmatprep.subr.mxu0 0.0
    %4565 = vmatpush1.msra.mxu0 0.0
    %4566 = vmatprep.subr.mxu0 0.0
    %4567 = vmatpush1.msra.mxu0 0.0
    %4568 = vmatprep.subr.mxu0 0.0
    %4569 = vmatpush1.msra.mxu0 0.0
    %4570 = vmatprep.subr.mxu0 0.0
    %4571 = vmatpush1.msra.mxu0 0.0
    %4572 = vmatprep.subr.mxu0 0.0
    %4573 = vmatpush1.msra.mxu0 0.0
    %4574 = vmatprep.subr.mxu0 0.0
    %4575 = vmatpush1.msra.mxu0 0.0
    %4576 = vmatprep.subr.mxu0 0.0
    %4577 = vmatpush1.msra.mxu0 0.0
    %4578 = vmatprep.subr.mxu0 0.0
    %4579 = vmatpush1.msra.mxu0 0.0
    %4580 = vmatprep.subr.mxu0 0.0
    %4581 = vmatpush1.msra.mxu0 0.0
    %4582 = vmatprep.subr.mxu0 0.0
    %4583 = vmatpush1.msra.mxu0 0.0
    %4584 = vmatprep.subr.mxu0 0.0
    %4585 = vmatpush1.msra.mxu0 0.0
    %4586 = vmatprep.subr.mxu0 0.0
    %4587 = vmatpush1.msra.mxu0 0.0
    %4588 = vmatprep.subr.mxu0 0.0
    %4589 = vmatpush1.msra.mxu0 0.0
    %4590 = vmatprep.subr.mxu0 0.0
    %4591 = vmatpush1.msra.mxu0 0.0
    %4592 = vmatprep.subr.mxu0 0.0
    %4593 = vmatpush1.msra.mxu0 0.0
    %4594 = vmatprep.subr.mxu0 0.0
    %4595 = vmatpush1.msra.mxu0 0.0
    %4596 = vmatprep.subr.mxu0 0.0
    %4597 = vmatpush1.msra.mxu0 0.0
    %4598 = vmatprep.subr.mxu0 0.0
    %4599 = vmatpush1.msra.mxu0 0.0
    %4600 = vmatprep.subr.mxu0 0.0
    %4601 = vmatpush1.msra.mxu0 0.0
    %4602 = vmatprep.subr.mxu0 0.0
    %4603 = vmatpush1.msra.mxu0 0.0
    %4604 = vmatprep.subr.mxu0 0.0
    %4605 = vmatpush1.msra.mxu0 0.0
    %4606 = vmatprep.subr.mxu0 0.0
    %4607 = vmatpush1.msra.mxu0 0.0
    %4608 = vmatprep.subr.mxu0 0.0
    %4609 = vmatpush1.msra.mxu0 0.0
    %4610 = vmatprep.subr.mxu0 0.0
    %4611 = vmatpush1.msra.mxu0 0.0
    %4612 = vmatprep.subr.mxu0 0.0
    %4613 = vmatpush1.msra.mxu0 0.0
    %4614 = vmatprep.subr.mxu0 0.0
    %4615 = vmatpush1.msra.mxu0 0.0
    %4616 = vmatprep.subr.mxu0 0.0
    %4617 = vmatpush1.msra.mxu0 0.0
    %4618 = vmatprep.subr.mxu0 0.0
    %4619 = vmatpush1.msra.mxu0 0.0
    %4620 = vmatprep.mubr.f32.mxu0 0.0
    %4621 = vmatmul.mubr.f32.gmra.mrb[0].mxu0 %v4545
    %v4622 = vpop.f32.mrb[0].mxu0
    %v4623 = vadd.f32 %v4542, %v4622
    %v4624 = vpop.f32.mrb[0].mxu0
    %4625 = vmatprep.mubr.f32.mxu0 0.0
    %4626 = vmatmul.mubr.f32.gmra.mrb[0].mxu0 %v4548
    %v4627 = vpop.f32.mrb[0].mxu0
    %v4628 = vadd.f32 %v4542, %v4627
    %v4629 = vpop.f32.mrb[0].mxu0
    %4630 = vmatprep.mubr.f32.mxu0 0.0
    %4631 = vmatmul.mubr.f32.gmra.mrb[0].mxu0 %v4551
    %v4632 = vpop.f32.mrb[0].mxu0
    %v4633 = vadd.f32 %v4542, %v4632
    %v4634 = vpop.f32.mrb[0].mxu0
    %4635 = vmatprep.mubr.f32.mxu0 0.0
    %4636 = vmatmul.mubr.f32.gmra.mrb[0].mxu0 %v4554
    %v4637 = vpop.f32.mrb[0].mxu0
    %v4638 = vadd.f32 %v4542, %v4637
    %v4639 = vpop.f32.mrb[0].mxu0
    %4640 = vdwg.mxu0
    %v4641 = vadd.f32 %v2589, %v4623
    %v4642 = vadd.f32 %v2590, %v4628
    %v4643 = vadd.f32 %v2591, %v4633
    %v4644 = vadd.f32 %v2592, %v4638
    %s4645 = scalar_lea.vmem %s15, 1
    %v4646 = vld [vmem:[%s4645] sm:$0x1]
    %s4647 = scalar_lea.vmem %s16, 1
    %v4648 = vld [vmem:[%s4647] sm:$0x1]
    %v4649 = vsel %vm245, %v4641, 0.0
    %4650 = vadd.xlane.f32.xlu0 %v4649
    %v4651 = vpop.xlane.xlu0 %4650
    %v4652 = vsel %vm245, %v4642, 0.0
    %4653 = vadd.xlane.f32.xlu0 %v4652
    %v4654 = vpop.xlane.xlu0 %4653
    %v4655 = vsel %vm245, %v4643, 0.0
    %4656 = vadd.xlane.f32.xlu0 %v4655
    %v4657 = vpop.xlane.xlu0 %4656
    %v4658 = vsel %vm245, %v4644, 0.0
    %4659 = vadd.xlane.f32.xlu0 %v4658
    %v4660 = vpop.xlane.xlu0 %4659
    %v4661 = vmul.f32 %v4651, %v255
    %v4662 = vmul.f32 %v4654, %v255
    %v4663 = vmul.f32 %v4657, %v255
    %v4664 = vmul.f32 %v4660, %v255
    %v4665 = vsub.f32 %v4641, %v4661
    %v4666 = vsub.f32 %v4642, %v4662
    %v4667 = vsub.f32 %v4643, %v4663
    %v4668 = vsub.f32 %v4644, %v4664
    %v4669 = vmul.f32 %v4665, %v4665
    %v4670 = vmul.f32 %v4666, %v4666
    %v4671 = vmul.f32 %v4667, %v4667
    %v4672 = vmul.f32 %v4668, %v4668
    %v4673 = vsel %vm245, %v4669, 0.0
    %4674 = vadd.xlane.f32.xlu0 %v4673
    %v4675 = vpop.xlane.xlu0 %4674
    %v4676 = vsel %vm245, %v4670, 0.0
    %4677 = vadd.xlane.f32.xlu0 %v4676
    %v4678 = vpop.xlane.xlu0 %4677
    %v4679 = vsel %vm245, %v4671, 0.0
    %4680 = vadd.xlane.f32.xlu0 %v4679
    %v4681 = vpop.xlane.xlu0 %4680
    %v4682 = vsel %vm245, %v4672, 0.0
    %4683 = vadd.xlane.f32.xlu0 %v4682
    %v4684 = vpop.xlane.xlu0 %4683
    %v4685 = vmul.f32 %v4675, %v255
    %v4686 = vmul.f32 %v4678, %v255
    %v4687 = vmul.f32 %v4681, %v255
    %v4688 = vmul.f32 %v4684, %v255
    %v4689 = vadd.f32 %v4685, 1e-05
    %v4690 = vadd.f32 %v4686, 1e-05
    %v4691 = vadd.f32 %v4687, 1e-05
    %v4692 = vadd.f32 %v4688, 1e-05
    %v4693 = vrsqrt.pop %v4689
    %v4694 = vrsqrt.pop %v4690
    %v4695 = vrsqrt.pop %v4691
    %v4696 = vrsqrt.pop %v4692
    %v4697 = vmul.f32 %v4665, %v4693
    %v4698 = vmul.f32 %v4666, %v4694
    %v4699 = vmul.f32 %v4667, %v4695
    %v4700 = vmul.f32 %v4668, %v4696
    %v4702 = vlaneseq
    %v4703 = vshrl.u32 %v4702, 7
    %v4704 = vsub.s32 0, %v4703
    %v4705 = vrot.slane %v4646, %v4704
    %v4707 = vmul.f32 %v4697, %v4705
    %v4708 = vmul.f32 %v4698, %v4705
    %v4709 = vmul.f32 %v4699, %v4705
    %v4710 = vmul.f32 %v4700, %v4705
    %v4712 = vlaneseq
    %v4713 = vshrl.u32 %v4712, 7
    %v4714 = vsub.s32 0, %v4713
    %v4715 = vrot.slane %v4648, %v4714
    %v4717 = vadd.f32 %v4707, %v4715
    %v4718 = vadd.f32 %v4708, %v4715
    %v4719 = vadd.f32 %v4709, %v4715
    %v4720 = vadd.f32 %v4710, %v4715
    %s4721 = scalar_lea.vmem %s17, 32
    %v4722 = vld [vmem:[%s4721] sm:$0xff]
    %v4723 = vld [vmem:[%s4721 + $0x8] sm:$0xff]
    %v4724 = vld [vmem:[%s4721 + $0x10] sm:$0xff]
    %v4725 = vld [vmem:[%s4721 + $0x18] sm:$0xff]
    %s4726 = scalar_lea.vmem %s18, 1
    %v4727 = vld [vmem:[%s4726] sm:$0x1]
    %v4729 = vlaneseq
    %v4730 = vshrl.u32 %v4729, 7
    %v4731 = vsub.s32 0, %v4730
    %v4732 = vrot.slane %v4727, %v4731
    %v4735 = vsel %vm245, %v4717, 0
    %v4738 = vsel %vm245, %v4718, 0
    %v4741 = vsel %vm245, %v4719, 0
    %v4744 = vsel %vm245, %v4720, 0
    %4746 = vmatprep.subr.mxu0 0.0
    %4747 = vmatpush1.msra.mxu0 %v4722
    %4748 = vmatprep.subr.mxu0 0.0
    %4749 = vmatpush1.msra.mxu0 %v4723
    %4750 = vmatprep.subr.mxu0 0.0
    %4751 = vmatpush1.msra.mxu0 %v4724
    %4752 = vmatprep.subr.mxu0 0.0
    %4753 = vmatpush1.msra.mxu0 %v4725
    %4754 = vmatprep.subr.mxu0 0.0
    %4755 = vmatpush1.msra.mxu0 0.0
    %4756 = vmatprep.subr.mxu0 0.0
    %4757 = vmatpush1.msra.mxu0 0.0
    %4758 = vmatprep.subr.mxu0 0.0
    %4759 = vmatpush1.msra.mxu0 0.0
    %4760 = vmatprep.subr.mxu0 0.0
    %4761 = vmatpush1.msra.mxu0 0.0
    %4762 = vmatprep.subr.mxu0 0.0
    %4763 = vmatpush1.msra.mxu0 0.0
    %4764 = vmatprep.subr.mxu0 0.0
    %4765 = vmatpush1.msra.mxu0 0.0
    %4766 = vmatprep.subr.mxu0 0.0
    %4767 = vmatpush1.msra.mxu0 0.0
    %4768 = vmatprep.subr.mxu0 0.0
    %4769 = vmatpush1.msra.mxu0 0.0
    %4770 = vmatprep.subr.mxu0 0.0
    %4771 = vmatpush1.msra.mxu0 0.0
    %4772 = vmatprep.subr.mxu0 0.0
    %4773 = vmatpush1.msra.mxu0 0.0
    %4774 = vmatprep.subr.mxu0 0.0
    %4775 = vmatpush1.msra.mxu0 0.0
    %4776 = vmatprep.subr.mxu0 0.0
    %4777 = vmatpush1.msra.mxu0 0.0
    %4778 = vmatprep.subr.mxu0 0.0
    %4779 = vmatpush1.msra.mxu0 0.0
    %4780 = vmatprep.subr.mxu0 0.0
    %4781 = vmatpush1.msra.mxu0 0.0
    %4782 = vmatprep.subr.mxu0 0.0
    %4783 = vmatpush1.msra.mxu0 0.0
    %4784 = vmatprep.subr.mxu0 0.0
    %4785 = vmatpush1.msra.mxu0 0.0
    %4786 = vmatprep.subr.mxu0 0.0
    %4787 = vmatpush1.msra.mxu0 0.0
    %4788 = vmatprep.subr.mxu0 0.0
    %4789 = vmatpush1.msra.mxu0 0.0
    %4790 = vmatprep.subr.mxu0 0.0
    %4791 = vmatpush1.msra.mxu0 0.0
    %4792 = vmatprep.subr.mxu0 0.0
    %4793 = vmatpush1.msra.mxu0 0.0
    %4794 = vmatprep.subr.mxu0 0.0
    %4795 = vmatpush1.msra.mxu0 0.0
    %4796 = vmatprep.subr.mxu0 0.0
    %4797 = vmatpush1.msra.mxu0 0.0
    %4798 = vmatprep.subr.mxu0 0.0
    %4799 = vmatpush1.msra.mxu0 0.0
    %4800 = vmatprep.subr.mxu0 0.0
    %4801 = vmatpush1.msra.mxu0 0.0
    %4802 = vmatprep.subr.mxu0 0.0
    %4803 = vmatpush1.msra.mxu0 0.0
    %4804 = vmatprep.subr.mxu0 0.0
    %4805 = vmatpush1.msra.mxu0 0.0
    %4806 = vmatprep.subr.mxu0 0.0
    %4807 = vmatpush1.msra.mxu0 0.0
    %4808 = vmatprep.subr.mxu0 0.0
    %4809 = vmatpush1.msra.mxu0 0.0
    %4810 = vmatprep.mubr.f32.mxu0 0.0
    %4811 = vmatmul.mubr.f32.gmra.mrb[0].mxu0 %v4735
    %v4812 = vpop.f32.mrb[0].mxu0
    %v4813 = vadd.f32 %v4732, %v4812
    %v4814 = vpop.f32.mrb[0].mxu0
    %4815 = vmatprep.mubr.f32.mxu0 0.0
    %4816 = vmatmul.mubr.f32.gmra.mrb[0].mxu0 %v4738
    %v4817 = vpop.f32.mrb[0].mxu0
    %v4818 = vadd.f32 %v4732, %v4817
    %v4819 = vpop.f32.mrb[0].mxu0
    %4820 = vmatprep.mubr.f32.mxu0 0.0
    %4821 = vmatmul.mubr.f32.gmra.mrb[0].mxu0 %v4741
    %v4822 = vpop.f32.mrb[0].mxu0
    %v4823 = vadd.f32 %v4732, %v4822
    %v4824 = vpop.f32.mrb[0].mxu0
    %4825 = vmatprep.mubr.f32.mxu0 0.0
    %4826 = vmatmul.mubr.f32.gmra.mrb[0].mxu0 %v4744
    %v4827 = vpop.f32.mrb[0].mxu0
    %v4828 = vadd.f32 %v4732, %v4827
    %v4829 = vpop.f32.mrb[0].mxu0
    %4830 = vdwg.mxu0
    %v4831 = vmul.f32 %v4813, 0.5
    %v4832 = vmul.f32 %v4818, 0.5
    %v4833 = vmul.f32 %v4823, 0.5
    %v4834 = vmul.f32 %v4828, 0.5
    %v4835 = vmul.f32 %v4813, 0.70710677
    %v4836 = vmul.f32 %v4818, 0.70710677
    %v4837 = vmul.f32 %v4823, 0.70710677
    %v4838 = vmul.f32 %v4828, 0.70710677
    %v4839 = verf.f32.pop %v4835
    %v4840 = verf.f32.pop %v4836
    %v4841 = verf.f32.pop %v4837
    %v4842 = verf.f32.pop %v4838
    %v4843 = vadd.f32 %v4839, 1.0
    %v4844 = vadd.f32 %v4840, 1.0
    %v4845 = vadd.f32 %v4841, 1.0
    %v4846 = vadd.f32 %v4842, 1.0
    %v4847 = vmul.f32 %v4831, %v4843
    %v4848 = vmul.f32 %v4832, %v4844
    %v4849 = vmul.f32 %v4833, %v4845
    %v4850 = vmul.f32 %v4834, %v4846
    %s4851 = scalar_lea.vmem %s19, 64
    %v4852 = vld [vmem:[%s4851] sm:$0xff]
    %v4853 = vld [vmem:[%s4851 + $0x8] sm:$0xff]
    %v4854 = vld [vmem:[%s4851 + $0x10] sm:$0xff]
    %v4855 = vld [vmem:[%s4851 + $0x18] sm:$0xff]
    %v4856 = vld [vmem:[%s4851 + $0x20] sm:$0xff]
    %v4857 = vld [vmem:[%s4851 + $0x28] sm:$0xff]
    %v4858 = vld [vmem:[%s4851 + $0x30] sm:$0xff]
    %v4859 = vld [vmem:[%s4851 + $0x38] sm:$0xff]
    %v4861 = vsel %vm2480, %v4847, 0
    %v4864 = vsel %vm2480, %v4848, 0
    %v4867 = vsel %vm2480, %v4849, 0
    %v4870 = vsel %vm2480, %v4850, 0
    %4872 = vmatprep.subr.mxu0 0.0
    %4873 = vmatpush1.msra.mxu0 %v4852
    %4874 = vmatprep.subr.mxu0 0.0
    %4875 = vmatpush1.msra.mxu0 %v4853
    %4876 = vmatprep.subr.mxu0 0.0
    %4877 = vmatpush1.msra.mxu0 %v4854
    %4878 = vmatprep.subr.mxu0 0.0
    %4879 = vmatpush1.msra.mxu0 %v4855
    %4880 = vmatprep.subr.mxu0 0.0
    %4881 = vmatpush1.msra.mxu0 %v4856
    %4882 = vmatprep.subr.mxu0 0.0
    %4883 = vmatpush1.msra.mxu0 %v4857
    %4884 = vmatprep.subr.mxu0 0.0
    %4885 = vmatpush1.msra.mxu0 %v4858
    %4886 = vmatprep.subr.mxu0 0.0
    %4887 = vmatpush1.msra.mxu0 %v4859
    %4888 = vmatprep.subr.mxu0 0.0
    %4889 = vmatpush1.msra.mxu0 0.0
    %4890 = vmatprep.subr.mxu0 0.0
    %4891 = vmatpush1.msra.mxu0 0.0
    %4892 = vmatprep.subr.mxu0 0.0
    %4893 = vmatpush1.msra.mxu0 0.0
    %4894 = vmatprep.subr.mxu0 0.0
    %4895 = vmatpush1.msra.mxu0 0.0
    %4896 = vmatprep.subr.mxu0 0.0
    %4897 = vmatpush1.msra.mxu0 0.0
    %4898 = vmatprep.subr.mxu0 0.0
    %4899 = vmatpush1.msra.mxu0 0.0
    %4900 = vmatprep.subr.mxu0 0.0
    %4901 = vmatpush1.msra.mxu0 0.0
    %4902 = vmatprep.subr.mxu0 0.0
    %4903 = vmatpush1.msra.mxu0 0.0
    %4904 = vmatprep.subr.mxu0 0.0
    %4905 = vmatpush1.msra.mxu0 0.0
    %4906 = vmatprep.subr.mxu0 0.0
    %4907 = vmatpush1.msra.mxu0 0.0
    %4908 = vmatprep.subr.mxu0 0.0
    %4909 = vmatpush1.msra.mxu0 0.0
    %4910 = vmatprep.subr.mxu0 0.0
    %4911 = vmatpush1.msra.mxu0 0.0
    %4912 = vmatprep.subr.mxu0 0.0
    %4913 = vmatpush1.msra.mxu0 0.0
    %4914 = vmatprep.subr.mxu0 0.0
    %4915 = vmatpush1.msra.mxu0 0.0
    %4916 = vmatprep.subr.mxu0 0.0
    %4917 = vmatpush1.msra.mxu0 0.0
    %4918 = vmatprep.subr.mxu0 0.0
    %4919 = vmatpush1.msra.mxu0 0.0
    %4920 = vmatprep.subr.mxu0 0.0
    %4921 = vmatpush1.msra.mxu0 0.0
    %4922 = vmatprep.subr.mxu0 0.0
    %4923 = vmatpush1.msra.mxu0 0.0
    %4924 = vmatprep.subr.mxu0 0.0
    %4925 = vmatpush1.msra.mxu0 0.0
    %4926 = vmatprep.subr.mxu0 0.0
    %4927 = vmatpush1.msra.mxu0 0.0
    %4928 = vmatprep.subr.mxu0 0.0
    %4929 = vmatpush1.msra.mxu0 0.0
    %4930 = vmatprep.subr.mxu0 0.0
    %4931 = vmatpush1.msra.mxu0 0.0
    %4932 = vmatprep.subr.mxu0 0.0
    %4933 = vmatpush1.msra.mxu0 0.0
    %4934 = vmatprep.subr.mxu0 0.0
    %4935 = vmatpush1.msra.mxu0 0.0
    %4936 = vmatprep.mubr.f32.mxu0 0.0
    %4937 = vmatmul.mubr.f32.gmra.mrb[0].mxu0 %v4861
    %v4938 = vpop.f32.mrb[0].mxu0
    %v4939 = vpop.f32.mrb[0].mxu0
    %4940 = vmatprep.mubr.f32.mxu0 0.0
    %4941 = vmatmul.mubr.f32.gmra.mrb[0].mxu0 %v4864
    %v4942 = vpop.f32.mrb[0].mxu0
    %v4943 = vadd.f32 0.0, %v4942
    %v4944 = vpop.f32.mrb[0].mxu0
    %4945 = vmatprep.mubr.f32.mxu0 0.0
    %4946 = vmatmul.mubr.f32.gmra.mrb[0].mxu0 %v4867
    %v4947 = vpop.f32.mrb[0].mxu0
    %v4948 = vpop.f32.mrb[0].mxu0
    %4949 = vmatprep.mubr.f32.mxu0 0.0
    %4950 = vmatmul.mubr.f32.gmra.mrb[0].mxu0 %v4870
    %v4951 = vpop.f32.mrb[0].mxu0
    %v4952 = vadd.f32 0.0, %v4951
    %v4953 = vpop.f32.mrb[0].mxu0
    %4954 = vdwg.mxu0
    %v4955 = vadd.f32 %v4642, %v4943
    %v4956 = vadd.f32 %v4644, %v4952
    %s4957 = scalar_lea.vmem %s20, 1
    %v4958 = vld [vmem:[%s4957] sm:$0x1]
    %v4960 = vlaneseq
    %v4961 = vshrl.u32 %v4960, 7
    %v4962 = vsub.s32 0, %v4961
    %v4963 = vrot.slane %v4958, %v4962
    %v4965 = vadd.f32 %v4955, %v4963
    %v4966 = vadd.f32 %v4956, %v4963
    %v4967 = vld [vmem:[%s21] sm:$0x1]
    %v4968 = vld [vmem:[%s22] sm:$0x1]
    %v4971 = vrot.slane %v4966, 7
    %vm4972 = vcmask 1041409
    %v4973 = vsel %vm4972, %v4971, %v4965
    %vm4975 = vcmask 254976
    %v4976 = vsel %vm4975, %v4973, 0.0
    %4977 = vadd.xlane.f32.xlu0 %v4976
    %v4978 = vpop.xlane.xlu0 %4977
    %v4979 = vmul.f32 %v4978, %v255
    %v4981 = vrot.slane %v4979, 1
    %v4984 = vsub.f32 %v4965, %v4979
    %v4985 = vsub.f32 %v4966, %v4981
    %v4986 = vmul.f32 %v4984, %v4984
    %v4987 = vmul.f32 %v4985, %v4985
    %v4990 = vrot.slane %v4987, 7
    %v4991 = vsel %vm4972, %v4990, %v4986
    %v4993 = vsel %vm4975, %v4991, 0.0
    %4994 = vadd.xlane.f32.xlu0 %v4993
    %v4995 = vpop.xlane.xlu0 %4994
    %v4996 = vmul.f32 %v4995, %v255
    %v4997 = vadd.f32 %v4996, 1e-05
    %v4998 = vrsqrt.pop %v4997
    %v5000 = vrot.slane %v4998, 1
    %v5003 = vmul.f32 %v4984, %v4998
    %v5004 = vmul.f32 %v4985, %v5000
    %v5006 = vlaneseq
    %v5007 = vshrl.u32 %v5006, 7
    %v5008 = vsub.s32 0, %v5007
    %v5009 = vrot.slane %v4967, %v5008
    %v5011 = vmul.f32 %v5003, %v5009
    %v5012 = vmul.f32 %v5004, %v5009
    %v5014 = vlaneseq
    %v5015 = vshrl.u32 %v5014, 7
    %v5016 = vsub.s32 0, %v5015
    %v5017 = vrot.slane %v4968, %v5016
    %v5019 = vadd.f32 %v5011, %v5017
    %v5020 = vadd.f32 %v5012, %v5017
    %v5021 = vld [vmem:[%s23] sm:$0xff]
    %v5022 = vld [vmem:[%s23 + $0x8] sm:$0xff]
    %v5023 = vld [vmem:[%s23 + $0x10] sm:$0xff]
    %v5024 = vld [vmem:[%s23 + $0x18] sm:$0xff]
    %v5025 = vld [vmem:[%s24] sm:$0x1]
    %v5027 = vlaneseq
    %v5028 = vshrl.u32 %v5027, 7
    %v5029 = vsub.s32 0, %v5028
    %v5030 = vrot.slane %v5025, %v5029
    %v5034 = vrot.slane %v5020, 7
    %v5035 = vsel %vm4972, %v5034, %v5019
    %v5036 = vsel %vm245, %v5035, 0
    %5038 = vmatprep.subr.mxu0 0.0
    %5039 = vmatpush1.msra.mxu0 %v5021
    %5040 = vmatprep.subr.mxu0 0.0
    %5041 = vmatpush1.msra.mxu0 %v5022
    %5042 = vmatprep.subr.mxu0 0.0
    %5043 = vmatpush1.msra.mxu0 %v5023
    %5044 = vmatprep.subr.mxu0 0.0
    %5045 = vmatpush1.msra.mxu0 %v5024
    %5046 = vmatprep.subr.mxu0 0.0
    %5047 = vmatpush1.msra.mxu0 0.0
    %5048 = vmatprep.subr.mxu0 0.0
    %5049 = vmatpush1.msra.mxu0 0.0
    %5050 = vmatprep.subr.mxu0 0.0
    %5051 = vmatpush1.msra.mxu0 0.0
    %5052 = vmatprep.subr.mxu0 0.0
    %5053 = vmatpush1.msra.mxu0 0.0
    %5054 = vmatprep.subr.mxu0 0.0
    %5055 = vmatpush1.msra.mxu0 0.0
    %5056 = vmatprep.subr.mxu0 0.0
    %5057 = vmatpush1.msra.mxu0 0.0
    %5058 = vmatprep.subr.mxu0 0.0
    %5059 = vmatpush1.msra.mxu0 0.0
    %5060 = vmatprep.subr.mxu0 0.0
    %5061 = vmatpush1.msra.mxu0 0.0
    %5062 = vmatprep.subr.mxu0 0.0
    %5063 = vmatpush1.msra.mxu0 0.0
    %5064 = vmatprep.subr.mxu0 0.0
    %5065 = vmatpush1.msra.mxu0 0.0
    %5066 = vmatprep.subr.mxu0 0.0
    %5067 = vmatpush1.msra.mxu0 0.0
    %5068 = vmatprep.subr.mxu0 0.0
    %5069 = vmatpush1.msra.mxu0 0.0
    %5070 = vmatprep.subr.mxu0 0.0
    %5071 = vmatpush1.msra.mxu0 0.0
    %5072 = vmatprep.subr.mxu0 0.0
    %5073 = vmatpush1.msra.mxu0 0.0
    %5074 = vmatprep.subr.mxu0 0.0
    %5075 = vmatpush1.msra.mxu0 0.0
    %5076 = vmatprep.subr.mxu0 0.0
    %5077 = vmatpush1.msra.mxu0 0.0
    %5078 = vmatprep.subr.mxu0 0.0
    %5079 = vmatpush1.msra.mxu0 0.0
    %5080 = vmatprep.subr.mxu0 0.0
    %5081 = vmatpush1.msra.mxu0 0.0
    %5082 = vmatprep.subr.mxu0 0.0
    %5083 = vmatpush1.msra.mxu0 0.0
    %5084 = vmatprep.subr.mxu0 0.0
    %5085 = vmatpush1.msra.mxu0 0.0
    %5086 = vmatprep.subr.mxu0 0.0
    %5087 = vmatpush1.msra.mxu0 0.0
    %5088 = vmatprep.subr.mxu0 0.0
    %5089 = vmatpush1.msra.mxu0 0.0
    %5090 = vmatprep.subr.mxu0 0.0
    %5091 = vmatpush1.msra.mxu0 0.0
    %5092 = vmatprep.subr.mxu0 0.0
    %5093 = vmatpush1.msra.mxu0 0.0
    %5094 = vmatprep.subr.mxu0 0.0
    %5095 = vmatpush1.msra.mxu0 0.0
    %5096 = vmatprep.subr.mxu0 0.0
    %5097 = vmatpush1.msra.mxu0 0.0
    %5098 = vmatprep.subr.mxu0 0.0
    %5099 = vmatpush1.msra.mxu0 0.0
    %5100 = vmatprep.subr.mxu0 0.0
    %5101 = vmatpush1.msra.mxu0 0.0
    %5102 = vmatprep.mubr.f32.mxu0 0.0
    %5103 = vmatmul.mubr.f32.gmra.mrb[0].mxu0 %v5036
    %v5104 = vpop.f32.mrb[0].mxu0
    %v5105 = vadd.f32 %v5030, %v5104
    %v5106 = vpop.f32.mrb[0].mxu0
    %5107 = vdwg.mxu0
    %5108 = vst [vmem:[#allocation2] sm:$0x3] %v5105
    // Predicated region
    $region102: #{vit_forward.1} parent=1 // pred_check
      _
    $region103: #{vit_forward.1} parent=1 // pred_check_branch
      %5110 = sbr.rel (0) target = $region105
    $region104: #{vit_forward.1} parent=1 // pred_region
      %s5112 = ssub.s32 32, 32
      %5113 = vsyncadd [#allocation3], %s5112
      %s5115 = sshll.u32 [#allocation2], 4
      %s5116 = int_to_ptr.vmem [resolvable:$true] %s5115
      %5118 = dma.vmem_to_hbm [thread:$0]  %s5116, 32, %s25, [#allocation3]
    $region105: #{vit_forward.1} parent=1 // pred_fallthru
      _
    // Predicated region
    $region106: #{vit_forward.1} parent=1 // pred_check
      _
    $region107: #{vit_forward.1} parent=1 // pred_check_branch
      %5120 = sbr.rel (0) target = $region109
    $region108: #{vit_forward.1} parent=1 // pred_region
      %5121 = dma.done [#allocation3], 32
    $region109: #{vit_forward.1} parent=1 // pred_fallthru
      _
    %5122 = vsyncpa [#allocation3], 1

</llo_original>
